<compile_context>
chip_gen: v5e
topology: v5e:2x2
jax: 0.10.0
libtpu: 0.0.40
codegen_flags: <defaults>
</compile_context>

<pallas_src>
import math
from functools import partial

import numpy as np
import jax
import jax.numpy as jnp
from jax.experimental import pallas as pl
from jax.experimental.pallas import tpu as pltpu

# ----------------------------- config (small) -------------------------------
B = 2            # batch
L = 128          # sequence length (stands in for 512; pool window == L)
H = 128          # hidden size
NH = 2           # attention heads
DH = H // NH     # head dim
FF = 256         # intermediate size
NLAYERS = 2      # encoder layers
VOCAB = 1000
TYPE_VOCAB = 2
MAX_POS = 512
OUT_SHAPE = 2    # output_shape of the fc head
LN_EPS = 1e-12


def _ln_math(x, g, b):
    """LayerNorm over the last axis, f32 math."""
    mu = jnp.mean(x, axis=-1, keepdims=True)
    var = jnp.mean(jnp.square(x - mu), axis=-1, keepdims=True)
    return (x - mu) * jax.lax.rsqrt(var + LN_EPS) * g + b


# ------------------- fused encoder (+emb LN +pooled head) ---------------------
def _fused_kernel(emb_ref, mask_ref, eg_ref, eb_ref,
                  wqkv_ref, bqkv_ref, wo_ref, bo_ref, g1_ref, b1_ref,
                  wi_ref, bi_ref, wf_ref, bf_ref, g2_ref, b2_ref,
                  fcw_ref, fcb_ref,
                  out_ref,
                  x_carry, qkv_buf,
                  *, nh, dh):
    """Grid step = (batch b, layer l).  Runs one full transformer layer on one
    batch element; x is carried in VMEM scratch across the layer axis.

    emb_ref : (1, L, H) f32 raw embedding sum   mask_ref : (1, 1, L) additive mask
    weights : bf16 (matmul operands), biases / LN params f32 (stacked on layer axis)
    out_ref : (1, 1, OUT) f32 — written only on the last layer step.
    """
    l = pl.program_id(1)
    n_layers = pl.num_programs(1)
    hid = nh * dh

    # ---- embedding LayerNorm -> initialize the activation carry (layer 0) ----
    @pl.when(l == 0)
    def _():
        x_carry[...] = _ln_math(emb_ref[0], eg_ref[...], eb_ref[...])

    x = x_carry[...]                                   # (L, H) f32
    mask = mask_ref[0]                                 # (1, L) additive key mask

    # ---- fused QKV projection (softmax scale pre-folded into the q weights) --
    qkv_buf[...] = jnp.dot(x.astype(jnp.bfloat16), wqkv_ref[0],
                           preferred_element_type=jnp.float32) + bqkv_ref[0]

    # ---- per-head attention; head merge folded into wo slices (no concat) ----
    # TODO(synk): switch the static Python head loop to lax.fori_loop(unroll=True)
    # if NH grows beyond a few heads.
    attn = bo_ref[0]                                   # (1, H) f32, broadcasts
    for h in range(nh):
        qh = qkv_buf[:, h * dh:(h + 1) * dh].astype(jnp.bfloat16)                # (L,DH)
        kh = qkv_buf[:, hid + h * dh: hid + (h + 1) * dh].astype(jnp.bfloat16)   # (L,DH)
        vh = qkv_buf[:, 2 * hid + h * dh: 2 * hid + (h + 1) * dh].astype(jnp.bfloat16)
        # q @ k^T without an explicit transpose (contract last dims)
        s = jax.lax.dot_general(qh, kh, (((1,), (1,)), ((), ())),
                                preferred_element_type=jnp.float32)              # (L,L)
        s = s + mask
        s = s - jnp.max(s, axis=-1, keepdims=True)
        p = jnp.exp(s)
        p = p * pl.reciprocal(jnp.sum(p, axis=-1, keepdims=True), approx=True)
        ctx_h = jnp.dot(p.astype(jnp.bfloat16), vh,
                        preferred_element_type=jnp.float32)                      # (L,DH)
        attn = attn + jnp.dot(ctx_h.astype(jnp.bfloat16),
                              wo_ref[0, h * dh:(h + 1) * dh, :],
                              preferred_element_type=jnp.float32)                # (L,H)

    # ---- residual + LN, feed-forward (GELU), residual + LN (f32 math) --------
    x1 = _ln_math(attn + x, g1_ref[0], b1_ref[0])
    h1 = jnp.dot(x1.astype(jnp.bfloat16), wi_ref[0],
                 preferred_element_type=jnp.float32) + bi_ref[0]                 # (L,FF)
    # TODO(synk): HF BERT uses erf-GELU; tanh approximation kept for robust TPU lowering.
    h1 = jax.nn.gelu(h1, approximate=True)
    h2 = jnp.dot(h1.astype(jnp.bfloat16), wf_ref[0],
                 preferred_element_type=jnp.float32) + bf_ref[0]                 # (L,H)
    x2 = _ln_math(h2 + x1, g2_ref[0], b2_ref[0])
    x_carry[...] = x2

    # ---- pooled head on the last layer step: avg/max over L, concat, fc ------
    @pl.when(l == n_layers - 1)
    def _():
        x_avg = jnp.mean(x2, axis=0, keepdims=True)    # (1, H)  == AvgPool1d(L)
        x_max = jnp.max(x2, axis=0, keepdims=True)     # (1, H)  == MaxPool1d(L)
        # concat([avg, max]) @ fc_w  ==  avg @ fc_w[:H] + max @ fc_w[H:]
        out = (jnp.dot(x_avg, fcw_ref[0:hid, :], preferred_element_type=jnp.float32)
               + jnp.dot(x_max, fcw_ref[hid:2 * hid, :], preferred_element_type=jnp.float32)
               + fcb_ref[...])
        out_ref[0] = out


def bert_encoder_and_head(params, emb, add_mask):
    """emb: (B, L, H) f32 raw embedding sum; add_mask: (B, 1, L) additive mask.
    Returns fc head output (B, OUT_SHAPE)."""
    st = params["stacked"]
    Bq, Lq, Hh = emb.shape
    nl = st["wqkv"].shape[0]
    ff = st["wi"].shape[-1]

    in_specs = [
        pl.BlockSpec((1, Lq, Hh), lambda b, l: (b, 0, 0)),        # emb (per batch row)
        pl.BlockSpec((1, 1, Lq), lambda b, l: (b, 0, 0)),         # additive mask
        pl.BlockSpec((1, Hh), lambda b, l: (0, 0)),               # emb LN gamma
        pl.BlockSpec((1, Hh), lambda b, l: (0, 0)),               # emb LN beta
        pl.BlockSpec((1, Hh, 3 * Hh), lambda b, l: (l, 0, 0)),    # wqkv  (per layer)
        pl.BlockSpec((1, 1, 3 * Hh), lambda b, l: (l, 0, 0)),     # bqkv
        pl.BlockSpec((1, Hh, Hh), lambda b, l: (l, 0, 0)),        # wo
        pl.BlockSpec((1, 1, Hh), lambda b, l: (l, 0, 0)),         # bo
        pl.BlockSpec((1, 1, Hh), lambda b, l: (l, 0, 0)),         # ln1_g
        pl.BlockSpec((1, 1, Hh), lambda b, l: (l, 0, 0)),         # ln1_b
        pl.BlockSpec((1, Hh, ff), lambda b, l: (l, 0, 0)),        # wi
        pl.BlockSpec((1, 1, ff), lambda b, l: (l, 0, 0)),         # bi
        pl.BlockSpec((1, ff, Hh), lambda b, l: (l, 0, 0)),        # wf
        pl.BlockSpec((1, 1, Hh), lambda b, l: (l, 0, 0)),         # bf
        pl.BlockSpec((1, 1, Hh), lambda b, l: (l, 0, 0)),         # ln2_g
        pl.BlockSpec((1, 1, Hh), lambda b, l: (l, 0, 0)),         # ln2_b
        pl.BlockSpec((2 * Hh, OUT_SHAPE), lambda b, l: (0, 0)),   # fc_w
        pl.BlockSpec((1, OUT_SHAPE), lambda b, l: (0, 0)),        # fc_b
    ]

    out = pl.pallas_call(
        partial(_fused_kernel, nh=NH, dh=DH),
        out_shape=jax.ShapeDtypeStruct((Bq, 1, OUT_SHAPE), jnp.float32),
        grid=(Bq, nl),
        in_specs=in_specs,
        out_specs=pl.BlockSpec((1, 1, OUT_SHAPE), lambda b, l: (b, 0, 0)),
        scratch_shapes=[
            pltpu.VMEM((Lq, Hh), jnp.float32),        # activation carry across layers
            pltpu.VMEM((Lq, 3 * Hh), jnp.float32),    # staged qkv projection
        ],
        compiler_params=pltpu.CompilerParams(
            # batch parallel (v7x: one batch element per TensorCore);
            # layer axis is a carried reduction -> arbitrary.
            dimension_semantics=("parallel", "arbitrary")),
    )(emb, add_mask,
      params["emb_ln_g"], params["emb_ln_b"],
      st["wqkv"], st["bqkv"], st["wo"], st["bo"], st["ln1_g"], st["ln1_b"],
      st["wi"], st["bi"], st["wf"], st["bf"], st["ln2_g"], st["ln2_b"],
      params["fc_w"], params["fc_b"])
    return out[:, 0, :]


# ------------------------------ parameter init -------------------------------
def init_params(key):
    def dense(k, shape):
        return (0.02 * jax.random.normal(k, shape)).astype(jnp.float32)

    keys = jax.random.split(key, 5 + NLAYERS)
    params = {
        "word_emb": dense(keys[0], (VOCAB, H)),
        "pos_emb": dense(keys[1], (MAX_POS, H)),
        "type_emb": dense(keys[2], (TYPE_VOCAB, H)),
        "emb_ln_g": jnp.ones((1, H), jnp.float32),
        "emb_ln_b": jnp.zeros((1, H), jnp.float32),
        "fc_w": dense(keys[3], (2 * H, OUT_SHAPE)),   # nn.Linear(2H, OUT) weight^T
        "fc_b": dense(keys[4], (1, OUT_SHAPE)),
    }
    wqkv, bqkv, wo, bo = [], [], [], []
    ln1g, ln1b, wi, bi, wf, bf, ln2g, ln2b = [], [], [], [], [], [], [], []
    for i in range(NLAYERS):
        lk = jax.random.split(keys[5 + i], 10)
        # q/k/v projections fused into one (H, 3H) bf16 matmul weight;
        # the 1/sqrt(DH) softmax scale is folded into the q third (zero runtime cost).
        wq = dense(lk[0], (H, H)) * (1.0 / math.sqrt(DH))
        wk = dense(lk[1], (H, H))
        wv = dense(lk[2], (H, H))
        wqkv.append(jnp.concatenate([wq, wk, wv], axis=1).astype(jnp.bfloat16))
        bqkv.append(dense(lk[3], (1, 3 * H)))
        wo.append(dense(lk[4], (H, H)).astype(jnp.bfloat16))
        bo.append(dense(lk[5], (1, H)))
        ln1g.append(jnp.ones((1, H), jnp.float32))
        ln1b.append(jnp.zeros((1, H), jnp.float32))
        wi.append(dense(lk[6], (H, FF)).astype(jnp.bfloat16))
        bi.append(dense(lk[7], (1, FF)))
        wf.append(dense(lk[8], (FF, H)).astype(jnp.bfloat16))
        bf.append(dense(lk[9], (1, H)))
        ln2g.append(jnp.ones((1, H), jnp.float32))
        ln2b.append(jnp.zeros((1, H), jnp.float32))

    stack = lambda xs: jnp.stack(xs, axis=0)
    params["stacked"] = {
        "wqkv": stack(wqkv), "bqkv": stack(bqkv),
        "wo": stack(wo), "bo": stack(bo),
        "ln1_g": stack(ln1g), "ln1_b": stack(ln1b),
        "wi": stack(wi), "bi": stack(bi),
        "wf": stack(wf), "bf": stack(bf),
        "ln2_g": stack(ln2g), "ln2_b": stack(ln2b),
    }
    return params


# ------------------------------ forward pass ---------------------------------
@jax.jit
def bert_on_qa_forward(params, input_ids, attention_mask, token_type_ids):
    Bq, Lq = input_ids.shape
    # Embedding gathers are XLA glue; everything after (emb LN -> encoder layers
    # -> avg/max pool -> fc) is one fused Pallas kernel.
    emb = (params["word_emb"][input_ids]
           + params["pos_emb"][None, :Lq, :]
           + params["type_emb"][token_type_ids])                          # (B, L, H)
    # HF-style extended additive mask, shaped (B, 1, L) for a lane-clean BlockSpec.
    add_mask = ((1.0 - attention_mask.astype(jnp.float32)) * -10000.0)[:, None, :]
    return bert_encoder_and_head(params, emb, add_mask)                   # (B, OUT)


# ---------------------- pure-JAX f32 reference (for check) -------------------
def _ln_ref(x, g, b):
    mu = jnp.mean(x, axis=-1, keepdims=True)
    var = jnp.mean(jnp.square(x - mu), axis=-1, keepdims=True)
    return (x - mu) * jax.lax.rsqrt(var + LN_EPS) * g + b


def bert_on_qa_reference(params, input_ids, attention_mask, token_type_ids):
    Bq, Lq = input_ids.shape
    emb = (params["word_emb"][input_ids]
           + params["pos_emb"][None, :Lq, :]
           + params["type_emb"][token_type_ids])
    x = _ln_ref(emb, params["emb_ln_g"][0], params["emb_ln_b"][0])
    mask = (1.0 - attention_mask.astype(jnp.float32))[:, None, None, :] * -10000.0
    st = params["stacked"]
    for i in range(NLAYERS):
        qkv = x @ st["wqkv"][i].astype(jnp.float32) + st["bqkv"][i]
        q, k, v = jnp.split(qkv, 3, axis=-1)
        sh = lambda t: t.reshape(Bq, Lq, NH, DH).transpose(0, 2, 1, 3)
        qh, kh, vh = sh(q), sh(k), sh(v)
        s = jnp.einsum("bhqd,bhkd->bhqk", qh, kh) + mask   # scale already folded into wq
        p = jax.nn.softmax(s, axis=-1)
        ctx = jnp.einsum("bhqk,bhkd->bhqd", p, vh).transpose(0, 2, 1, 3).reshape(Bq, Lq, H)
        attn = ctx @ st["wo"][i].astype(jnp.float32) + st["bo"][i]
        x1 = _ln_ref(attn + x, st["ln1_g"][i], st["ln1_b"][i])
        h1 = jax.nn.gelu(x1 @ st["wi"][i].astype(jnp.float32) + st["bi"][i], approximate=True)
        h2 = h1 @ st["wf"][i].astype(jnp.float32) + st["bf"][i]
        x = _ln_ref(h2 + x1, st["ln2_g"][i], st["ln2_b"][i])
    feat = jnp.concatenate([x.mean(axis=1), x.max(axis=1)], axis=-1)
    return feat @ params["fc_w"] + params["fc_b"]


# ----------------------------------- main ------------------------------------
if __name__ == "__main__":
    root = jax.random.PRNGKey(0)
    k_params, k_ids = jax.random.split(root)
    params = init_params(k_params)

    input_ids = jax.random.randint(k_ids, (B, L), 0, VOCAB, dtype=jnp.int32)
    attention_mask = jnp.ones((B, L), jnp.int32).at[1, L - 32:].set(0)
    token_type_ids = jnp.zeros((B, L), jnp.int32).at[:, L // 2:].set(1)

    out = bert_on_qa_forward(params, input_ids, attention_mask, token_type_ids)
    jax.block_until_ready(out)
    assert out.shape == (B, OUT_SHAPE) and out.dtype == jnp.float32

    # Validate against a pure-JAX f32 reference (bf16 matmuls / approx recip /
    # tanh-GELU account for the tolerance).
    ref = bert_on_qa_reference(params, input_ids, attention_mask, token_type_ids)
    np.testing.assert_allclose(np.asarray(out), np.asarray(ref), rtol=5e-2, atol=5e-2)
    print("KERNEL_OK")
</pallas_src>

<mosaic_0001>
module attributes {stable_mosaic.version = 11 : i64} {
  func.func @_fused_kernel(%arg0: i32, %arg1: i32, %arg2: memref<1x128x128xf32, #tpu.memory_space<vmem>>, %arg3: memref<1x1x128xf32, #tpu.memory_space<vmem>>, %arg4: memref<1x128xf32, #tpu.memory_space<vmem>>, %arg5: memref<1x128xf32, #tpu.memory_space<vmem>>, %arg6: memref<1x128x384xbf16, #tpu.memory_space<vmem>>, %arg7: memref<1x1x384xf32, #tpu.memory_space<vmem>>, %arg8: memref<1x128x128xbf16, #tpu.memory_space<vmem>>, %arg9: memref<1x1x128xf32, #tpu.memory_space<vmem>>, %arg10: memref<1x1x128xf32, #tpu.memory_space<vmem>>, %arg11: memref<1x1x128xf32, #tpu.memory_space<vmem>>, %arg12: memref<1x128x256xbf16, #tpu.memory_space<vmem>>, %arg13: memref<1x1x256xf32, #tpu.memory_space<vmem>>, %arg14: memref<1x256x128xbf16, #tpu.memory_space<vmem>>, %arg15: memref<1x1x128xf32, #tpu.memory_space<vmem>>, %arg16: memref<1x1x128xf32, #tpu.memory_space<vmem>>, %arg17: memref<1x1x128xf32, #tpu.memory_space<vmem>>, %arg18: memref<256x2xf32, #tpu.memory_space<vmem>>, %arg19: memref<1x2xf32, #tpu.memory_space<vmem>>, %arg20: memref<1x1x2xf32, #tpu.memory_space<vmem>>, %arg21: memref<128x128xf32, #tpu.memory_space<vmem>>, %arg22: memref<128x384xf32, #tpu.memory_space<vmem>>) attributes {dimension_semantics = [#tpu.dimension_semantics<parallel>, #tpu.dimension_semantics<arbitrary>], iteration_bounds = array<i64: 2, 2>, scalar_prefetch = 0 : i64, scratch_operands = 2 : i64, tpu.core_type = #tpu.core_type<tc>, window_params = [{transform_indices = @transform_0, window_bounds = array<i64: 1, 128, 128>}, {transform_indices = @transform_1, window_bounds = array<i64: 1, 1, 128>}, {pipeline_mode = #tpu.pipeline_mode<synchronous>, transform_indices = @transform_2, window_bounds = array<i64: 1, 128>}, {pipeline_mode = #tpu.pipeline_mode<synchronous>, transform_indices = @transform_3, window_bounds = array<i64: 1, 128>}, {transform_indices = @transform_4, window_bounds = array<i64: 1, 128, 384>}, {transform_indices = @transform_5, window_bounds = array<i64: 1, 1, 384>}, {transform_indices = @transform_6, window_bounds = array<i64: 1, 128, 128>}, {transform_indices = @transform_7, window_bounds = array<i64: 1, 1, 128>}, {transform_indices = @transform_8, window_bounds = array<i64: 1, 1, 128>}, {transform_indices = @transform_9, window_bounds = array<i64: 1, 1, 128>}, {transform_indices = @transform_10, window_bounds = array<i64: 1, 128, 256>}, {transform_indices = @transform_11, window_bounds = array<i64: 1, 1, 256>}, {transform_indices = @transform_12, window_bounds = array<i64: 1, 256, 128>}, {transform_indices = @transform_13, window_bounds = array<i64: 1, 1, 128>}, {transform_indices = @transform_14, window_bounds = array<i64: 1, 1, 128>}, {transform_indices = @transform_15, window_bounds = array<i64: 1, 1, 128>}, {pipeline_mode = #tpu.pipeline_mode<synchronous>, transform_indices = @transform_16, window_bounds = array<i64: 256, 2>}, {pipeline_mode = #tpu.pipeline_mode<synchronous>, transform_indices = @transform_17, window_bounds = array<i64: 1, 2>}, {transform_indices = @transform_18, window_bounds = array<i64: 1, 1, 2>}]} {
    %c0_i32 = arith.constant 0 : i32
    %0 = arith.cmpi eq, %arg1, %c0_i32 : i32
    %1 = arith.extui %0 : i1 to i32
    %c0_i32_0 = arith.constant 0 : i32
    %2 = arith.cmpi ne, %1, %c0_i32_0 : i32
    scf.if %2 {
      %c0_82 = arith.constant 0 : index
      %c0_83 = arith.constant 0 : index
      %c0_84 = arith.constant 0 : index
      %157 = vector.load %arg2[%c0_82, %c0_83, %c0_84] : memref<1x128x128xf32, #tpu.memory_space<vmem>>, vector<1x128x128xf32>
      %158 = vector.shape_cast %157 : vector<1x128x128xf32> to vector<128x128xf32>
      %c0_85 = arith.constant 0 : index
      %c0_86 = arith.constant 0 : index
      %159 = vector.load %arg4[%c0_85, %c0_86] : memref<1x128xf32, #tpu.memory_space<vmem>>, vector<1x128xf32>
      %c0_87 = arith.constant 0 : index
      %c0_88 = arith.constant 0 : index
      %160 = vector.load %arg5[%c0_87, %c0_88] : memref<1x128xf32, #tpu.memory_space<vmem>>, vector<1x128xf32>
      %cst_89 = arith.constant dense<0.000000e+00> : vector<128xf32>
      %161 = vector.multi_reduction <add>, %158, %cst_89 [1] : vector<128x128xf32> to vector<128xf32>
      %162 = vector.shape_cast %161 : vector<128xf32> to vector<128x1xf32>
      %cst_90 = arith.constant 1.280000e+02 : f32
      %163 = vector.broadcast %cst_90 : f32 to vector<128x1xf32>
      %164 = arith.divf %162, %163 : vector<128x1xf32>
      %165 = vector.broadcast %164 : vector<128x1xf32> to vector<128x128xf32>
      %166 = arith.subf %158, %165 : vector<128x128xf32>
      %167 = arith.mulf %166, %166 : vector<128x128xf32>
      %cst_91 = arith.constant dense<0.000000e+00> : vector<128xf32>
      %168 = vector.multi_reduction <add>, %167, %cst_91 [1] : vector<128x128xf32> to vector<128xf32>
      %169 = vector.shape_cast %168 : vector<128xf32> to vector<128x1xf32>
      %cst_92 = arith.constant 1.280000e+02 : f32
      %170 = vector.broadcast %cst_92 : f32 to vector<128x1xf32>
      %171 = arith.divf %169, %170 : vector<128x1xf32>
      %172 = vector.broadcast %164 : vector<128x1xf32> to vector<128x128xf32>
      %173 = arith.subf %158, %172 : vector<128x128xf32>
      %cst_93 = arith.constant 9.99999996E-13 : f32
      %174 = vector.broadcast %cst_93 : f32 to vector<128x1xf32>
      %175 = arith.addf %171, %174 : vector<128x1xf32>
      %176 = math.rsqrt %175 : vector<128x1xf32>
      %177 = vector.broadcast %176 : vector<128x1xf32> to vector<128x128xf32>
      %178 = arith.mulf %173, %177 : vector<128x128xf32>
      %179 = vector.broadcast %159 : vector<1x128xf32> to vector<128x128xf32>
      %180 = arith.mulf %178, %179 : vector<128x128xf32>
      %181 = vector.broadcast %160 : vector<1x128xf32> to vector<128x128xf32>
      %182 = arith.addf %180, %181 : vector<128x128xf32>
      %c0_94 = arith.constant 0 : index
      %c0_95 = arith.constant 0 : index
      %183 = vector.load %arg21[%c0_94, %c0_95] : memref<128x128xf32, #tpu.memory_space<vmem>>, vector<128x128xf32>
      tpu.vector_store %arg21[%c0_94, %c0_95], %182 {strides = array<i32>} : memref<128x128xf32, #tpu.memory_space<vmem>>, vector<128x128xf32>,
    } else {
    }
    %c0 = arith.constant 0 : index
    %c0_1 = arith.constant 0 : index
    %3 = vector.load %arg21[%c0, %c0_1] : memref<128x128xf32, #tpu.memory_space<vmem>>, vector<128x128xf32>
    %c0_2 = arith.constant 0 : index
    %c0_3 = arith.constant 0 : index
    %c0_4 = arith.constant 0 : index
    %4 = vector.load %arg3[%c0_2, %c0_3, %c0_4] : memref<1x1x128xf32, #tpu.memory_space<vmem>>, vector<1x1x128xf32>
    %5 = vector.shape_cast %4 : vector<1x1x128xf32> to vector<1x128xf32>
    %6 = arith.truncf %3 : vector<128x128xf32> to vector<128x128xbf16>
    %c0_5 = arith.constant 0 : index
    %c0_6 = arith.constant 0 : index
    %c0_7 = arith.constant 0 : index
    %7 = vector.load %arg6[%c0_5, %c0_6, %c0_7] : memref<1x128x384xbf16, #tpu.memory_space<vmem>>, vector<1x128x384xbf16>
    %8 = vector.shape_cast %7 : vector<1x128x384xbf16> to vector<128x384xbf16>
    %cst = arith.constant dense<0.000000e+00> : vector<128x384xf32>
    %9 = tpu.matmul %6, %8, %cst {dimension_numbers = #tpu.dot_dimension_numbers<[1], [0], [0], [1], [0, 0, 1, 1], [], []>} : vector<128x128xbf16>, vector<128x384xbf16>, vector<128x384xf32> -> vector<128x384xf32>
    %c0_8 = arith.constant 0 : index
    %c0_9 = arith.constant 0 : index
    %c0_10 = arith.constant 0 : index
    %10 = vector.load %arg7[%c0_8, %c0_9, %c0_10] : memref<1x1x384xf32, #tpu.memory_space<vmem>>, vector<1x1x384xf32>
    %11 = vector.shape_cast %10 : vector<1x1x384xf32> to vector<1x384xf32>
    %12 = vector.broadcast %11 : vector<1x384xf32> to vector<128x384xf32>
    %13 = arith.addf %9, %12 : vector<128x384xf32>
    %c0_11 = arith.constant 0 : index
    %c0_12 = arith.constant 0 : index
    %14 = vector.load %arg22[%c0_11, %c0_12] : memref<128x384xf32, #tpu.memory_space<vmem>>, vector<128x384xf32>
    tpu.vector_store %arg22[%c0_11, %c0_12], %13 {strides = array<i32>} : memref<128x384xf32, #tpu.memory_space<vmem>>, vector<128x384xf32>,
    %c0_13 = arith.constant 0 : index
    %c0_14 = arith.constant 0 : index
    %c0_15 = arith.constant 0 : index
    %15 = vector.load %arg9[%c0_13, %c0_14, %c0_15] : memref<1x1x128xf32, #tpu.memory_space<vmem>>, vector<1x1x128xf32>
    %16 = vector.shape_cast %15 : vector<1x1x128xf32> to vector<1x128xf32>
    %c0_16 = arith.constant 0 : index
    %c0_17 = arith.constant 0 : index
    %17 = vector.load %arg22[%c0_16, %c0_17] : memref<128x384xf32, #tpu.memory_space<vmem>>, vector<128x64xf32>
    %18 = arith.truncf %17 : vector<128x64xf32> to vector<128x64xbf16>
    %c0_18 = arith.constant 0 : index
    %c128 = arith.constant 128 : index
    %19 = vector.load %arg22[%c0_18, %c128] : memref<128x384xf32, #tpu.memory_space<vmem>>, vector<128x64xf32>
    %20 = arith.truncf %19 : vector<128x64xf32> to vector<128x64xbf16>
    %c0_19 = arith.constant 0 : index
    %c256 = arith.constant 256 : index
    %21 = vector.load %arg22[%c0_19, %c256] : memref<128x384xf32, #tpu.memory_space<vmem>>, vector<128x64xf32>
    %22 = arith.truncf %21 : vector<128x64xf32> to vector<128x64xbf16>
    %cst_20 = arith.constant dense<0.000000e+00> : vector<128x128xf32>
    %23 = tpu.matmul %18, %20, %cst_20 {dimension_numbers = #tpu.dot_dimension_numbers<[1], [1], [0], [0], [0, 0, 1, 0], [], []>} : vector<128x64xbf16>, vector<128x64xbf16>, vector<128x128xf32> -> vector<128x128xf32>
    %24 = vector.broadcast %5 : vector<1x128xf32> to vector<128x128xf32>
    %25 = arith.addf %23, %24 : vector<128x128xf32>
    %cst_21 = arith.constant dense<0xFF800000> : vector<128xf32>
    %26 = vector.multi_reduction <maximumf>, %25, %cst_21 [1] : vector<128x128xf32> to vector<128xf32>
    %27 = vector.shape_cast %26 : vector<128xf32> to vector<128x1xf32>
    %28 = vector.broadcast %27 : vector<128x1xf32> to vector<128x128xf32>
    %29 = arith.subf %25, %28 : vector<128x128xf32>
    %30 = math.exp %29 : vector<128x128xf32>
    %cst_22 = arith.constant dense<0.000000e+00> : vector<128xf32>
    %31 = vector.multi_reduction <add>, %30, %cst_22 [1] : vector<128x128xf32> to vector<128xf32>
    %32 = vector.shape_cast %31 : vector<128xf32> to vector<128x1xf32>
    %33 = tpu.reciprocal %32 {approx = true} : vector<128x1xf32> -> vector<128x1xf32>
    %34 = vector.broadcast %33 : vector<128x1xf32> to vector<128x128xf32>
    %35 = arith.mulf %30, %34 : vector<128x128xf32>
    %36 = arith.truncf %35 : vector<128x128xf32> to vector<128x128xbf16>
    %cst_23 = arith.constant dense<0.000000e+00> : vector<128x64xf32>
    %37 = tpu.matmul %36, %22, %cst_23 {dimension_numbers = #tpu.dot_dimension_numbers<[1], [0], [0], [1], [0, 0, 1, 1], [], []>} : vector<128x128xbf16>, vector<128x64xbf16>, vector<128x64xf32> -> vector<128x64xf32>
    %38 = arith.truncf %37 : vector<128x64xf32> to vector<128x64xbf16>
    %c0_24 = arith.constant 0 : index
    %c0_25 = arith.constant 0 : index
    %c0_26 = arith.constant 0 : index
    %39 = vector.load %arg8[%c0_24, %c0_25, %c0_26] : memref<1x128x128xbf16, #tpu.memory_space<vmem>>, vector<1x64x128xbf16>
    %40 = vector.shape_cast %39 : vector<1x64x128xbf16> to vector<64x128xbf16>
    %cst_27 = arith.constant dense<0.000000e+00> : vector<128x128xf32>
    %41 = tpu.matmul %38, %40, %cst_27 {dimension_numbers = #tpu.dot_dimension_numbers<[1], [0], [0], [1], [0, 0, 1, 1], [], []>} : vector<128x64xbf16>, vector<64x128xbf16>, vector<128x128xf32> -> vector<128x128xf32>
    %42 = vector.broadcast %16 : vector<1x128xf32> to vector<128x128xf32>
    %43 = arith.addf %42, %41 : vector<128x128xf32>
    %c0_28 = arith.constant 0 : index
    %c64 = arith.constant 64 : index
    %44 = vector.load %arg22[%c0_28, %c64] : memref<128x384xf32, #tpu.memory_space<vmem>>, vector<128x64xf32>
    %45 = arith.truncf %44 : vector<128x64xf32> to vector<128x64xbf16>
    %c0_29 = arith.constant 0 : index
    %c192 = arith.constant 192 : index
    %46 = vector.load %arg22[%c0_29, %c192] : memref<128x384xf32, #tpu.memory_space<vmem>>, vector<128x64xf32>
    %47 = arith.truncf %46 : vector<128x64xf32> to vector<128x64xbf16>
    %c0_30 = arith.constant 0 : index
    %c320 = arith.constant 320 : index
    %48 = vector.load %arg22[%c0_30, %c320] : memref<128x384xf32, #tpu.memory_space<vmem>>, vector<128x64xf32>
    %49 = arith.truncf %48 : vector<128x64xf32> to vector<128x64xbf16>
    %cst_31 = arith.constant dense<0.000000e+00> : vector<128x128xf32>
    %50 = tpu.matmul %45, %47, %cst_31 {dimension_numbers = #tpu.dot_dimension_numbers<[1], [1], [0], [0], [0, 0, 1, 0], [], []>} : vector<128x64xbf16>, vector<128x64xbf16>, vector<128x128xf32> -> vector<128x128xf32>
    %51 = vector.broadcast %5 : vector<1x128xf32> to vector<128x128xf32>
    %52 = arith.addf %50, %51 : vector<128x128xf32>
    %cst_32 = arith.constant dense<0xFF800000> : vector<128xf32>
    %53 = vector.multi_reduction <maximumf>, %52, %cst_32 [1] : vector<128x128xf32> to vector<128xf32>
    %54 = vector.shape_cast %53 : vector<128xf32> to vector<128x1xf32>
    %55 = vector.broadcast %54 : vector<128x1xf32> to vector<128x128xf32>
    %56 = arith.subf %52, %55 : vector<128x128xf32>
    %57 = math.exp %56 : vector<128x128xf32>
    %cst_33 = arith.constant dense<0.000000e+00> : vector<128xf32>
    %58 = vector.multi_reduction <add>, %57, %cst_33 [1] : vector<128x128xf32> to vector<128xf32>
    %59 = vector.shape_cast %58 : vector<128xf32> to vector<128x1xf32>
    %60 = tpu.reciprocal %59 {approx = true} : vector<128x1xf32> -> vector<128x1xf32>
    %61 = vector.broadcast %60 : vector<128x1xf32> to vector<128x128xf32>
    %62 = arith.mulf %57, %61 : vector<128x128xf32>
    %63 = arith.truncf %62 : vector<128x128xf32> to vector<128x128xbf16>
    %cst_34 = arith.constant dense<0.000000e+00> : vector<128x64xf32>
    %64 = tpu.matmul %63, %49, %cst_34 {dimension_numbers = #tpu.dot_dimension_numbers<[1], [0], [0], [1], [0, 0, 1, 1], [], []>} : vector<128x128xbf16>, vector<128x64xbf16>, vector<128x64xf32> -> vector<128x64xf32>
    %65 = arith.truncf %64 : vector<128x64xf32> to vector<128x64xbf16>
    %c0_35 = arith.constant 0 : index
    %c64_36 = arith.constant 64 : index
    %c0_37 = arith.constant 0 : index
    %66 = vector.load %arg8[%c0_35, %c64_36, %c0_37] : memref<1x128x128xbf16, #tpu.memory_space<vmem>>, vector<1x64x128xbf16>
    %67 = vector.shape_cast %66 : vector<1x64x128xbf16> to vector<64x128xbf16>
    %cst_38 = arith.constant dense<0.000000e+00> : vector<128x128xf32>
    %68 = tpu.matmul %65, %67, %cst_38 {dimension_numbers = #tpu.dot_dimension_numbers<[1], [0], [0], [1], [0, 0, 1, 1], [], []>} : vector<128x64xbf16>, vector<64x128xbf16>, vector<128x128xf32> -> vector<128x128xf32>
    %69 = arith.addf %43, %68 : vector<128x128xf32>
    %70 = arith.addf %69, %3 : vector<128x128xf32>
    %c0_39 = arith.constant 0 : index
    %c0_40 = arith.constant 0 : index
    %c0_41 = arith.constant 0 : index
    %71 = vector.load %arg10[%c0_39, %c0_40, %c0_41] : memref<1x1x128xf32, #tpu.memory_space<vmem>>, vector<1x1x128xf32>
    %72 = vector.shape_cast %71 : vector<1x1x128xf32> to vector<1x128xf32>
    %c0_42 = arith.constant 0 : index
    %c0_43 = arith.constant 0 : index
    %c0_44 = arith.constant 0 : index
    %73 = vector.load %arg11[%c0_42, %c0_43, %c0_44] : memref<1x1x128xf32, #tpu.memory_space<vmem>>, vector<1x1x128xf32>
    %74 = vector.shape_cast %73 : vector<1x1x128xf32> to vector<1x128xf32>
    %cst_45 = arith.constant dense<0.000000e+00> : vector<128xf32>
    %75 = vector.multi_reduction <add>, %70, %cst_45 [1] : vector<128x128xf32> to vector<128xf32>
    %76 = vector.shape_cast %75 : vector<128xf32> to vector<128x1xf32>
    %cst_46 = arith.constant 1.280000e+02 : f32
    %77 = vector.broadcast %cst_46 : f32 to vector<128x1xf32>
    %78 = arith.divf %76, %77 : vector<128x1xf32>
    %79 = vector.broadcast %78 : vector<128x1xf32> to vector<128x128xf32>
    %80 = arith.subf %70, %79 : vector<128x128xf32>
    %81 = arith.mulf %80, %80 : vector<128x128xf32>
    %cst_47 = arith.constant dense<0.000000e+00> : vector<128xf32>
    %82 = vector.multi_reduction <add>, %81, %cst_47 [1] : vector<128x128xf32> to vector<128xf32>
    %83 = vector.shape_cast %82 : vector<128xf32> to vector<128x1xf32>
    %cst_48 = arith.constant 1.280000e+02 : f32
    %84 = vector.broadcast %cst_48 : f32 to vector<128x1xf32>
    %85 = arith.divf %83, %84 : vector<128x1xf32>
    %86 = vector.broadcast %78 : vector<128x1xf32> to vector<128x128xf32>
    %87 = arith.subf %70, %86 : vector<128x128xf32>
    %cst_49 = arith.constant 9.99999996E-13 : f32
    %88 = vector.broadcast %cst_49 : f32 to vector<128x1xf32>
    %89 = arith.addf %85, %88 : vector<128x1xf32>
    %90 = math.rsqrt %89 : vector<128x1xf32>
    %91 = vector.broadcast %90 : vector<128x1xf32> to vector<128x128xf32>
    %92 = arith.mulf %87, %91 : vector<128x128xf32>
    %93 = vector.broadcast %72 : vector<1x128xf32> to vector<128x128xf32>
    %94 = arith.mulf %92, %93 : vector<128x128xf32>
    %95 = vector.broadcast %74 : vector<1x128xf32> to vector<128x128xf32>
    %96 = arith.addf %94, %95 : vector<128x128xf32>
    %97 = arith.truncf %96 : vector<128x128xf32> to vector<128x128xbf16>
    %c0_50 = arith.constant 0 : index
    %c0_51 = arith.constant 0 : index
    %c0_52 = arith.constant 0 : index
    %98 = vector.load %arg12[%c0_50, %c0_51, %c0_52] : memref<1x128x256xbf16, #tpu.memory_space<vmem>>, vector<1x128x256xbf16>
    %99 = vector.shape_cast %98 : vector<1x128x256xbf16> to vector<128x256xbf16>
    %cst_53 = arith.constant dense<0.000000e+00> : vector<128x256xf32>
    %100 = tpu.matmul %97, %99, %cst_53 {dimension_numbers = #tpu.dot_dimension_numbers<[1], [0], [0], [1], [0, 0, 1, 1], [], []>} : vector<128x128xbf16>, vector<128x256xbf16>, vector<128x256xf32> -> vector<128x256xf32>
    %c0_54 = arith.constant 0 : index
    %c0_55 = arith.constant 0 : index
    %c0_56 = arith.constant 0 : index
    %101 = vector.load %arg13[%c0_54, %c0_55, %c0_56] : memref<1x1x256xf32, #tpu.memory_space<vmem>>, vector<1x1x256xf32>
    %102 = vector.shape_cast %101 : vector<1x1x256xf32> to vector<1x256xf32>
    %103 = vector.broadcast %102 : vector<1x256xf32> to vector<128x256xf32>
    %104 = arith.addf %100, %103 : vector<128x256xf32>
    %105 = arith.mulf %104, %104 : vector<128x256xf32>
    %106 = arith.mulf %104, %105 : vector<128x256xf32>
    %cst_57 = arith.constant 4.471500e-02 : f32
    %107 = vector.broadcast %cst_57 : f32 to vector<128x256xf32>
    %108 = arith.mulf %107, %106 : vector<128x256xf32>
    %109 = arith.addf %104, %108 : vector<128x256xf32>
    %cst_58 = arith.constant 0.797884583 : f32
    %110 = vector.broadcast %cst_58 : f32 to vector<128x256xf32>
    %111 = arith.mulf %110, %109 : vector<128x256xf32>
    %112 = math.tanh %111 : vector<128x256xf32>
    %cst_59 = arith.constant 1.000000e+00 : f32
    %113 = vector.broadcast %cst_59 : f32 to vector<128x256xf32>
    %114 = arith.addf %113, %112 : vector<128x256xf32>
    %cst_60 = arith.constant 5.000000e-01 : f32
    %115 = vector.broadcast %cst_60 : f32 to vector<128x256xf32>
    %116 = arith.mulf %115, %114 : vector<128x256xf32>
    %117 = arith.mulf %104, %116 : vector<128x256xf32>
    %118 = arith.truncf %117 : vector<128x256xf32> to vector<128x256xbf16>
    %c0_61 = arith.constant 0 : index
    %c0_62 = arith.constant 0 : index
    %c0_63 = arith.constant 0 : index
    %119 = vector.load %arg14[%c0_61, %c0_62, %c0_63] : memref<1x256x128xbf16, #tpu.memory_space<vmem>>, vector<1x256x128xbf16>
    %120 = vector.shape_cast %119 : vector<1x256x128xbf16> to vector<256x128xbf16>
    %cst_64 = arith.constant dense<0.000000e+00> : vector<128x128xf32>
    %121 = tpu.matmul %118, %120, %cst_64 {dimension_numbers = #tpu.dot_dimension_numbers<[1], [0], [0], [1], [0, 0, 1, 1], [], []>} : vector<128x256xbf16>, vector<256x128xbf16>, vector<128x128xf32> -> vector<128x128xf32>
    %c0_65 = arith.constant 0 : index
    %c0_66 = arith.constant 0 : index
    %c0_67 = arith.constant 0 : index
    %122 = vector.load %arg15[%c0_65, %c0_66, %c0_67] : memref<1x1x128xf32, #tpu.memory_space<vmem>>, vector<1x1x128xf32>
    %123 = vector.shape_cast %122 : vector<1x1x128xf32> to vector<1x128xf32>
    %124 = vector.broadcast %123 : vector<1x128xf32> to vector<128x128xf32>
    %125 = arith.addf %121, %124 : vector<128x128xf32>
    %126 = arith.addf %125, %96 : vector<128x128xf32>
    %c0_68 = arith.constant 0 : index
    %c0_69 = arith.constant 0 : index
    %c0_70 = arith.constant 0 : index
    %127 = vector.load %arg16[%c0_68, %c0_69, %c0_70] : memref<1x1x128xf32, #tpu.memory_space<vmem>>, vector<1x1x128xf32>
    %128 = vector.shape_cast %127 : vector<1x1x128xf32> to vector<1x128xf32>
    %c0_71 = arith.constant 0 : index
    %c0_72 = arith.constant 0 : index
    %c0_73 = arith.constant 0 : index
    %129 = vector.load %arg17[%c0_71, %c0_72, %c0_73] : memref<1x1x128xf32, #tpu.memory_space<vmem>>, vector<1x1x128xf32>
    %130 = vector.shape_cast %129 : vector<1x1x128xf32> to vector<1x128xf32>
    %cst_74 = arith.constant dense<0.000000e+00> : vector<128xf32>
    %131 = vector.multi_reduction <add>, %126, %cst_74 [1] : vector<128x128xf32> to vector<128xf32>
    %132 = vector.shape_cast %131 : vector<128xf32> to vector<128x1xf32>
    %cst_75 = arith.constant 1.280000e+02 : f32
    %133 = vector.broadcast %cst_75 : f32 to vector<128x1xf32>
    %134 = arith.divf %132, %133 : vector<128x1xf32>
    %135 = vector.broadcast %134 : vector<128x1xf32> to vector<128x128xf32>
    %136 = arith.subf %126, %135 : vector<128x128xf32>
    %137 = arith.mulf %136, %136 : vector<128x128xf32>
    %cst_76 = arith.constant dense<0.000000e+00> : vector<128xf32>
    %138 = vector.multi_reduction <add>, %137, %cst_76 [1] : vector<128x128xf32> to vector<128xf32>
    %139 = vector.shape_cast %138 : vector<128xf32> to vector<128x1xf32>
    %cst_77 = arith.constant 1.280000e+02 : f32
    %140 = vector.broadcast %cst_77 : f32 to vector<128x1xf32>
    %141 = arith.divf %139, %140 : vector<128x1xf32>
    %142 = vector.broadcast %134 : vector<128x1xf32> to vector<128x128xf32>
    %143 = arith.subf %126, %142 : vector<128x128xf32>
    %cst_78 = arith.constant 9.99999996E-13 : f32
    %144 = vector.broadcast %cst_78 : f32 to vector<128x1xf32>
    %145 = arith.addf %141, %144 : vector<128x1xf32>
    %146 = math.rsqrt %145 : vector<128x1xf32>
    %147 = vector.broadcast %146 : vector<128x1xf32> to vector<128x128xf32>
    %148 = arith.mulf %143, %147 : vector<128x128xf32>
    %149 = vector.broadcast %128 : vector<1x128xf32> to vector<128x128xf32>
    %150 = arith.mulf %148, %149 : vector<128x128xf32>
    %151 = vector.broadcast %130 : vector<1x128xf32> to vector<128x128xf32>
    %152 = arith.addf %150, %151 : vector<128x128xf32>
    %c0_79 = arith.constant 0 : index
    %c0_80 = arith.constant 0 : index
    %153 = vector.load %arg21[%c0_79, %c0_80] : memref<128x128xf32, #tpu.memory_space<vmem>>, vector<128x128xf32>
    tpu.vector_store %arg21[%c0_79, %c0_80], %152 {strides = array<i32>} : memref<128x128xf32, #tpu.memory_space<vmem>>, vector<128x128xf32>,
    %c1_i32 = arith.constant 1 : i32
    %154 = arith.cmpi eq, %arg1, %c1_i32 : i32
    %155 = arith.extui %154 : i1 to i32
    %c0_i32_81 = arith.constant 0 : i32
    %156 = arith.cmpi ne, %155, %c0_i32_81 : i32
    scf.if %156 {
      %cst_82 = arith.constant dense<0.000000e+00> : vector<128xf32>
      %157 = vector.multi_reduction <add>, %152, %cst_82 [0] : vector<128x128xf32> to vector<128xf32>
      %158 = vector.shape_cast %157 : vector<128xf32> to vector<1x128xf32>
      %cst_83 = arith.constant 1.280000e+02 : f32
      %159 = vector.broadcast %cst_83 : f32 to vector<1x128xf32>
      %160 = arith.divf %158, %159 : vector<1x128xf32>
      %cst_84 = arith.constant dense<0xFF800000> : vector<128xf32>
      %161 = vector.multi_reduction <maximumf>, %152, %cst_84 [0] : vector<128x128xf32> to vector<128xf32>
      %162 = vector.shape_cast %161 : vector<128xf32> to vector<1x128xf32>
      %c0_85 = arith.constant 0 : index
      %c0_86 = arith.constant 0 : index
      %163 = vector.load %arg18[%c0_85, %c0_86] : memref<256x2xf32, #tpu.memory_space<vmem>>, vector<128x2xf32>
      %cst_87 = arith.constant dense<0.000000e+00> : vector<1x2xf32>
      %164 = tpu.matmul %160, %163, %cst_87 {dimension_numbers = #tpu.dot_dimension_numbers<[1], [0], [0], [1], [0, 0, 1, 1], [], []>} : vector<1x128xf32>, vector<128x2xf32>, vector<1x2xf32> -> vector<1x2xf32>
      %c128_88 = arith.constant 128 : index
      %c0_89 = arith.constant 0 : index
      %165 = vector.load %arg18[%c128_88, %c0_89] : memref<256x2xf32, #tpu.memory_space<vmem>>, vector<128x2xf32>
      %cst_90 = arith.constant dense<0.000000e+00> : vector<1x2xf32>
      %166 = tpu.matmul %162, %165, %cst_90 {dimension_numbers = #tpu.dot_dimension_numbers<[1], [0], [0], [1], [0, 0, 1, 1], [], []>} : vector<1x128xf32>, vector<128x2xf32>, vector<1x2xf32> -> vector<1x2xf32>
      %167 = arith.addf %164, %166 : vector<1x2xf32>
      %c0_91 = arith.constant 0 : index
      %c0_92 = arith.constant 0 : index
      %168 = vector.load %arg19[%c0_91, %c0_92] : memref<1x2xf32, #tpu.memory_space<vmem>>, vector<1x2xf32>
      %169 = arith.addf %167, %168 : vector<1x2xf32>
      %c0_93 = arith.constant 0 : index
      %c0_94 = arith.constant 0 : index
      %c0_95 = arith.constant 0 : index
      %170 = vector.load %arg20[%c0_93, %c0_94, %c0_95] : memref<1x1x2xf32, #tpu.memory_space<vmem>>, vector<1x1x2xf32>
      %171 = vector.shape_cast %170 : vector<1x1x2xf32> to vector<1x2xf32>
      %172 = vector.shape_cast %169 : vector<1x2xf32> to vector<1x1x2xf32>
      tpu.vector_store %arg20[%c0_93, %c0_94, %c0_95], %172 {strides = array<i32>} : memref<1x1x2xf32, #tpu.memory_space<vmem>>, vector<1x1x2xf32>,
    } else {
    }
    return
  }
  func.func @transform_0(%arg0: i32, %arg1: i32) -> (i32, i32, i32) {
    %c0_i32 = arith.constant 0 : i32
    %c0_i32_0 = arith.constant 0 : i32
    %c0_i32_1 = arith.constant 0 : i32
    return %arg0, %c0_i32, %c0_i32_0 : i32, i32, i32
  }
  func.func @transform_1(%arg0: i32, %arg1: i32) -> (i32, i32, i32) {
    %c0_i32 = arith.constant 0 : i32
    %c0_i32_0 = arith.constant 0 : i32
    %c0_i32_1 = arith.constant 0 : i32
    return %arg0, %c0_i32, %c0_i32_0 : i32, i32, i32
  }
  func.func @transform_2(%arg0: i32, %arg1: i32) -> (i32, i32) {
    %c0_i32 = arith.constant 0 : i32
    %c0_i32_0 = arith.constant 0 : i32
    %c0_i32_1 = arith.constant 0 : i32
    return %c0_i32, %c0_i32_0 : i32, i32
  }
  func.func @transform_3(%arg0: i32, %arg1: i32) -> (i32, i32) {
    %c0_i32 = arith.constant 0 : i32
    %c0_i32_0 = arith.constant 0 : i32
    %c0_i32_1 = arith.constant 0 : i32
    return %c0_i32, %c0_i32_0 : i32, i32
  }
  func.func @transform_4(%arg0: i32, %arg1: i32) -> (i32, i32, i32) {
    %c0_i32 = arith.constant 0 : i32
    %c0_i32_0 = arith.constant 0 : i32
    %c0_i32_1 = arith.constant 0 : i32
    return %arg1, %c0_i32, %c0_i32_0 : i32, i32, i32
  }
  func.func @transform_5(%arg0: i32, %arg1: i32) -> (i32, i32, i32) {
    %c0_i32 = arith.constant 0 : i32
    %c0_i32_0 = arith.constant 0 : i32
    %c0_i32_1 = arith.constant 0 : i32
    return %arg1, %c0_i32, %c0_i32_0 : i32, i32, i32
  }
  func.func @transform_6(%arg0: i32, %arg1: i32) -> (i32, i32, i32) {
    %c0_i32 = arith.constant 0 : i32
    %c0_i32_0 = arith.constant 0 : i32
    %c0_i32_1 = arith.constant 0 : i32
    return %arg1, %c0_i32, %c0_i32_0 : i32, i32, i32
  }
  func.func @transform_7(%arg0: i32, %arg1: i32) -> (i32, i32, i32) {
    %c0_i32 = arith.constant 0 : i32
    %c0_i32_0 = arith.constant 0 : i32
    %c0_i32_1 = arith.constant 0 : i32
    return %arg1, %c0_i32, %c0_i32_0 : i32, i32, i32
  }
  func.func @transform_8(%arg0: i32, %arg1: i32) -> (i32, i32, i32) {
    %c0_i32 = arith.constant 0 : i32
    %c0_i32_0 = arith.constant 0 : i32
    %c0_i32_1 = arith.constant 0 : i32
    return %arg1, %c0_i32, %c0_i32_0 : i32, i32, i32
  }
  func.func @transform_9(%arg0: i32, %arg1: i32) -> (i32, i32, i32) {
    %c0_i32 = arith.constant 0 : i32
    %c0_i32_0 = arith.constant 0 : i32
    %c0_i32_1 = arith.constant 0 : i32
    return %arg1, %c0_i32, %c0_i32_0 : i32, i32, i32
  }
  func.func @transform_10(%arg0: i32, %arg1: i32) -> (i32, i32, i32) {
    %c0_i32 = arith.constant 0 : i32
    %c0_i32_0 = arith.constant 0 : i32
    %c0_i32_1 = arith.constant 0 : i32
    return %arg1, %c0_i32, %c0_i32_0 : i32, i32, i32
  }
  func.func @transform_11(%arg0: i32, %arg1: i32) -> (i32, i32, i32) {
    %c0_i32 = arith.constant 0 : i32
    %c0_i32_0 = arith.constant 0 : i32
    %c0_i32_1 = arith.constant 0 : i32
    return %arg1, %c0_i32, %c0_i32_0 : i32, i32, i32
  }
  func.func @transform_12(%arg0: i32, %arg1: i32) -> (i32, i32, i32) {
    %c0_i32 = arith.constant 0 : i32
    %c0_i32_0 = arith.constant 0 : i32
    %c0_i32_1 = arith.constant 0 : i32
    return %arg1, %c0_i32, %c0_i32_0 : i32, i32, i32
  }
  func.func @transform_13(%arg0: i32, %arg1: i32) -> (i32, i32, i32) {
    %c0_i32 = arith.constant 0 : i32
    %c0_i32_0 = arith.constant 0 : i32
    %c0_i32_1 = arith.constant 0 : i32
    return %arg1, %c0_i32, %c0_i32_0 : i32, i32, i32
  }
  func.func @transform_14(%arg0: i32, %arg1: i32) -> (i32, i32, i32) {
    %c0_i32 = arith.constant 0 : i32
    %c0_i32_0 = arith.constant 0 : i32
    %c0_i32_1 = arith.constant 0 : i32
    return %arg1, %c0_i32, %c0_i32_0 : i32, i32, i32
  }
  func.func @transform_15(%arg0: i32, %arg1: i32) -> (i32, i32, i32) {
    %c0_i32 = arith.constant 0 : i32
    %c0_i32_0 = arith.constant 0 : i32
    %c0_i32_1 = arith.constant 0 : i32
    return %arg1, %c0_i32, %c0_i32_0 : i32, i32, i32
  }
  func.func @transform_16(%arg0: i32, %arg1: i32) -> (i32, i32) {
    %c0_i32 = arith.constant 0 : i32
    %c0_i32_0 = arith.constant 0 : i32
    %c0_i32_1 = arith.constant 0 : i32
    return %c0_i32, %c0_i32_0 : i32, i32
  }
  func.func @transform_17(%arg0: i32, %arg1: i32) -> (i32, i32) {
    %c0_i32 = arith.constant 0 : i32
    %c0_i32_0 = arith.constant 0 : i32
    %c0_i32_1 = arith.constant 0 : i32
    return %c0_i32, %c0_i32_0 : i32, i32
  }
  func.func @transform_18(%arg0: i32, %arg1: i32) -> (i32, i32, i32) {
    %c0_i32 = arith.constant 0 : i32
    %c0_i32_0 = arith.constant 0 : i32
    %c0_i32_1 = arith.constant 0 : i32
    return %arg0, %c0_i32, %c0_i32_0 : i32, i32, i32
  }
}

</mosaic_0001>

<llo_original>
// kernel: bert_on_qa_forward.1
$region0: #{bert_on_qa_forward.1}
  #allocation0 [shape = 'u32[]', space=smem, size = 0x4, offset = 0x4, fixed_abs, tag = 'smem constant byte address 0x4 - core index']
  #allocation1 [shape = 'u32[72,128]{1,0:T(1,128)}', space=vmem, size = 0x9000, scoped, tag = 'internal scratch']
  #allocation2 [shape = 'f32[128,128]{1,0:T(8,128)}', space=vmem, size = 0x10000, scoped, tag = 'scratch operand']
  #allocation3 [shape = 'f32[128,384]{1,0:T(8,128)}', space=vmem, size = 0x30000, scoped, tag = 'scratch operand']
  %s0 = inlined_call_operand.vmem [shape: f32[2,128,128], index: 0, kind: input, shape index: {}]
  %s1 = inlined_call_operand.vmem [shape: f32[2,1,128], index: 1, kind: input, shape index: {}]
  %s2 = inlined_call_operand.vmem [shape: f32[1,128], index: 2, kind: input, shape index: {}]
  %s3 = inlined_call_operand.vmem [shape: f32[1,128], index: 3, kind: input, shape index: {}]
  %s4 = inlined_call_operand.vmem [shape: bf16[2,128,384], index: 4, kind: input, shape index: {}]
  %s5 = inlined_call_operand.vmem [shape: f32[2,1,384], index: 5, kind: input, shape index: {}]
  %s6 = inlined_call_operand.vmem [shape: bf16[2,128,128], index: 6, kind: input, shape index: {}]
  %s7 = inlined_call_operand.vmem [shape: f32[2,1,128], index: 7, kind: input, shape index: {}]
  %s8 = inlined_call_operand.vmem [shape: f32[2,1,128], index: 8, kind: input, shape index: {}]
  %s9 = inlined_call_operand.vmem [shape: f32[2,1,128], index: 9, kind: input, shape index: {}]
  %s10 = inlined_call_operand.vmem [shape: bf16[2,128,256], index: 10, kind: input, shape index: {}]
  %s11 = inlined_call_operand.vmem [shape: f32[2,1,256], index: 11, kind: input, shape index: {}]
  %s12 = inlined_call_operand.vmem [shape: bf16[2,256,128], index: 12, kind: input, shape index: {}]
  %s13 = inlined_call_operand.vmem [shape: f32[2,1,128], index: 13, kind: input, shape index: {}]
  %s14 = inlined_call_operand.vmem [shape: f32[2,1,128], index: 14, kind: input, shape index: {}]
  %s15 = inlined_call_operand.vmem [shape: f32[2,1,128], index: 15, kind: input, shape index: {}]
  %s16 = inlined_call_operand.vmem [shape: f32[256,2], index: 16, kind: input, shape index: {}]
  %s17 = inlined_call_operand.vmem [shape: f32[1,2], index: 17, kind: input, shape index: {}]
  %s18 = inlined_call_operand.hbm [shape: f32[2,1,2], index: 18, kind: output, shape index: {}]
  %s19 = sld [smem:[#allocation0]]
  $region113: #{bert_on_qa_forward.1} parent=0
    _
  %s21 = ssub.s32 1, %s19
  %s22 = scalar_select 0, %s21, %s19
  $region1: #{bert_on_qa_forward.1} parent=0
    #allocation4 [shape = 'u8[1024]{0}', space=vmem, size = 0x400, scoped, tag = 'output window, operand 0']
    #allocation5 [shape = 's32[2]{0}', space=sflag, size = 0x8, scoped, tag = 'scoped memory for bert_on_qa_forward.1']
    %23 = vsyncpa [#allocation5], 0
    %s24 = scalar_lea.sflag [#allocation5], 1
    %25 = vsyncpa %s24, 0
    loop: start=0, step=1, limit=6
    $region2: #{bert_on_qa_forward.1} parent=1 // loop_pre_header
      _
    $region3: #{bert_on_qa_forward.1} parent=1 // loop_header
      %s27 = sphi 0, %s31
      %p28 = scmp.ge.s32.totalorder %s27, 6
      %s34 = sphi 0, %s46
      %s35 = sphi 0, %s42
      %s36 = sphi 0, %s34
      %s37 = sphi 0, %s35
      %s38 = sphi 0, %s36
      %s39 = sphi 0, %s37
      %s49 = sphi 0, %s51
      %s52 = sphi 0, %s49
      %s53 = sphi 0, %s52
      %s69 = sphi 0, %s53
      %s75 = sphi 0, %s77
      %s78 = sphi 0, %s75
      %s79 = sphi 0, %s78
      %s95 = sphi 0, %s79
      %s99 = sphi 0, %s99
      %s101 = sphi 0, %s99
      %s102 = sphi 0, %s101
      %s116 = sphi 0, %s102
      %s120 = sphi 0, %s120
      %s122 = sphi 0, %s120
      %s123 = sphi 0, %s122
      %s137 = sphi 0, %s123
      %s143 = sphi 0, %s145
      %s146 = sphi 0, %s143
      %s147 = sphi 0, %s146
      %s163 = sphi 0, %s147
      %s169 = sphi 0, %s171
      %s172 = sphi 0, %s169
      %s173 = sphi 0, %s172
      %s189 = sphi 0, %s173
      %s195 = sphi 0, %s197
      %s198 = sphi 0, %s195
      %s199 = sphi 0, %s198
      %s215 = sphi 0, %s199
      %s221 = sphi 0, %s223
      %s224 = sphi 0, %s221
      %s225 = sphi 0, %s224
      %s241 = sphi 0, %s225
      %s247 = sphi 0, %s249
      %s250 = sphi 0, %s247
      %s251 = sphi 0, %s250
      %s267 = sphi 0, %s251
      %s273 = sphi 0, %s275
      %s276 = sphi 0, %s273
      %s277 = sphi 0, %s276
      %s293 = sphi 0, %s277
      %s299 = sphi 0, %s301
      %s302 = sphi 0, %s299
      %s303 = sphi 0, %s302
      %s319 = sphi 0, %s303
      %s325 = sphi 0, %s327
      %s328 = sphi 0, %s325
      %s329 = sphi 0, %s328
      %s345 = sphi 0, %s329
      %s351 = sphi 0, %s353
      %s354 = sphi 0, %s351
      %s355 = sphi 0, %s354
      %s371 = sphi 0, %s355
      %s377 = sphi 0, %s379
      %s380 = sphi 0, %s377
      %s381 = sphi 0, %s380
      %s397 = sphi 0, %s381
      %s403 = sphi 0, %s405
      %s406 = sphi 0, %s403
      %s407 = sphi 0, %s406
      %s423 = sphi 0, %s407
      %s429 = sphi 0, %s431
      %s432 = sphi 0, %s429
      %s433 = sphi 0, %s432
      %s449 = sphi 0, %s433
      %s453 = sphi 0, %s453
      %s455 = sphi 0, %s453
      %s456 = sphi 0, %s455
      %s470 = sphi 0, %s456
      %s474 = sphi 0, %s474
      %s476 = sphi 0, %s474
      %s477 = sphi 0, %s476
      %s491 = sphi 0, %s477
      %s497 = sphi 0, %s499
      %s500 = sphi 0, %s497
      %s501 = sphi 0, %s500
      %s517 = sphi 0, %s501
    $region4: #{bert_on_qa_forward.1} parent=1 // loop_header_branch
      %30 = sbr.rel (%p28) target = $region8
    $region5: #{bert_on_qa_forward.1} parent=1 // loop_body
      %s32 = ssub.s32 %s27, 1
      %s33 = ssub.s32 %s27, 2
      %s40 = sadd.s32 1, %s35
      %p41 = scmp.ge.s32.totalorder %s40, 2
      %s42 = scalar_select %p41, 0, %s40
      %s43 = sadd.s32 1, %s34
      %s44 = scalar_select %p41, %s43, %s34
      %p45 = scmp.ge.s32.totalorder %s44, 2
      %s46 = scalar_select %p45, 0, %s44
      %s47 = ssub.s32 %s34, %s46
      %p48 = scmp.eq.s32.totalorder %s47, 0
      %s50 = sadd.s32 %s49, 1
      %s51 = scalar_select %p48, %s49, %s50
      %p54 = pneg %p48
      %p55 = scmp.eq.s32.totalorder %s27, 3
      %p56 = por %p54, %p55
      %p57 = scmp.ne.s32.totalorder %s49, %s52
      %p58 = scmp.eq.s32.totalorder %s27, 0
      %p59 = por %p57, %p58
      %p60 = scmp.ne.s32.totalorder %s49, %s52
      %p61 = scmp.eq.s32.totalorder %s32, 3
      %p62 = por %p60, %p61
      %p63 = scmp.ne.s32.totalorder %s52, %s53
      %p64 = scmp.eq.s32.totalorder %s32, 0
      %p65 = por %p63, %p64
      %p66 = scmp.ne.s32.totalorder %s52, %s53
      %p67 = scmp.eq.s32.totalorder %s33, 3
      %p68 = por %p66, %p67
      %p70 = scmp.ne.s32.totalorder %s53, %s69
      %p71 = scmp.eq.s32.totalorder %s33, 0
      %p72 = por %p70, %p71
      %s73 = ssub.s32 %s34, %s46
      %p74 = scmp.eq.s32.totalorder %s73, 0
      %s76 = sadd.s32 %s75, 1
      %s77 = scalar_select %p74, %s75, %s76
      %p80 = pneg %p74
      %p81 = scmp.eq.s32.totalorder %s27, 3
      %p82 = por %p80, %p81
      %p83 = scmp.ne.s32.totalorder %s75, %s78
      %p84 = scmp.eq.s32.totalorder %s27, 0
      %p85 = por %p83, %p84
      %p86 = scmp.ne.s32.totalorder %s75, %s78
      %p87 = scmp.eq.s32.totalorder %s32, 3
      %p88 = por %p86, %p87
      %p89 = scmp.ne.s32.totalorder %s78, %s79
      %p90 = scmp.eq.s32.totalorder %s32, 0
      %p91 = por %p89, %p90
      %p92 = scmp.ne.s32.totalorder %s78, %s79
      %p93 = scmp.eq.s32.totalorder %s33, 3
      %p94 = por %p92, %p93
      %p96 = scmp.ne.s32.totalorder %s79, %s95
      %p97 = scmp.eq.s32.totalorder %s33, 0
      %p98 = por %p96, %p97
      %s100 = sadd.s32 %s99, 1
      %p103 = scmp.eq.s32.totalorder %s27, 3
      %p104 = scmp.ne.s32.totalorder %s99, %s101
      %p105 = scmp.eq.s32.totalorder %s27, 0
      %p106 = por %p104, %p105
      %p107 = scmp.ne.s32.totalorder %s99, %s101
      %p108 = scmp.eq.s32.totalorder %s32, 3
      %p109 = por %p107, %p108
      %p110 = scmp.ne.s32.totalorder %s101, %s102
      %p111 = scmp.eq.s32.totalorder %s32, 0
      %p112 = por %p110, %p111
      %p113 = scmp.ne.s32.totalorder %s101, %s102
      %p114 = scmp.eq.s32.totalorder %s33, 3
      %p115 = por %p113, %p114
      %p117 = scmp.ne.s32.totalorder %s102, %s116
      %p118 = scmp.eq.s32.totalorder %s33, 0
      %p119 = por %p117, %p118
      %s121 = sadd.s32 %s120, 1
      %p124 = scmp.eq.s32.totalorder %s27, 3
      %p125 = scmp.ne.s32.totalorder %s120, %s122
      %p126 = scmp.eq.s32.totalorder %s27, 0
      %p127 = por %p125, %p126
      %p128 = scmp.ne.s32.totalorder %s120, %s122
      %p129 = scmp.eq.s32.totalorder %s32, 3
      %p130 = por %p128, %p129
      %p131 = scmp.ne.s32.totalorder %s122, %s123
      %p132 = scmp.eq.s32.totalorder %s32, 0
      %p133 = por %p131, %p132
      %p134 = scmp.ne.s32.totalorder %s122, %s123
      %p135 = scmp.eq.s32.totalorder %s33, 3
      %p136 = por %p134, %p135
      %p138 = scmp.ne.s32.totalorder %s123, %s137
      %p139 = scmp.eq.s32.totalorder %s33, 0
      %p140 = por %p138, %p139
      %s141 = ssub.s32 %s35, %s42
      %p142 = scmp.eq.s32.totalorder %s141, 0
      %s144 = sadd.s32 %s143, 1
      %s145 = scalar_select %p142, %s143, %s144
      %p148 = pneg %p142
      %p149 = scmp.eq.s32.totalorder %s27, 3
      %p150 = por %p148, %p149
      %p151 = scmp.ne.s32.totalorder %s143, %s146
      %p152 = scmp.eq.s32.totalorder %s27, 0
      %p153 = por %p151, %p152
      %p154 = scmp.ne.s32.totalorder %s143, %s146
      %p155 = scmp.eq.s32.totalorder %s32, 3
      %p156 = por %p154, %p155
      %p157 = scmp.ne.s32.totalorder %s146, %s147
      %p158 = scmp.eq.s32.totalorder %s32, 0
      %p159 = por %p157, %p158
      %p160 = scmp.ne.s32.totalorder %s146, %s147
      %p161 = scmp.eq.s32.totalorder %s33, 3
      %p162 = por %p160, %p161
      %p164 = scmp.ne.s32.totalorder %s147, %s163
      %p165 = scmp.eq.s32.totalorder %s33, 0
      %p166 = por %p164, %p165
      %s167 = ssub.s32 %s35, %s42
      %p168 = scmp.eq.s32.totalorder %s167, 0
      %s170 = sadd.s32 %s169, 1
      %s171 = scalar_select %p168, %s169, %s170
      %p174 = pneg %p168
      %p175 = scmp.eq.s32.totalorder %s27, 3
      %p176 = por %p174, %p175
      %p177 = scmp.ne.s32.totalorder %s169, %s172
      %p178 = scmp.eq.s32.totalorder %s27, 0
      %p179 = por %p177, %p178
      %p180 = scmp.ne.s32.totalorder %s169, %s172
      %p181 = scmp.eq.s32.totalorder %s32, 3
      %p182 = por %p180, %p181
      %p183 = scmp.ne.s32.totalorder %s172, %s173
      %p184 = scmp.eq.s32.totalorder %s32, 0
      %p185 = por %p183, %p184
      %p186 = scmp.ne.s32.totalorder %s172, %s173
      %p187 = scmp.eq.s32.totalorder %s33, 3
      %p188 = por %p186, %p187
      %p190 = scmp.ne.s32.totalorder %s173, %s189
      %p191 = scmp.eq.s32.totalorder %s33, 0
      %p192 = por %p190, %p191
      %s193 = ssub.s32 %s35, %s42
      %p194 = scmp.eq.s32.totalorder %s193, 0
      %s196 = sadd.s32 %s195, 1
      %s197 = scalar_select %p194, %s195, %s196
      %p200 = pneg %p194
      %p201 = scmp.eq.s32.totalorder %s27, 3
      %p202 = por %p200, %p201
      %p203 = scmp.ne.s32.totalorder %s195, %s198
      %p204 = scmp.eq.s32.totalorder %s27, 0
      %p205 = por %p203, %p204
      %p206 = scmp.ne.s32.totalorder %s195, %s198
      %p207 = scmp.eq.s32.totalorder %s32, 3
      %p208 = por %p206, %p207
      %p209 = scmp.ne.s32.totalorder %s198, %s199
      %p210 = scmp.eq.s32.totalorder %s32, 0
      %p211 = por %p209, %p210
      %p212 = scmp.ne.s32.totalorder %s198, %s199
      %p213 = scmp.eq.s32.totalorder %s33, 3
      %p214 = por %p212, %p213
      %p216 = scmp.ne.s32.totalorder %s199, %s215
      %p217 = scmp.eq.s32.totalorder %s33, 0
      %p218 = por %p216, %p217
      %s219 = ssub.s32 %s35, %s42
      %p220 = scmp.eq.s32.totalorder %s219, 0
      %s222 = sadd.s32 %s221, 1
      %s223 = scalar_select %p220, %s221, %s222
      %p226 = pneg %p220
      %p227 = scmp.eq.s32.totalorder %s27, 3
      %p228 = por %p226, %p227
      %p229 = scmp.ne.s32.totalorder %s221, %s224
      %p230 = scmp.eq.s32.totalorder %s27, 0
      %p231 = por %p229, %p230
      %p232 = scmp.ne.s32.totalorder %s221, %s224
      %p233 = scmp.eq.s32.totalorder %s32, 3
      %p234 = por %p232, %p233
      %p235 = scmp.ne.s32.totalorder %s224, %s225
      %p236 = scmp.eq.s32.totalorder %s32, 0
      %p237 = por %p235, %p236
      %p238 = scmp.ne.s32.totalorder %s224, %s225
      %p239 = scmp.eq.s32.totalorder %s33, 3
      %p240 = por %p238, %p239
      %p242 = scmp.ne.s32.totalorder %s225, %s241
      %p243 = scmp.eq.s32.totalorder %s33, 0
      %p244 = por %p242, %p243
      %s245 = ssub.s32 %s35, %s42
      %p246 = scmp.eq.s32.totalorder %s245, 0
      %s248 = sadd.s32 %s247, 1
      %s249 = scalar_select %p246, %s247, %s248
      %p252 = pneg %p246
      %p253 = scmp.eq.s32.totalorder %s27, 3
      %p254 = por %p252, %p253
      %p255 = scmp.ne.s32.totalorder %s247, %s250
      %p256 = scmp.eq.s32.totalorder %s27, 0
      %p257 = por %p255, %p256
      %p258 = scmp.ne.s32.totalorder %s247, %s250
      %p259 = scmp.eq.s32.totalorder %s32, 3
      %p260 = por %p258, %p259
      %p261 = scmp.ne.s32.totalorder %s250, %s251
      %p262 = scmp.eq.s32.totalorder %s32, 0
      %p263 = por %p261, %p262
      %p264 = scmp.ne.s32.totalorder %s250, %s251
      %p265 = scmp.eq.s32.totalorder %s33, 3
      %p266 = por %p264, %p265
      %p268 = scmp.ne.s32.totalorder %s251, %s267
      %p269 = scmp.eq.s32.totalorder %s33, 0
      %p270 = por %p268, %p269
      %s271 = ssub.s32 %s35, %s42
      %p272 = scmp.eq.s32.totalorder %s271, 0
      %s274 = sadd.s32 %s273, 1
      %s275 = scalar_select %p272, %s273, %s274
      %p278 = pneg %p272
      %p279 = scmp.eq.s32.totalorder %s27, 3
      %p280 = por %p278, %p279
      %p281 = scmp.ne.s32.totalorder %s273, %s276
      %p282 = scmp.eq.s32.totalorder %s27, 0
      %p283 = por %p281, %p282
      %p284 = scmp.ne.s32.totalorder %s273, %s276
      %p285 = scmp.eq.s32.totalorder %s32, 3
      %p286 = por %p284, %p285
      %p287 = scmp.ne.s32.totalorder %s276, %s277
      %p288 = scmp.eq.s32.totalorder %s32, 0
      %p289 = por %p287, %p288
      %p290 = scmp.ne.s32.totalorder %s276, %s277
      %p291 = scmp.eq.s32.totalorder %s33, 3
      %p292 = por %p290, %p291
      %p294 = scmp.ne.s32.totalorder %s277, %s293
      %p295 = scmp.eq.s32.totalorder %s33, 0
      %p296 = por %p294, %p295
      %s297 = ssub.s32 %s35, %s42
      %p298 = scmp.eq.s32.totalorder %s297, 0
      %s300 = sadd.s32 %s299, 1
      %s301 = scalar_select %p298, %s299, %s300
      %p304 = pneg %p298
      %p305 = scmp.eq.s32.totalorder %s27, 3
      %p306 = por %p304, %p305
      %p307 = scmp.ne.s32.totalorder %s299, %s302
      %p308 = scmp.eq.s32.totalorder %s27, 0
      %p309 = por %p307, %p308
      %p310 = scmp.ne.s32.totalorder %s299, %s302
      %p311 = scmp.eq.s32.totalorder %s32, 3
      %p312 = por %p310, %p311
      %p313 = scmp.ne.s32.totalorder %s302, %s303
      %p314 = scmp.eq.s32.totalorder %s32, 0
      %p315 = por %p313, %p314
      %p316 = scmp.ne.s32.totalorder %s302, %s303
      %p317 = scmp.eq.s32.totalorder %s33, 3
      %p318 = por %p316, %p317
      %p320 = scmp.ne.s32.totalorder %s303, %s319
      %p321 = scmp.eq.s32.totalorder %s33, 0
      %p322 = por %p320, %p321
      %s323 = ssub.s32 %s35, %s42
      %p324 = scmp.eq.s32.totalorder %s323, 0
      %s326 = sadd.s32 %s325, 1
      %s327 = scalar_select %p324, %s325, %s326
      %p330 = pneg %p324
      %p331 = scmp.eq.s32.totalorder %s27, 3
      %p332 = por %p330, %p331
      %p333 = scmp.ne.s32.totalorder %s325, %s328
      %p334 = scmp.eq.s32.totalorder %s27, 0
      %p335 = por %p333, %p334
      %p336 = scmp.ne.s32.totalorder %s325, %s328
      %p337 = scmp.eq.s32.totalorder %s32, 3
      %p338 = por %p336, %p337
      %p339 = scmp.ne.s32.totalorder %s328, %s329
      %p340 = scmp.eq.s32.totalorder %s32, 0
      %p341 = por %p339, %p340
      %p342 = scmp.ne.s32.totalorder %s328, %s329
      %p343 = scmp.eq.s32.totalorder %s33, 3
      %p344 = por %p342, %p343
      %p346 = scmp.ne.s32.totalorder %s329, %s345
      %p347 = scmp.eq.s32.totalorder %s33, 0
      %p348 = por %p346, %p347
      %s349 = ssub.s32 %s35, %s42
      %p350 = scmp.eq.s32.totalorder %s349, 0
      %s352 = sadd.s32 %s351, 1
      %s353 = scalar_select %p350, %s351, %s352
      %p356 = pneg %p350
      %p357 = scmp.eq.s32.totalorder %s27, 3
      %p358 = por %p356, %p357
      %p359 = scmp.ne.s32.totalorder %s351, %s354
      %p360 = scmp.eq.s32.totalorder %s27, 0
      %p361 = por %p359, %p360
      %p362 = scmp.ne.s32.totalorder %s351, %s354
      %p363 = scmp.eq.s32.totalorder %s32, 3
      %p364 = por %p362, %p363
      %p365 = scmp.ne.s32.totalorder %s354, %s355
      %p366 = scmp.eq.s32.totalorder %s32, 0
      %p367 = por %p365, %p366
      %p368 = scmp.ne.s32.totalorder %s354, %s355
      %p369 = scmp.eq.s32.totalorder %s33, 3
      %p370 = por %p368, %p369
      %p372 = scmp.ne.s32.totalorder %s355, %s371
      %p373 = scmp.eq.s32.totalorder %s33, 0
      %p374 = por %p372, %p373
      %s375 = ssub.s32 %s35, %s42
      %p376 = scmp.eq.s32.totalorder %s375, 0
      %s378 = sadd.s32 %s377, 1
      %s379 = scalar_select %p376, %s377, %s378
      %p382 = pneg %p376
      %p383 = scmp.eq.s32.totalorder %s27, 3
      %p384 = por %p382, %p383
      %p385 = scmp.ne.s32.totalorder %s377, %s380
      %p386 = scmp.eq.s32.totalorder %s27, 0
      %p387 = por %p385, %p386
      %p388 = scmp.ne.s32.totalorder %s377, %s380
      %p389 = scmp.eq.s32.totalorder %s32, 3
      %p390 = por %p388, %p389
      %p391 = scmp.ne.s32.totalorder %s380, %s381
      %p392 = scmp.eq.s32.totalorder %s32, 0
      %p393 = por %p391, %p392
      %p394 = scmp.ne.s32.totalorder %s380, %s381
      %p395 = scmp.eq.s32.totalorder %s33, 3
      %p396 = por %p394, %p395
      %p398 = scmp.ne.s32.totalorder %s381, %s397
      %p399 = scmp.eq.s32.totalorder %s33, 0
      %p400 = por %p398, %p399
      %s401 = ssub.s32 %s35, %s42
      %p402 = scmp.eq.s32.totalorder %s401, 0
      %s404 = sadd.s32 %s403, 1
      %s405 = scalar_select %p402, %s403, %s404
      %p408 = pneg %p402
      %p409 = scmp.eq.s32.totalorder %s27, 3
      %p410 = por %p408, %p409
      %p411 = scmp.ne.s32.totalorder %s403, %s406
      %p412 = scmp.eq.s32.totalorder %s27, 0
      %p413 = por %p411, %p412
      %p414 = scmp.ne.s32.totalorder %s403, %s406
      %p415 = scmp.eq.s32.totalorder %s32, 3
      %p416 = por %p414, %p415
      %p417 = scmp.ne.s32.totalorder %s406, %s407
      %p418 = scmp.eq.s32.totalorder %s32, 0
      %p419 = por %p417, %p418
      %p420 = scmp.ne.s32.totalorder %s406, %s407
      %p421 = scmp.eq.s32.totalorder %s33, 3
      %p422 = por %p420, %p421
      %p424 = scmp.ne.s32.totalorder %s407, %s423
      %p425 = scmp.eq.s32.totalorder %s33, 0
      %p426 = por %p424, %p425
      %s427 = ssub.s32 %s35, %s42
      %p428 = scmp.eq.s32.totalorder %s427, 0
      %s430 = sadd.s32 %s429, 1
      %s431 = scalar_select %p428, %s429, %s430
      %p434 = pneg %p428
      %p435 = scmp.eq.s32.totalorder %s27, 3
      %p436 = por %p434, %p435
      %p437 = scmp.ne.s32.totalorder %s429, %s432
      %p438 = scmp.eq.s32.totalorder %s27, 0
      %p439 = por %p437, %p438
      %p440 = scmp.ne.s32.totalorder %s429, %s432
      %p441 = scmp.eq.s32.totalorder %s32, 3
      %p442 = por %p440, %p441
      %p443 = scmp.ne.s32.totalorder %s432, %s433
      %p444 = scmp.eq.s32.totalorder %s32, 0
      %p445 = por %p443, %p444
      %p446 = scmp.ne.s32.totalorder %s432, %s433
      %p447 = scmp.eq.s32.totalorder %s33, 3
      %p448 = por %p446, %p447
      %p450 = scmp.ne.s32.totalorder %s433, %s449
      %p451 = scmp.eq.s32.totalorder %s33, 0
      %p452 = por %p450, %p451
      %s454 = sadd.s32 %s453, 1
      %p457 = scmp.eq.s32.totalorder %s27, 3
      %p458 = scmp.ne.s32.totalorder %s453, %s455
      %p459 = scmp.eq.s32.totalorder %s27, 0
      %p460 = por %p458, %p459
      %p461 = scmp.ne.s32.totalorder %s453, %s455
      %p462 = scmp.eq.s32.totalorder %s32, 3
      %p463 = por %p461, %p462
      %p464 = scmp.ne.s32.totalorder %s455, %s456
      %p465 = scmp.eq.s32.totalorder %s32, 0
      %p466 = por %p464, %p465
      %p467 = scmp.ne.s32.totalorder %s455, %s456
      %p468 = scmp.eq.s32.totalorder %s33, 3
      %p469 = por %p467, %p468
      %p471 = scmp.ne.s32.totalorder %s456, %s470
      %p472 = scmp.eq.s32.totalorder %s33, 0
      %p473 = por %p471, %p472
      %s475 = sadd.s32 %s474, 1
      %p478 = scmp.eq.s32.totalorder %s27, 3
      %p479 = scmp.ne.s32.totalorder %s474, %s476
      %p480 = scmp.eq.s32.totalorder %s27, 0
      %p481 = por %p479, %p480
      %p482 = scmp.ne.s32.totalorder %s474, %s476
      %p483 = scmp.eq.s32.totalorder %s32, 3
      %p484 = por %p482, %p483
      %p485 = scmp.ne.s32.totalorder %s476, %s477
      %p486 = scmp.eq.s32.totalorder %s32, 0
      %p487 = por %p485, %p486
      %p488 = scmp.ne.s32.totalorder %s476, %s477
      %p489 = scmp.eq.s32.totalorder %s33, 3
      %p490 = por %p488, %p489
      %p492 = scmp.ne.s32.totalorder %s477, %s491
      %p493 = scmp.eq.s32.totalorder %s33, 0
      %p494 = por %p492, %p493
      %s495 = ssub.s32 %s34, %s46
      %p496 = scmp.eq.s32.totalorder %s495, 0
      %s498 = sadd.s32 %s497, 1
      %s499 = scalar_select %p496, %s497, %s498
      %p502 = pneg %p496
      %p503 = scmp.eq.s32.totalorder %s27, 3
      %p504 = por %p502, %p503
      %p505 = scmp.ne.s32.totalorder %s497, %s500
      %p506 = scmp.eq.s32.totalorder %s27, 0
      %p507 = por %p505, %p506
      %p508 = scmp.ne.s32.totalorder %s497, %s500
      %p509 = scmp.eq.s32.totalorder %s32, 3
      %p510 = por %p508, %p509
      %p511 = scmp.ne.s32.totalorder %s500, %s501
      %p512 = scmp.eq.s32.totalorder %s32, 0
      %p513 = por %p511, %p512
      %p514 = scmp.ne.s32.totalorder %s500, %s501
      %p515 = scmp.eq.s32.totalorder %s33, 3
      %p516 = por %p514, %p515
      %p518 = scmp.ne.s32.totalorder %s501, %s517
      %p519 = scmp.eq.s32.totalorder %s33, 0
      %p520 = por %p518, %p519
      %p521 = scmp.le.s32.totalorder 1, %s27
      %p522 = scmp.lt.s32.totalorder %s27, 5
      %p523 = pnand %p521, %p522
      %p524 = pneg %p523
      // Predicated region
      $region9: #{bert_on_qa_forward.1} parent=5 // pred_check
        _
      $region10: #{bert_on_qa_forward.1} parent=5 // pred_check_branch
        %526 = sbr.rel (%p523) target = $region12
      $region11: #{bert_on_qa_forward.1} parent=5 // pred_region
        %s527 = ssub.s32 %s27, 1
        // Predicated region
        $region13: #{bert_on_qa_forward.1} parent=11 // pred_check
          %p528 = pneg %p112
        $region14: #{bert_on_qa_forward.1} parent=11 // pred_check_branch
          %530 = sbr.rel (%p528) target = $region16
        $region15: #{bert_on_qa_forward.1} parent=11 // pred_region
          _
        $region16: #{bert_on_qa_forward.1} parent=11 // pred_fallthru
          _
        // Predicated region
        $region17: #{bert_on_qa_forward.1} parent=11 // pred_check
          %p531 = pneg %p133
        $region18: #{bert_on_qa_forward.1} parent=11 // pred_check_branch
          %533 = sbr.rel (%p531) target = $region20
        $region19: #{bert_on_qa_forward.1} parent=11 // pred_region
          _
        $region20: #{bert_on_qa_forward.1} parent=11 // pred_fallthru
          _
        // Predicated region
        $region21: #{bert_on_qa_forward.1} parent=11 // pred_check
          %p534 = pneg %p466
        $region22: #{bert_on_qa_forward.1} parent=11 // pred_check_branch
          %536 = sbr.rel (%p534) target = $region24
        $region23: #{bert_on_qa_forward.1} parent=11 // pred_region
          _
        $region24: #{bert_on_qa_forward.1} parent=11 // pred_fallthru
          _
        // Predicated region
        $region25: #{bert_on_qa_forward.1} parent=11 // pred_check
          %p537 = pneg %p487
        $region26: #{bert_on_qa_forward.1} parent=11 // pred_check_branch
          %539 = sbr.rel (%p537) target = $region28
        $region27: #{bert_on_qa_forward.1} parent=11 // pred_region
          _
        $region28: #{bert_on_qa_forward.1} parent=11 // pred_fallthru
          _
      $region12: #{bert_on_qa_forward.1} parent=5 // pred_fallthru
        _
      %p540 = scmp.lt.s32.totalorder %s27, 4
      // Predicated region
      $region29: #{bert_on_qa_forward.1} parent=5 // pred_check
        %p541 = pneg %p540
      $region30: #{bert_on_qa_forward.1} parent=5 // pred_check_branch
        %543 = sbr.rel (%p541) target = $region32
      $region31: #{bert_on_qa_forward.1} parent=5 // pred_region
        // Predicated region
        $region33: #{bert_on_qa_forward.1} parent=31 // pred_check
          %p544 = pneg %p59
        $region34: #{bert_on_qa_forward.1} parent=31 // pred_check_branch
          %546 = sbr.rel (%p544) target = $region36
        $region35: #{bert_on_qa_forward.1} parent=31 // pred_region
          %p547 = scmp.lt.s32.totalorder %s34, 1
          %s548 = scalar_select %p547, %s34, 1
          %s549 = smul.addr %s548, 16
          %s550 = smul.addr %s549, 8
          %s551 = scalar_lea.vmem %s0, %s550
        $region36: #{bert_on_qa_forward.1} parent=31 // pred_fallthru
          _
        // Predicated region
        $region37: #{bert_on_qa_forward.1} parent=31 // pred_check
          %p552 = pneg %p85
        $region38: #{bert_on_qa_forward.1} parent=31 // pred_check_branch
          %554 = sbr.rel (%p552) target = $region40
        $region39: #{bert_on_qa_forward.1} parent=31 // pred_region
          %p555 = scmp.lt.s32.totalorder %s34, 1
          %s556 = scalar_select %p555, %s34, 1
          %s557 = scalar_lea.vmem %s1, %s556
        $region40: #{bert_on_qa_forward.1} parent=31 // pred_fallthru
          _
        // Predicated region
        $region41: #{bert_on_qa_forward.1} parent=31 // pred_check
          %p558 = pneg %p153
        $region42: #{bert_on_qa_forward.1} parent=31 // pred_check_branch
          %560 = sbr.rel (%p558) target = $region44
        $region43: #{bert_on_qa_forward.1} parent=31 // pred_region
          %p561 = scmp.lt.s32.totalorder %s35, 1
          %s562 = scalar_select %p561, %s35, 1
          %s563 = smul.addr %s562, 48
          %s564 = smul.addr %s563, 4
          %s565 = scalar_lea.vmem %s4, %s564
        $region44: #{bert_on_qa_forward.1} parent=31 // pred_fallthru
          _
        // Predicated region
        $region45: #{bert_on_qa_forward.1} parent=31 // pred_check
          %p566 = pneg %p179
        $region46: #{bert_on_qa_forward.1} parent=31 // pred_check_branch
          %568 = sbr.rel (%p566) target = $region48
        $region47: #{bert_on_qa_forward.1} parent=31 // pred_region
          %p569 = scmp.lt.s32.totalorder %s35, 1
          %s570 = scalar_select %p569, %s35, 1
          %s571 = smul.addr %s570, 3
          %s572 = scalar_lea.vmem %s5, %s571
        $region48: #{bert_on_qa_forward.1} parent=31 // pred_fallthru
          _
        // Predicated region
        $region49: #{bert_on_qa_forward.1} parent=31 // pred_check
          %p573 = pneg %p205
        $region50: #{bert_on_qa_forward.1} parent=31 // pred_check_branch
          %575 = sbr.rel (%p573) target = $region52
        $region51: #{bert_on_qa_forward.1} parent=31 // pred_region
          %p576 = scmp.lt.s32.totalorder %s35, 1
          %s577 = scalar_select %p576, %s35, 1
          %s578 = smul.addr %s577, 16
          %s579 = smul.addr %s578, 4
          %s580 = scalar_lea.vmem %s6, %s579
        $region52: #{bert_on_qa_forward.1} parent=31 // pred_fallthru
          _
        // Predicated region
        $region53: #{bert_on_qa_forward.1} parent=31 // pred_check
          %p581 = pneg %p231
        $region54: #{bert_on_qa_forward.1} parent=31 // pred_check_branch
          %583 = sbr.rel (%p581) target = $region56
        $region55: #{bert_on_qa_forward.1} parent=31 // pred_region
          %p584 = scmp.lt.s32.totalorder %s35, 1
          %s585 = scalar_select %p584, %s35, 1
          %s586 = scalar_lea.vmem %s7, %s585
        $region56: #{bert_on_qa_forward.1} parent=31 // pred_fallthru
          _
        // Predicated region
        $region57: #{bert_on_qa_forward.1} parent=31 // pred_check
          %p587 = pneg %p257
        $region58: #{bert_on_qa_forward.1} parent=31 // pred_check_branch
          %589 = sbr.rel (%p587) target = $region60
        $region59: #{bert_on_qa_forward.1} parent=31 // pred_region
          %p590 = scmp.lt.s32.totalorder %s35, 1
          %s591 = scalar_select %p590, %s35, 1
          %s592 = scalar_lea.vmem %s8, %s591
        $region60: #{bert_on_qa_forward.1} parent=31 // pred_fallthru
          _
        // Predicated region
        $region61: #{bert_on_qa_forward.1} parent=31 // pred_check
          %p593 = pneg %p283
        $region62: #{bert_on_qa_forward.1} parent=31 // pred_check_branch
          %595 = sbr.rel (%p593) target = $region64
        $region63: #{bert_on_qa_forward.1} parent=31 // pred_region
          %p596 = scmp.lt.s32.totalorder %s35, 1
          %s597 = scalar_select %p596, %s35, 1
          %s598 = scalar_lea.vmem %s9, %s597
        $region64: #{bert_on_qa_forward.1} parent=31 // pred_fallthru
          _
        // Predicated region
        $region65: #{bert_on_qa_forward.1} parent=31 // pred_check
          %p599 = pneg %p309
        $region66: #{bert_on_qa_forward.1} parent=31 // pred_check_branch
          %601 = sbr.rel (%p599) target = $region68
        $region67: #{bert_on_qa_forward.1} parent=31 // pred_region
          %p602 = scmp.lt.s32.totalorder %s35, 1
          %s603 = scalar_select %p602, %s35, 1
          %s604 = smul.addr %s603, 32
          %s605 = smul.addr %s604, 4
          %s606 = scalar_lea.vmem %s10, %s605
        $region68: #{bert_on_qa_forward.1} parent=31 // pred_fallthru
          _
        // Predicated region
        $region69: #{bert_on_qa_forward.1} parent=31 // pred_check
          %p607 = pneg %p335
        $region70: #{bert_on_qa_forward.1} parent=31 // pred_check_branch
          %609 = sbr.rel (%p607) target = $region72
        $region71: #{bert_on_qa_forward.1} parent=31 // pred_region
          %p610 = scmp.lt.s32.totalorder %s35, 1
          %s611 = scalar_select %p610, %s35, 1
          %s612 = smul.addr %s611, 2
          %s613 = scalar_lea.vmem %s11, %s612
        $region72: #{bert_on_qa_forward.1} parent=31 // pred_fallthru
          _
        // Predicated region
        $region73: #{bert_on_qa_forward.1} parent=31 // pred_check
          %p614 = pneg %p361
        $region74: #{bert_on_qa_forward.1} parent=31 // pred_check_branch
          %616 = sbr.rel (%p614) target = $region76
        $region75: #{bert_on_qa_forward.1} parent=31 // pred_region
          %p617 = scmp.lt.s32.totalorder %s35, 1
          %s618 = scalar_select %p617, %s35, 1
          %s619 = smul.addr %s618, 32
          %s620 = smul.addr %s619, 4
          %s621 = scalar_lea.vmem %s12, %s620
        $region76: #{bert_on_qa_forward.1} parent=31 // pred_fallthru
          _
        // Predicated region
        $region77: #{bert_on_qa_forward.1} parent=31 // pred_check
          %p622 = pneg %p387
        $region78: #{bert_on_qa_forward.1} parent=31 // pred_check_branch
          %624 = sbr.rel (%p622) target = $region80
        $region79: #{bert_on_qa_forward.1} parent=31 // pred_region
          %p625 = scmp.lt.s32.totalorder %s35, 1
          %s626 = scalar_select %p625, %s35, 1
          %s627 = scalar_lea.vmem %s13, %s626
        $region80: #{bert_on_qa_forward.1} parent=31 // pred_fallthru
          _
        // Predicated region
        $region81: #{bert_on_qa_forward.1} parent=31 // pred_check
          %p628 = pneg %p413
        $region82: #{bert_on_qa_forward.1} parent=31 // pred_check_branch
          %630 = sbr.rel (%p628) target = $region84
        $region83: #{bert_on_qa_forward.1} parent=31 // pred_region
          %p631 = scmp.lt.s32.totalorder %s35, 1
          %s632 = scalar_select %p631, %s35, 1
          %s633 = scalar_lea.vmem %s14, %s632
        $region84: #{bert_on_qa_forward.1} parent=31 // pred_fallthru
          _
        // Predicated region
        $region85: #{bert_on_qa_forward.1} parent=31 // pred_check
          %p634 = pneg %p439
        $region86: #{bert_on_qa_forward.1} parent=31 // pred_check_branch
          %636 = sbr.rel (%p634) target = $region88
        $region87: #{bert_on_qa_forward.1} parent=31 // pred_region
          %p637 = scmp.lt.s32.totalorder %s35, 1
          %s638 = scalar_select %p637, %s35, 1
          %s639 = scalar_lea.vmem %s15, %s638
        $region88: #{bert_on_qa_forward.1} parent=31 // pred_fallthru
          _
      $region32: #{bert_on_qa_forward.1} parent=5 // pred_fallthru
        _
      %p640 = scmp.le.s32.totalorder 1, %s27
      %p641 = scmp.lt.s32.totalorder %s27, 5
      %p642 = pnand %p640, %p641
      %p643 = pneg %p642
      // Predicated region
      $region89: #{bert_on_qa_forward.1} parent=5 // pred_check
        _
      $region90: #{bert_on_qa_forward.1} parent=5 // pred_check_branch
        %645 = sbr.rel (%p642) target = $region92
      $region91: #{bert_on_qa_forward.1} parent=5 // pred_region
        %s646 = ssub.s32 %s27, 1
        %p647 = scmp.lt.s32.totalorder %s36, 1
        %s648 = scalar_select %p647, %s36, 1
        %s649 = smul.addr %s648, 16
        %s650 = smul.addr %s649, 8
        %s651 = scalar_lea.vmem %s0, %s650
        %p652 = pneg %p65
        %p653 = pneg %p62
        %p654 = scmp.lt.s32.totalorder %s36, 1
        %s655 = scalar_select %p654, %s36, 1
        %s656 = scalar_lea.vmem %s1, %s655
        %p657 = pneg %p91
        %p658 = pneg %p88
        %p659 = pneg %p112
        %p660 = pneg %p109
        %p661 = pneg %p133
        %p662 = pneg %p130
        %p663 = scmp.lt.s32.totalorder %s37, 1
        %s664 = scalar_select %p663, %s37, 1
        %s665 = smul.addr %s664, 48
        %s666 = smul.addr %s665, 4
        %s667 = scalar_lea.vmem %s4, %s666
        %p668 = pneg %p159
        %p669 = pneg %p156
        %p670 = scmp.lt.s32.totalorder %s37, 1
        %s671 = scalar_select %p670, %s37, 1
        %s672 = smul.addr %s671, 3
        %s673 = scalar_lea.vmem %s5, %s672
        %p674 = pneg %p185
        %p675 = pneg %p182
        %p676 = scmp.lt.s32.totalorder %s37, 1
        %s677 = scalar_select %p676, %s37, 1
        %s678 = smul.addr %s677, 16
        %s679 = smul.addr %s678, 4
        %s680 = scalar_lea.vmem %s6, %s679
        %p681 = pneg %p211
        %p682 = pneg %p208
        %p683 = scmp.lt.s32.totalorder %s37, 1
        %s684 = scalar_select %p683, %s37, 1
        %s685 = scalar_lea.vmem %s7, %s684
        %p686 = pneg %p237
        %p687 = pneg %p234
        %p688 = scmp.lt.s32.totalorder %s37, 1
        %s689 = scalar_select %p688, %s37, 1
        %s690 = scalar_lea.vmem %s8, %s689
        %p691 = pneg %p263
        %p692 = pneg %p260
        %p693 = scmp.lt.s32.totalorder %s37, 1
        %s694 = scalar_select %p693, %s37, 1
        %s695 = scalar_lea.vmem %s9, %s694
        %p696 = pneg %p289
        %p697 = pneg %p286
        %p698 = scmp.lt.s32.totalorder %s37, 1
        %s699 = scalar_select %p698, %s37, 1
        %s700 = smul.addr %s699, 32
        %s701 = smul.addr %s700, 4
        %s702 = scalar_lea.vmem %s10, %s701
        %p703 = pneg %p315
        %p704 = pneg %p312
        %p705 = scmp.lt.s32.totalorder %s37, 1
        %s706 = scalar_select %p705, %s37, 1
        %s707 = smul.addr %s706, 2
        %s708 = scalar_lea.vmem %s11, %s707
        %p709 = pneg %p341
        %p710 = pneg %p338
        %p711 = scmp.lt.s32.totalorder %s37, 1
        %s712 = scalar_select %p711, %s37, 1
        %s713 = smul.addr %s712, 32
        %s714 = smul.addr %s713, 4
        %s715 = scalar_lea.vmem %s12, %s714
        %p716 = pneg %p367
        %p717 = pneg %p364
        %p718 = scmp.lt.s32.totalorder %s37, 1
        %s719 = scalar_select %p718, %s37, 1
        %s720 = scalar_lea.vmem %s13, %s719
        %p721 = pneg %p393
        %p722 = pneg %p390
        %p723 = scmp.lt.s32.totalorder %s37, 1
        %s724 = scalar_select %p723, %s37, 1
        %s725 = scalar_lea.vmem %s14, %s724
        %p726 = pneg %p419
        %p727 = pneg %p416
        %p728 = scmp.lt.s32.totalorder %s37, 1
        %s729 = scalar_select %p728, %s37, 1
        %s730 = scalar_lea.vmem %s15, %s729
        %p731 = pneg %p445
        %p732 = pneg %p442
        %p733 = pneg %p466
        %p734 = pneg %p463
        %p735 = pneg %p487
        %p736 = pneg %p484
        %p737 = pneg %p513
        %p738 = pneg %p510
        %s739 = sand.u32 %s500, 1
        %s740 = scalar_lea.sflag [#allocation5], %s739
        %s741 = sand.u32 %s500, 1
        %s742 = scalar_lea.vmem [#allocation4], %s741
        %p743 = scmp.lt.s32.totalorder %s36, 1
        %s744 = scalar_select %p743, %s36, 1
        %s745 = smul.addr %s744, 16
        %s746 = smul.addr %s745, 8
        %s747 = scalar_lea.vmem %s0, %s746
        %p748 = scmp.lt.s32.totalorder %s36, 1
        %s749 = scalar_select %p748, %s36, 1
        %s750 = scalar_lea.vmem %s1, %s749
        %p751 = scmp.lt.s32.totalorder %s37, 1
        %s752 = scalar_select %p751, %s37, 1
        %s753 = smul.addr %s752, 48
        %s754 = smul.addr %s753, 4
        %s755 = scalar_lea.vmem %s4, %s754
        %p756 = scmp.lt.s32.totalorder %s37, 1
        %s757 = scalar_select %p756, %s37, 1
        %s758 = smul.addr %s757, 3
        %s759 = scalar_lea.vmem %s5, %s758
        %p760 = scmp.lt.s32.totalorder %s37, 1
        %s761 = scalar_select %p760, %s37, 1
        %s762 = smul.addr %s761, 16
        %s763 = smul.addr %s762, 4
        %s764 = scalar_lea.vmem %s6, %s763
        %p765 = scmp.lt.s32.totalorder %s37, 1
        %s766 = scalar_select %p765, %s37, 1
        %s767 = scalar_lea.vmem %s7, %s766
        %p768 = scmp.lt.s32.totalorder %s37, 1
        %s769 = scalar_select %p768, %s37, 1
        %s770 = scalar_lea.vmem %s8, %s769
        %p771 = scmp.lt.s32.totalorder %s37, 1
        %s772 = scalar_select %p771, %s37, 1
        %s773 = scalar_lea.vmem %s9, %s772
        %p774 = scmp.lt.s32.totalorder %s37, 1
        %s775 = scalar_select %p774, %s37, 1
        %s776 = smul.addr %s775, 32
        %s777 = smul.addr %s776, 4
        %s778 = scalar_lea.vmem %s10, %s777
        %p779 = scmp.lt.s32.totalorder %s37, 1
        %s780 = scalar_select %p779, %s37, 1
        %s781 = smul.addr %s780, 2
        %s782 = scalar_lea.vmem %s11, %s781
        %p783 = scmp.lt.s32.totalorder %s37, 1
        %s784 = scalar_select %p783, %s37, 1
        %s785 = smul.addr %s784, 32
        %s786 = smul.addr %s785, 4
        %s787 = scalar_lea.vmem %s12, %s786
        %p788 = scmp.lt.s32.totalorder %s37, 1
        %s789 = scalar_select %p788, %s37, 1
        %s790 = scalar_lea.vmem %s13, %s789
        %p791 = scmp.lt.s32.totalorder %s37, 1
        %s792 = scalar_select %p791, %s37, 1
        %s793 = scalar_lea.vmem %s14, %s792
        %p794 = scmp.lt.s32.totalorder %s37, 1
        %s795 = scalar_select %p794, %s37, 1
        %s796 = scalar_lea.vmem %s15, %s795
        %p798 = scmp.eq.s32.totalorder %s37, 0
        // Predicated region
        $region93: #{bert_on_qa_forward.1} parent=91 // pred_check
          %p799 = pneg %p798
        $region94: #{bert_on_qa_forward.1} parent=91 // pred_check_branch
          %801 = sbr.rel (%p799) target = $region96
        $region95: #{bert_on_qa_forward.1} parent=91 // pred_region
          %v802 = vld [vmem:[%s747] sm:$0xff]
          %v803 = vld [vmem:[%s747 + $0x8] sm:$0xff]
          %v804 = vld [vmem:[%s747 + $0x10] sm:$0xff]
          %v805 = vld [vmem:[%s747 + $0x18] sm:$0xff]
          %v806 = vld [vmem:[%s747 + $0x20] sm:$0xff]
          %v807 = vld [vmem:[%s747 + $0x28] sm:$0xff]
          %v808 = vld [vmem:[%s747 + $0x30] sm:$0xff]
          %v809 = vld [vmem:[%s747 + $0x38] sm:$0xff]
          %v810 = vld [vmem:[%s747 + $0x40] sm:$0xff]
          %v811 = vld [vmem:[%s747 + $0x48] sm:$0xff]
          %v812 = vld [vmem:[%s747 + $0x50] sm:$0xff]
          %v813 = vld [vmem:[%s747 + $0x58] sm:$0xff]
          %v814 = vld [vmem:[%s747 + $0x60] sm:$0xff]
          %v815 = vld [vmem:[%s747 + $0x68] sm:$0xff]
          %v816 = vld [vmem:[%s747 + $0x70] sm:$0xff]
          %v817 = vld [vmem:[%s747 + $0x78] sm:$0xff]
          %v818 = vld [vmem:[%s2] sm:$0x1]
          %v819 = vld [vmem:[%s3] sm:$0x1]
          %820 = vadd.xlane.f32.xlu0 %v802
          %v821 = vpop.xlane.xlu0 %820
          %822 = vadd.xlane.f32.xlu0 %v803
          %v823 = vpop.xlane.xlu0 %822
          %824 = vadd.xlane.f32.xlu0 %v804
          %v825 = vpop.xlane.xlu0 %824
          %826 = vadd.xlane.f32.xlu0 %v805
          %v827 = vpop.xlane.xlu0 %826
          %828 = vadd.xlane.f32.xlu0 %v806
          %v829 = vpop.xlane.xlu0 %828
          %830 = vadd.xlane.f32.xlu0 %v807
          %v831 = vpop.xlane.xlu0 %830
          %832 = vadd.xlane.f32.xlu0 %v808
          %v833 = vpop.xlane.xlu0 %832
          %834 = vadd.xlane.f32.xlu0 %v809
          %v835 = vpop.xlane.xlu0 %834
          %836 = vadd.xlane.f32.xlu0 %v810
          %v837 = vpop.xlane.xlu0 %836
          %838 = vadd.xlane.f32.xlu0 %v811
          %v839 = vpop.xlane.xlu0 %838
          %840 = vadd.xlane.f32.xlu0 %v812
          %v841 = vpop.xlane.xlu0 %840
          %842 = vadd.xlane.f32.xlu0 %v813
          %v843 = vpop.xlane.xlu0 %842
          %844 = vadd.xlane.f32.xlu0 %v814
          %v845 = vpop.xlane.xlu0 %844
          %846 = vadd.xlane.f32.xlu0 %v815
          %v847 = vpop.xlane.xlu0 %846
          %848 = vadd.xlane.f32.xlu0 %v816
          %v849 = vpop.xlane.xlu0 %848
          %850 = vadd.xlane.f32.xlu0 %v817
          %v851 = vpop.xlane.xlu0 %850
          %v852 = vrcp.pop 128.0
          %v853 = vmul.f32 128.0, %v852
          %v854 = vsub.f32 1.0, %v853
          %v855 = vmul.f32 %v852, %v854
          %v856 = vadd.f32 %v852, %v855
          %vm857 = vweird.f32 %v852
          %v858 = vsel %vm857, %v852, %v856
          %v859 = vmul.f32 %v821, %v858
          %v860 = vmul.f32 %v823, %v858
          %v861 = vmul.f32 %v825, %v858
          %v862 = vmul.f32 %v827, %v858
          %v863 = vmul.f32 %v829, %v858
          %v864 = vmul.f32 %v831, %v858
          %v865 = vmul.f32 %v833, %v858
          %v866 = vmul.f32 %v835, %v858
          %v867 = vmul.f32 %v837, %v858
          %v868 = vmul.f32 %v839, %v858
          %v869 = vmul.f32 %v841, %v858
          %v870 = vmul.f32 %v843, %v858
          %v871 = vmul.f32 %v845, %v858
          %v872 = vmul.f32 %v847, %v858
          %v873 = vmul.f32 %v849, %v858
          %v874 = vmul.f32 %v851, %v858
          %v875 = vsub.f32 %v802, %v859
          %v876 = vsub.f32 %v803, %v860
          %v877 = vsub.f32 %v804, %v861
          %v878 = vsub.f32 %v805, %v862
          %v879 = vsub.f32 %v806, %v863
          %v880 = vsub.f32 %v807, %v864
          %v881 = vsub.f32 %v808, %v865
          %v882 = vsub.f32 %v809, %v866
          %v883 = vsub.f32 %v810, %v867
          %v884 = vsub.f32 %v811, %v868
          %v885 = vsub.f32 %v812, %v869
          %v886 = vsub.f32 %v813, %v870
          %v887 = vsub.f32 %v814, %v871
          %v888 = vsub.f32 %v815, %v872
          %v889 = vsub.f32 %v816, %v873
          %v890 = vsub.f32 %v817, %v874
          %v891 = vmul.f32 %v875, %v875
          %v892 = vmul.f32 %v876, %v876
          %v893 = vmul.f32 %v877, %v877
          %v894 = vmul.f32 %v878, %v878
          %v895 = vmul.f32 %v879, %v879
          %v896 = vmul.f32 %v880, %v880
          %v897 = vmul.f32 %v881, %v881
          %v898 = vmul.f32 %v882, %v882
          %v899 = vmul.f32 %v883, %v883
          %v900 = vmul.f32 %v884, %v884
          %v901 = vmul.f32 %v885, %v885
          %v902 = vmul.f32 %v886, %v886
          %v903 = vmul.f32 %v887, %v887
          %v904 = vmul.f32 %v888, %v888
          %v905 = vmul.f32 %v889, %v889
          %v906 = vmul.f32 %v890, %v890
          %907 = vadd.xlane.f32.xlu0 %v891
          %v908 = vpop.xlane.xlu0 %907
          %909 = vadd.xlane.f32.xlu0 %v892
          %v910 = vpop.xlane.xlu0 %909
          %911 = vadd.xlane.f32.xlu0 %v893
          %v912 = vpop.xlane.xlu0 %911
          %913 = vadd.xlane.f32.xlu0 %v894
          %v914 = vpop.xlane.xlu0 %913
          %915 = vadd.xlane.f32.xlu0 %v895
          %v916 = vpop.xlane.xlu0 %915
          %917 = vadd.xlane.f32.xlu0 %v896
          %v918 = vpop.xlane.xlu0 %917
          %919 = vadd.xlane.f32.xlu0 %v897
          %v920 = vpop.xlane.xlu0 %919
          %921 = vadd.xlane.f32.xlu0 %v898
          %v922 = vpop.xlane.xlu0 %921
          %923 = vadd.xlane.f32.xlu0 %v899
          %v924 = vpop.xlane.xlu0 %923
          %925 = vadd.xlane.f32.xlu0 %v900
          %v926 = vpop.xlane.xlu0 %925
          %927 = vadd.xlane.f32.xlu0 %v901
          %v928 = vpop.xlane.xlu0 %927
          %929 = vadd.xlane.f32.xlu0 %v902
          %v930 = vpop.xlane.xlu0 %929
          %931 = vadd.xlane.f32.xlu0 %v903
          %v932 = vpop.xlane.xlu0 %931
          %933 = vadd.xlane.f32.xlu0 %v904
          %v934 = vpop.xlane.xlu0 %933
          %935 = vadd.xlane.f32.xlu0 %v905
          %v936 = vpop.xlane.xlu0 %935
          %937 = vadd.xlane.f32.xlu0 %v906
          %v938 = vpop.xlane.xlu0 %937
          %v939 = vmul.f32 %v908, %v858
          %v940 = vmul.f32 %v910, %v858
          %v941 = vmul.f32 %v912, %v858
          %v942 = vmul.f32 %v914, %v858
          %v943 = vmul.f32 %v916, %v858
          %v944 = vmul.f32 %v918, %v858
          %v945 = vmul.f32 %v920, %v858
          %v946 = vmul.f32 %v922, %v858
          %v947 = vmul.f32 %v924, %v858
          %v948 = vmul.f32 %v926, %v858
          %v949 = vmul.f32 %v928, %v858
          %v950 = vmul.f32 %v930, %v858
          %v951 = vmul.f32 %v932, %v858
          %v952 = vmul.f32 %v934, %v858
          %v953 = vmul.f32 %v936, %v858
          %v954 = vmul.f32 %v938, %v858
          %v955 = vadd.f32 %v939, 1e-12
          %v956 = vadd.f32 %v940, 1e-12
          %v957 = vadd.f32 %v941, 1e-12
          %v958 = vadd.f32 %v942, 1e-12
          %v959 = vadd.f32 %v943, 1e-12
          %v960 = vadd.f32 %v944, 1e-12
          %v961 = vadd.f32 %v945, 1e-12
          %v962 = vadd.f32 %v946, 1e-12
          %v963 = vadd.f32 %v947, 1e-12
          %v964 = vadd.f32 %v948, 1e-12
          %v965 = vadd.f32 %v949, 1e-12
          %v966 = vadd.f32 %v950, 1e-12
          %v967 = vadd.f32 %v951, 1e-12
          %v968 = vadd.f32 %v952, 1e-12
          %v969 = vadd.f32 %v953, 1e-12
          %v970 = vadd.f32 %v954, 1e-12
          %v971 = vrsqrt.pop %v955
          %v972 = vmul.f32 %v971, %v955
          %v973 = vmul.f32 %v972, %v971
          %v974 = vmul.f32 0.5, %v973
          %v975 = vsub.f32 1.5, %v974
          %v976 = vmul.f32 %v971, %v975
          %vm977 = vweird.f32 %v955
          %vm978 = vweird.f32 %v971
          %vm979 = vmor %vm977, %vm978
          %v980 = vsel %vm979, %v971, %v976
          %v981 = vrsqrt.pop %v956
          %v982 = vmul.f32 %v981, %v956
          %v983 = vmul.f32 %v982, %v981
          %v984 = vmul.f32 0.5, %v983
          %v985 = vsub.f32 1.5, %v984
          %v986 = vmul.f32 %v981, %v985
          %vm987 = vweird.f32 %v956
          %vm988 = vweird.f32 %v981
          %vm989 = vmor %vm987, %vm988
          %v990 = vsel %vm989, %v981, %v986
          %v991 = vrsqrt.pop %v957
          %v992 = vmul.f32 %v991, %v957
          %v993 = vmul.f32 %v992, %v991
          %v994 = vmul.f32 0.5, %v993
          %v995 = vsub.f32 1.5, %v994
          %v996 = vmul.f32 %v991, %v995
          %vm997 = vweird.f32 %v957
          %vm998 = vweird.f32 %v991
          %vm999 = vmor %vm997, %vm998
          %v1000 = vsel %vm999, %v991, %v996
          %v1001 = vrsqrt.pop %v958
          %v1002 = vmul.f32 %v1001, %v958
          %v1003 = vmul.f32 %v1002, %v1001
          %v1004 = vmul.f32 0.5, %v1003
          %v1005 = vsub.f32 1.5, %v1004
          %v1006 = vmul.f32 %v1001, %v1005
          %vm1007 = vweird.f32 %v958
          %vm1008 = vweird.f32 %v1001
          %vm1009 = vmor %vm1007, %vm1008
          %v1010 = vsel %vm1009, %v1001, %v1006
          %v1011 = vrsqrt.pop %v959
          %v1012 = vmul.f32 %v1011, %v959
          %v1013 = vmul.f32 %v1012, %v1011
          %v1014 = vmul.f32 0.5, %v1013
          %v1015 = vsub.f32 1.5, %v1014
          %v1016 = vmul.f32 %v1011, %v1015
          %vm1017 = vweird.f32 %v959
          %vm1018 = vweird.f32 %v1011
          %vm1019 = vmor %vm1017, %vm1018
          %v1020 = vsel %vm1019, %v1011, %v1016
          %v1021 = vrsqrt.pop %v960
          %v1022 = vmul.f32 %v1021, %v960
          %v1023 = vmul.f32 %v1022, %v1021
          %v1024 = vmul.f32 0.5, %v1023
          %v1025 = vsub.f32 1.5, %v1024
          %v1026 = vmul.f32 %v1021, %v1025
          %vm1027 = vweird.f32 %v960
          %vm1028 = vweird.f32 %v1021
          %vm1029 = vmor %vm1027, %vm1028
          %v1030 = vsel %vm1029, %v1021, %v1026
          %v1031 = vrsqrt.pop %v961
          %v1032 = vmul.f32 %v1031, %v961
          %v1033 = vmul.f32 %v1032, %v1031
          %v1034 = vmul.f32 0.5, %v1033
          %v1035 = vsub.f32 1.5, %v1034
          %v1036 = vmul.f32 %v1031, %v1035
          %vm1037 = vweird.f32 %v961
          %vm1038 = vweird.f32 %v1031
          %vm1039 = vmor %vm1037, %vm1038
          %v1040 = vsel %vm1039, %v1031, %v1036
          %v1041 = vrsqrt.pop %v962
          %v1042 = vmul.f32 %v1041, %v962
          %v1043 = vmul.f32 %v1042, %v1041
          %v1044 = vmul.f32 0.5, %v1043
          %v1045 = vsub.f32 1.5, %v1044
          %v1046 = vmul.f32 %v1041, %v1045
          %vm1047 = vweird.f32 %v962
          %vm1048 = vweird.f32 %v1041
          %vm1049 = vmor %vm1047, %vm1048
          %v1050 = vsel %vm1049, %v1041, %v1046
          %v1051 = vrsqrt.pop %v963
          %v1052 = vmul.f32 %v1051, %v963
          %v1053 = vmul.f32 %v1052, %v1051
          %v1054 = vmul.f32 0.5, %v1053
          %v1055 = vsub.f32 1.5, %v1054
          %v1056 = vmul.f32 %v1051, %v1055
          %vm1057 = vweird.f32 %v963
          %vm1058 = vweird.f32 %v1051
          %vm1059 = vmor %vm1057, %vm1058
          %v1060 = vsel %vm1059, %v1051, %v1056
          %v1061 = vrsqrt.pop %v964
          %v1062 = vmul.f32 %v1061, %v964
          %v1063 = vmul.f32 %v1062, %v1061
          %v1064 = vmul.f32 0.5, %v1063
          %v1065 = vsub.f32 1.5, %v1064
          %v1066 = vmul.f32 %v1061, %v1065
          %vm1067 = vweird.f32 %v964
          %vm1068 = vweird.f32 %v1061
          %vm1069 = vmor %vm1067, %vm1068
          %v1070 = vsel %vm1069, %v1061, %v1066
          %v1071 = vrsqrt.pop %v965
          %v1072 = vmul.f32 %v1071, %v965
          %v1073 = vmul.f32 %v1072, %v1071
          %v1074 = vmul.f32 0.5, %v1073
          %v1075 = vsub.f32 1.5, %v1074
          %v1076 = vmul.f32 %v1071, %v1075
          %vm1077 = vweird.f32 %v965
          %vm1078 = vweird.f32 %v1071
          %vm1079 = vmor %vm1077, %vm1078
          %v1080 = vsel %vm1079, %v1071, %v1076
          %v1081 = vrsqrt.pop %v966
          %v1082 = vmul.f32 %v1081, %v966
          %v1083 = vmul.f32 %v1082, %v1081
          %v1084 = vmul.f32 0.5, %v1083
          %v1085 = vsub.f32 1.5, %v1084
          %v1086 = vmul.f32 %v1081, %v1085
          %vm1087 = vweird.f32 %v966
          %vm1088 = vweird.f32 %v1081
          %vm1089 = vmor %vm1087, %vm1088
          %v1090 = vsel %vm1089, %v1081, %v1086
          %v1091 = vrsqrt.pop %v967
          %v1092 = vmul.f32 %v1091, %v967
          %v1093 = vmul.f32 %v1092, %v1091
          %v1094 = vmul.f32 0.5, %v1093
          %v1095 = vsub.f32 1.5, %v1094
          %v1096 = vmul.f32 %v1091, %v1095
          %vm1097 = vweird.f32 %v967
          %vm1098 = vweird.f32 %v1091
          %vm1099 = vmor %vm1097, %vm1098
          %v1100 = vsel %vm1099, %v1091, %v1096
          %v1101 = vrsqrt.pop %v968
          %v1102 = vmul.f32 %v1101, %v968
          %v1103 = vmul.f32 %v1102, %v1101
          %v1104 = vmul.f32 0.5, %v1103
          %v1105 = vsub.f32 1.5, %v1104
          %v1106 = vmul.f32 %v1101, %v1105
          %vm1107 = vweird.f32 %v968
          %vm1108 = vweird.f32 %v1101
          %vm1109 = vmor %vm1107, %vm1108
          %v1110 = vsel %vm1109, %v1101, %v1106
          %v1111 = vrsqrt.pop %v969
          %v1112 = vmul.f32 %v1111, %v969
          %v1113 = vmul.f32 %v1112, %v1111
          %v1114 = vmul.f32 0.5, %v1113
          %v1115 = vsub.f32 1.5, %v1114
          %v1116 = vmul.f32 %v1111, %v1115
          %vm1117 = vweird.f32 %v969
          %vm1118 = vweird.f32 %v1111
          %vm1119 = vmor %vm1117, %vm1118
          %v1120 = vsel %vm1119, %v1111, %v1116
          %v1121 = vrsqrt.pop %v970
          %v1122 = vmul.f32 %v1121, %v970
          %v1123 = vmul.f32 %v1122, %v1121
          %v1124 = vmul.f32 0.5, %v1123
          %v1125 = vsub.f32 1.5, %v1124
          %v1126 = vmul.f32 %v1121, %v1125
          %vm1127 = vweird.f32 %v970
          %vm1128 = vweird.f32 %v1121
          %vm1129 = vmor %vm1127, %vm1128
          %v1130 = vsel %vm1129, %v1121, %v1126
          %v1131 = vmul.f32 %v875, %v980
          %v1132 = vmul.f32 %v876, %v990
          %v1133 = vmul.f32 %v877, %v1000
          %v1134 = vmul.f32 %v878, %v1010
          %v1135 = vmul.f32 %v879, %v1020
          %v1136 = vmul.f32 %v880, %v1030
          %v1137 = vmul.f32 %v881, %v1040
          %v1138 = vmul.f32 %v882, %v1050
          %v1139 = vmul.f32 %v883, %v1060
          %v1140 = vmul.f32 %v884, %v1070
          %v1141 = vmul.f32 %v885, %v1080
          %v1142 = vmul.f32 %v886, %v1090
          %v1143 = vmul.f32 %v887, %v1100
          %v1144 = vmul.f32 %v888, %v1110
          %v1145 = vmul.f32 %v889, %v1120
          %v1146 = vmul.f32 %v890, %v1130
          %v1148 = vperm.slane %v818, 0
          %v1150 = vmul.f32 %v1131, %v1148
          %v1151 = vmul.f32 %v1132, %v1148
          %v1152 = vmul.f32 %v1133, %v1148
          %v1153 = vmul.f32 %v1134, %v1148
          %v1154 = vmul.f32 %v1135, %v1148
          %v1155 = vmul.f32 %v1136, %v1148
          %v1156 = vmul.f32 %v1137, %v1148
          %v1157 = vmul.f32 %v1138, %v1148
          %v1158 = vmul.f32 %v1139, %v1148
          %v1159 = vmul.f32 %v1140, %v1148
          %v1160 = vmul.f32 %v1141, %v1148
          %v1161 = vmul.f32 %v1142, %v1148
          %v1162 = vmul.f32 %v1143, %v1148
          %v1163 = vmul.f32 %v1144, %v1148
          %v1164 = vmul.f32 %v1145, %v1148
          %v1165 = vmul.f32 %v1146, %v1148
          %v1167 = vperm.slane %v819, 0
          %v1169 = vadd.f32 %v1150, %v1167
          %v1170 = vadd.f32 %v1151, %v1167
          %v1171 = vadd.f32 %v1152, %v1167
          %v1172 = vadd.f32 %v1153, %v1167
          %v1173 = vadd.f32 %v1154, %v1167
          %v1174 = vadd.f32 %v1155, %v1167
          %v1175 = vadd.f32 %v1156, %v1167
          %v1176 = vadd.f32 %v1157, %v1167
          %v1177 = vadd.f32 %v1158, %v1167
          %v1178 = vadd.f32 %v1159, %v1167
          %v1179 = vadd.f32 %v1160, %v1167
          %v1180 = vadd.f32 %v1161, %v1167
          %v1181 = vadd.f32 %v1162, %v1167
          %v1182 = vadd.f32 %v1163, %v1167
          %v1183 = vadd.f32 %v1164, %v1167
          %v1184 = vadd.f32 %v1165, %v1167
          %1185 = vst [vmem:[#allocation2] sm:$0xff] %v1169
          %1186 = vst [vmem:[#allocation2 + $0x8] sm:$0xff] %v1170
          %1187 = vst [vmem:[#allocation2 + $0x10] sm:$0xff] %v1171
          %1188 = vst [vmem:[#allocation2 + $0x18] sm:$0xff] %v1172
          %1189 = vst [vmem:[#allocation2 + $0x20] sm:$0xff] %v1173
          %1190 = vst [vmem:[#allocation2 + $0x28] sm:$0xff] %v1174
          %1191 = vst [vmem:[#allocation2 + $0x30] sm:$0xff] %v1175
          %1192 = vst [vmem:[#allocation2 + $0x38] sm:$0xff] %v1176
          %1193 = vst [vmem:[#allocation2 + $0x40] sm:$0xff] %v1177
          %1194 = vst [vmem:[#allocation2 + $0x48] sm:$0xff] %v1178
          %1195 = vst [vmem:[#allocation2 + $0x50] sm:$0xff] %v1179
          %1196 = vst [vmem:[#allocation2 + $0x58] sm:$0xff] %v1180
          %1197 = vst [vmem:[#allocation2 + $0x60] sm:$0xff] %v1181
          %1198 = vst [vmem:[#allocation2 + $0x68] sm:$0xff] %v1182
          %1199 = vst [vmem:[#allocation2 + $0x70] sm:$0xff] %v1183
          %1200 = vst [vmem:[#allocation2 + $0x78] sm:$0xff] %v1184
        $region96: #{bert_on_qa_forward.1} parent=91 // pred_fallthru
          _
        %v1201 = vld [vmem:[#allocation2] sm:$0xff]
        %v1202 = vld [vmem:[#allocation2 + $0x8] sm:$0xff]
        %v1203 = vld [vmem:[#allocation2 + $0x10] sm:$0xff]
        %v1204 = vld [vmem:[#allocation2 + $0x18] sm:$0xff]
        %v1205 = vld [vmem:[#allocation2 + $0x20] sm:$0xff]
        %v1206 = vld [vmem:[#allocation2 + $0x28] sm:$0xff]
        %v1207 = vld [vmem:[#allocation2 + $0x30] sm:$0xff]
        %v1208 = vld [vmem:[#allocation2 + $0x38] sm:$0xff]
        %v1209 = vld [vmem:[#allocation2 + $0x40] sm:$0xff]
        %v1210 = vld [vmem:[#allocation2 + $0x48] sm:$0xff]
        %v1211 = vld [vmem:[#allocation2 + $0x50] sm:$0xff]
        %v1212 = vld [vmem:[#allocation2 + $0x58] sm:$0xff]
        %v1213 = vld [vmem:[#allocation2 + $0x60] sm:$0xff]
        %v1214 = vld [vmem:[#allocation2 + $0x68] sm:$0xff]
        %v1215 = vld [vmem:[#allocation2 + $0x70] sm:$0xff]
        %v1216 = vld [vmem:[#allocation2 + $0x78] sm:$0xff]
        %v1217 = vld [vmem:[%s750] sm:$0x1]
        %v1218 = vpack.c.bf16 %v1202, %v1201
        %v1219 = vpack.c.bf16 %v1204, %v1203
        %v1220 = vpack.c.bf16 %v1206, %v1205
        %v1221 = vpack.c.bf16 %v1208, %v1207
        %v1222 = vpack.c.bf16 %v1210, %v1209
        %v1223 = vpack.c.bf16 %v1212, %v1211
        %v1224 = vpack.c.bf16 %v1214, %v1213
        %v1225 = vpack.c.bf16 %v1216, %v1215
        %v1226 = vld [vmem:[%s755] sm:$0xff]
        %v1227 = vld [vmem:[%s755 + $0x8] sm:$0xf]
        %v1228 = vld [vmem:[%s755 + $0xc] sm:$0xff]
        %v1229 = vld [vmem:[%s755 + $0x14] sm:$0xf]
        %v1230 = vld [vmem:[%s755 + $0x18] sm:$0xff]
        %v1231 = vld [vmem:[%s755 + $0x20] sm:$0xf]
        %v1232 = vld [vmem:[%s755 + $0x24] sm:$0xff]
        %v1233 = vld [vmem:[%s755 + $0x2c] sm:$0xf]
        %v1234 = vld [vmem:[%s755 + $0x30] sm:$0xff]
        %v1235 = vld [vmem:[%s755 + $0x38] sm:$0xf]
        %v1236 = vld [vmem:[%s755 + $0x3c] sm:$0xff]
        %v1237 = vld [vmem:[%s755 + $0x44] sm:$0xf]
        %v1238 = vld [vmem:[%s755 + $0x48] sm:$0xff]
        %v1239 = vld [vmem:[%s755 + $0x50] sm:$0xf]
        %v1240 = vld [vmem:[%s755 + $0x54] sm:$0xff]
        %v1241 = vld [vmem:[%s755 + $0x5c] sm:$0xf]
        %v1242 = vld [vmem:[%s755 + $0x60] sm:$0xff]
        %v1243 = vld [vmem:[%s755 + $0x68] sm:$0xf]
        %v1244 = vld [vmem:[%s755 + $0x6c] sm:$0xff]
        %v1245 = vld [vmem:[%s755 + $0x74] sm:$0xf]
        %v1246 = vld [vmem:[%s755 + $0x78] sm:$0xff]
        %v1247 = vld [vmem:[%s755 + $0x80] sm:$0xf]
        %v1248 = vld [vmem:[%s755 + $0x84] sm:$0xff]
        %v1249 = vld [vmem:[%s755 + $0x8c] sm:$0xf]
        %v1250 = vld [vmem:[%s755 + $0x90] sm:$0xff]
        %v1251 = vld [vmem:[%s755 + $0x98] sm:$0xf]
        %v1252 = vld [vmem:[%s755 + $0x9c] sm:$0xff]
        %v1253 = vld [vmem:[%s755 + $0xa4] sm:$0xf]
        %v1254 = vld [vmem:[%s755 + $0xa8] sm:$0xff]
        %v1255 = vld [vmem:[%s755 + $0xb0] sm:$0xf]
        %v1256 = vld [vmem:[%s755 + $0xb4] sm:$0xff]
        %v1257 = vld [vmem:[%s755 + $0xbc] sm:$0xf]
        %v1258 = vld [vmem:[%s759] sm:$0x7]
        %v1260 = vperm.slane %v1258, 0
        %v1261 = vperm.slane %v1258, 1
        %v1262 = vperm.slane %v1258, 2
        %v1298 = vunpack.c.l.b16 %v1226
        %v1299 = vunpack.c.h.b16 %v1226
        %v1300 = vunpack.c.l.b16 %v1227
        %v1301 = vunpack.c.l.b16 %v1228
        %v1302 = vunpack.c.h.b16 %v1228
        %v1303 = vunpack.c.l.b16 %v1229
        %v1304 = vunpack.c.l.b16 %v1230
        %v1305 = vunpack.c.h.b16 %v1230
        %v1306 = vunpack.c.l.b16 %v1231
        %v1307 = vunpack.c.l.b16 %v1232
        %v1308 = vunpack.c.h.b16 %v1232
        %v1309 = vunpack.c.l.b16 %v1233
        %v1310 = vunpack.c.l.b16 %v1234
        %v1311 = vunpack.c.h.b16 %v1234
        %v1312 = vunpack.c.l.b16 %v1235
        %v1313 = vunpack.c.l.b16 %v1236
        %v1314 = vunpack.c.h.b16 %v1236
        %v1315 = vunpack.c.l.b16 %v1237
        %v1316 = vunpack.c.l.b16 %v1238
        %v1317 = vunpack.c.h.b16 %v1238
        %v1318 = vunpack.c.l.b16 %v1239
        %v1319 = vunpack.c.l.b16 %v1240
        %v1320 = vunpack.c.h.b16 %v1240
        %v1321 = vunpack.c.l.b16 %v1241
        %v1322 = vunpack.c.l.b16 %v1242
        %v1323 = vunpack.c.h.b16 %v1242
        %v1324 = vunpack.c.l.b16 %v1243
        %v1325 = vunpack.c.l.b16 %v1244
        %v1326 = vunpack.c.h.b16 %v1244
        %v1327 = vunpack.c.l.b16 %v1245
        %v1328 = vunpack.c.l.b16 %v1246
        %v1329 = vunpack.c.h.b16 %v1246
        %v1330 = vunpack.c.l.b16 %v1247
        %v1331 = vunpack.c.l.b16 %v1248
        %v1332 = vunpack.c.h.b16 %v1248
        %v1333 = vunpack.c.l.b16 %v1249
        %v1334 = vunpack.c.l.b16 %v1250
        %v1335 = vunpack.c.h.b16 %v1250
        %v1336 = vunpack.c.l.b16 %v1251
        %v1337 = vunpack.c.l.b16 %v1252
        %v1338 = vunpack.c.h.b16 %v1252
        %v1339 = vunpack.c.l.b16 %v1253
        %v1340 = vunpack.c.l.b16 %v1254
        %v1341 = vunpack.c.h.b16 %v1254
        %v1342 = vunpack.c.l.b16 %v1255
        %v1343 = vunpack.c.l.b16 %v1256
        %v1344 = vunpack.c.h.b16 %v1256
        %v1345 = vunpack.c.l.b16 %v1257
        %v1346 = vpack.c.b16 %v1301, %v1298
        %v1347 = vpack.c.b16 %v1302, %v1299
        %v1348 = vpack.c.b16 %v1303, %v1300
        %v1349 = vpack.c.b16 %v1307, %v1304
        %v1350 = vpack.c.b16 %v1308, %v1305
        %v1351 = vpack.c.b16 %v1309, %v1306
        %v1352 = vpack.c.b16 %v1313, %v1310
        %v1353 = vpack.c.b16 %v1314, %v1311
        %v1354 = vpack.c.b16 %v1315, %v1312
        %v1355 = vpack.c.b16 %v1319, %v1316
        %v1356 = vpack.c.b16 %v1320, %v1317
        %v1357 = vpack.c.b16 %v1321, %v1318
        %v1358 = vpack.c.b16 %v1325, %v1322
        %v1359 = vpack.c.b16 %v1326, %v1323
        %v1360 = vpack.c.b16 %v1327, %v1324
        %v1361 = vpack.c.b16 %v1331, %v1328
        %v1362 = vpack.c.b16 %v1332, %v1329
        %v1363 = vpack.c.b16 %v1333, %v1330
        %v1364 = vpack.c.b16 %v1337, %v1334
        %v1365 = vpack.c.b16 %v1338, %v1335
        %v1366 = vpack.c.b16 %v1339, %v1336
        %v1367 = vpack.c.b16 %v1343, %v1340
        %v1368 = vpack.c.b16 %v1344, %v1341
        %v1369 = vpack.c.b16 %v1345, %v1342
        %1394 = vmatpush.bf16.msra.mxu0 %v1367
        %1395 = vmatpush.bf16.msra.mxu0 %v1364
        %1396 = vmatpush.bf16.msra.mxu0 %v1361
        %1397 = vmatpush.bf16.msra.mxu0 %v1358
        %1398 = vmatpush.bf16.msra.mxu0 %v1355
        %1399 = vmatpush.bf16.msra.mxu0 %v1352
        %1400 = vmatpush.bf16.msra.mxu0 %v1349
        %1401 = vmatpush.bf16.msra.mxu0 %v1346
        %1402 = vmatmul.bf16.gmra.mxu0 %v1218
        %v1403 = vpop.f32.mrf.mxu0
        %v1404 = vadd.f32 %v1260, %v1403
        %v1405 = vpop.f32.mrf.mxu0
        %v1406 = vadd.f32 %v1260, %v1405
        %1407 = vmatmul.bf16.gmra.mxu0 %v1219
        %v1408 = vpop.f32.mrf.mxu0
        %v1409 = vadd.f32 %v1260, %v1408
        %v1410 = vpop.f32.mrf.mxu0
        %v1411 = vadd.f32 %v1260, %v1410
        %1412 = vmatmul.bf16.gmra.mxu0 %v1220
        %v1413 = vpop.f32.mrf.mxu0
        %v1414 = vadd.f32 %v1260, %v1413
        %v1415 = vpop.f32.mrf.mxu0
        %v1416 = vadd.f32 %v1260, %v1415
        %1417 = vmatmul.bf16.gmra.mxu0 %v1221
        %v1418 = vpop.f32.mrf.mxu0
        %v1419 = vadd.f32 %v1260, %v1418
        %v1420 = vpop.f32.mrf.mxu0
        %v1421 = vadd.f32 %v1260, %v1420
        %1422 = vmatmul.bf16.gmra.mxu0 %v1222
        %v1423 = vpop.f32.mrf.mxu0
        %v1424 = vadd.f32 %v1260, %v1423
        %v1425 = vpop.f32.mrf.mxu0
        %v1426 = vadd.f32 %v1260, %v1425
        %1427 = vmatmul.bf16.gmra.mxu0 %v1223
        %v1428 = vpop.f32.mrf.mxu0
        %v1429 = vadd.f32 %v1260, %v1428
        %v1430 = vpop.f32.mrf.mxu0
        %v1431 = vadd.f32 %v1260, %v1430
        %1432 = vmatmul.bf16.gmra.mxu0 %v1224
        %v1433 = vpop.f32.mrf.mxu0
        %v1434 = vadd.f32 %v1260, %v1433
        %v1435 = vpop.f32.mrf.mxu0
        %v1436 = vadd.f32 %v1260, %v1435
        %1437 = vmatmul.bf16.gmra.mxu0 %v1225
        %v1438 = vpop.f32.mrf.mxu0
        %v1439 = vadd.f32 %v1260, %v1438
        %v1440 = vpop.f32.mrf.mxu0
        %v1441 = vadd.f32 %v1260, %v1440
        %1442 = vdwg.mxu0
        %1443 = vmatpush.bf16.msra.mxu0 %v1368
        %1444 = vmatpush.bf16.msra.mxu0 %v1365
        %1445 = vmatpush.bf16.msra.mxu0 %v1362
        %1446 = vmatpush.bf16.msra.mxu0 %v1359
        %1447 = vmatpush.bf16.msra.mxu0 %v1356
        %1448 = vmatpush.bf16.msra.mxu0 %v1353
        %1449 = vmatpush.bf16.msra.mxu0 %v1350
        %1450 = vmatpush.bf16.msra.mxu0 %v1347
        %1451 = vmatmul.bf16.gmra.mxu0 %v1218
        %v1452 = vpop.f32.mrf.mxu0
        %v1453 = vadd.f32 %v1261, %v1452
        %v1454 = vpop.f32.mrf.mxu0
        %v1455 = vadd.f32 %v1261, %v1454
        %1456 = vmatmul.bf16.gmra.mxu0 %v1219
        %v1457 = vpop.f32.mrf.mxu0
        %v1458 = vadd.f32 %v1261, %v1457
        %v1459 = vpop.f32.mrf.mxu0
        %v1460 = vadd.f32 %v1261, %v1459
        %1461 = vmatmul.bf16.gmra.mxu0 %v1220
        %v1462 = vpop.f32.mrf.mxu0
        %v1463 = vadd.f32 %v1261, %v1462
        %v1464 = vpop.f32.mrf.mxu0
        %v1465 = vadd.f32 %v1261, %v1464
        %1466 = vmatmul.bf16.gmra.mxu0 %v1221
        %v1467 = vpop.f32.mrf.mxu0
        %v1468 = vadd.f32 %v1261, %v1467
        %v1469 = vpop.f32.mrf.mxu0
        %v1470 = vadd.f32 %v1261, %v1469
        %1471 = vmatmul.bf16.gmra.mxu0 %v1222
        %v1472 = vpop.f32.mrf.mxu0
        %v1473 = vadd.f32 %v1261, %v1472
        %v1474 = vpop.f32.mrf.mxu0
        %v1475 = vadd.f32 %v1261, %v1474
        %1476 = vmatmul.bf16.gmra.mxu0 %v1223
        %v1477 = vpop.f32.mrf.mxu0
        %v1478 = vadd.f32 %v1261, %v1477
        %v1479 = vpop.f32.mrf.mxu0
        %v1480 = vadd.f32 %v1261, %v1479
        %1481 = vmatmul.bf16.gmra.mxu0 %v1224
        %v1482 = vpop.f32.mrf.mxu0
        %v1483 = vadd.f32 %v1261, %v1482
        %v1484 = vpop.f32.mrf.mxu0
        %v1485 = vadd.f32 %v1261, %v1484
        %1486 = vmatmul.bf16.gmra.mxu0 %v1225
        %v1487 = vpop.f32.mrf.mxu0
        %v1488 = vadd.f32 %v1261, %v1487
        %v1489 = vpop.f32.mrf.mxu0
        %v1490 = vadd.f32 %v1261, %v1489
        %1491 = vdwg.mxu0
        %1492 = vmatpush.bf16.msra.mxu0 %v1369
        %1493 = vmatpush.bf16.msra.mxu0 %v1366
        %1494 = vmatpush.bf16.msra.mxu0 %v1363
        %1495 = vmatpush.bf16.msra.mxu0 %v1360
        %1496 = vmatpush.bf16.msra.mxu0 %v1357
        %1497 = vmatpush.bf16.msra.mxu0 %v1354
        %1498 = vmatpush.bf16.msra.mxu0 %v1351
        %1499 = vmatpush.bf16.msra.mxu0 %v1348
        %1500 = vmatmul.bf16.gmra.mxu0 %v1218
        %v1501 = vpop.f32.mrf.mxu0
        %v1502 = vadd.f32 %v1262, %v1501
        %v1503 = vpop.f32.mrf.mxu0
        %v1504 = vadd.f32 %v1262, %v1503
        %1505 = vmatmul.bf16.gmra.mxu0 %v1219
        %v1506 = vpop.f32.mrf.mxu0
        %v1507 = vadd.f32 %v1262, %v1506
        %v1508 = vpop.f32.mrf.mxu0
        %v1509 = vadd.f32 %v1262, %v1508
        %1510 = vmatmul.bf16.gmra.mxu0 %v1220
        %v1511 = vpop.f32.mrf.mxu0
        %v1512 = vadd.f32 %v1262, %v1511
        %v1513 = vpop.f32.mrf.mxu0
        %v1514 = vadd.f32 %v1262, %v1513
        %1515 = vmatmul.bf16.gmra.mxu0 %v1221
        %v1516 = vpop.f32.mrf.mxu0
        %v1517 = vadd.f32 %v1262, %v1516
        %v1518 = vpop.f32.mrf.mxu0
        %v1519 = vadd.f32 %v1262, %v1518
        %1520 = vmatmul.bf16.gmra.mxu0 %v1222
        %v1521 = vpop.f32.mrf.mxu0
        %v1522 = vadd.f32 %v1262, %v1521
        %v1523 = vpop.f32.mrf.mxu0
        %v1524 = vadd.f32 %v1262, %v1523
        %1525 = vmatmul.bf16.gmra.mxu0 %v1223
        %v1526 = vpop.f32.mrf.mxu0
        %v1527 = vadd.f32 %v1262, %v1526
        %v1528 = vpop.f32.mrf.mxu0
        %v1529 = vadd.f32 %v1262, %v1528
        %1530 = vmatmul.bf16.gmra.mxu0 %v1224
        %v1531 = vpop.f32.mrf.mxu0
        %v1532 = vadd.f32 %v1262, %v1531
        %v1533 = vpop.f32.mrf.mxu0
        %v1534 = vadd.f32 %v1262, %v1533
        %1535 = vmatmul.bf16.gmra.mxu0 %v1225
        %v1536 = vpop.f32.mrf.mxu0
        %v1537 = vadd.f32 %v1262, %v1536
        %v1538 = vpop.f32.mrf.mxu0
        %v1539 = vadd.f32 %v1262, %v1538
        %1540 = vdwg.mxu0
        %1541 = vst [vmem:[#allocation3] sm:$0xff] %v1404
        %1542 = vst [vmem:[#allocation3 + $0x8] sm:$0xff] %v1453
        %1543 = vst [vmem:[#allocation3 + $0x10] sm:$0xff] %v1502
        %1544 = vst [vmem:[#allocation3 + $0x18] sm:$0xff] %v1406
        %1545 = vst [vmem:[#allocation3 + $0x20] sm:$0xff] %v1455
        %1546 = vst [vmem:[#allocation3 + $0x28] sm:$0xff] %v1504
        %1547 = vst [vmem:[#allocation3 + $0x30] sm:$0xff] %v1409
        %1548 = vst [vmem:[#allocation3 + $0x38] sm:$0xff] %v1458
        %1549 = vst [vmem:[#allocation3 + $0x40] sm:$0xff] %v1507
        %1550 = vst [vmem:[#allocation3 + $0x48] sm:$0xff] %v1411
        %1551 = vst [vmem:[#allocation3 + $0x50] sm:$0xff] %v1460
        %1552 = vst [vmem:[#allocation3 + $0x58] sm:$0xff] %v1509
        %1553 = vst [vmem:[#allocation3 + $0x60] sm:$0xff] %v1414
        %1554 = vst [vmem:[#allocation3 + $0x68] sm:$0xff] %v1463
        %1555 = vst [vmem:[#allocation3 + $0x70] sm:$0xff] %v1512
        %1556 = vst [vmem:[#allocation3 + $0x78] sm:$0xff] %v1416
        %1557 = vst [vmem:[#allocation3 + $0x80] sm:$0xff] %v1465
        %1558 = vst [vmem:[#allocation3 + $0x88] sm:$0xff] %v1514
        %1559 = vst [vmem:[#allocation3 + $0x90] sm:$0xff] %v1419
        %1560 = vst [vmem:[#allocation3 + $0x98] sm:$0xff] %v1468
        %1561 = vst [vmem:[#allocation3 + $0xa0] sm:$0xff] %v1517
        %1562 = vst [vmem:[#allocation3 + $0xa8] sm:$0xff] %v1421
        %1563 = vst [vmem:[#allocation3 + $0xb0] sm:$0xff] %v1470
        %1564 = vst [vmem:[#allocation3 + $0xb8] sm:$0xff] %v1519
        %1565 = vst [vmem:[#allocation3 + $0xc0] sm:$0xff] %v1424
        %1566 = vst [vmem:[#allocation3 + $0xc8] sm:$0xff] %v1473
        %1567 = vst [vmem:[#allocation3 + $0xd0] sm:$0xff] %v1522
        %1568 = vst [vmem:[#allocation3 + $0xd8] sm:$0xff] %v1426
        %1569 = vst [vmem:[#allocation3 + $0xe0] sm:$0xff] %v1475
        %1570 = vst [vmem:[#allocation3 + $0xe8] sm:$0xff] %v1524
        %1571 = vst [vmem:[#allocation3 + $0xf0] sm:$0xff] %v1429
        %1572 = vst [vmem:[#allocation3 + $0xf8] sm:$0xff] %v1478
        %1573 = vst [vmem:[#allocation3 + $0x100] sm:$0xff] %v1527
        %1574 = vst [vmem:[#allocation3 + $0x108] sm:$0xff] %v1431
        %1575 = vst [vmem:[#allocation3 + $0x110] sm:$0xff] %v1480
        %1576 = vst [vmem:[#allocation3 + $0x118] sm:$0xff] %v1529
        %1577 = vst [vmem:[#allocation3 + $0x120] sm:$0xff] %v1434
        %1578 = vst [vmem:[#allocation3 + $0x128] sm:$0xff] %v1483
        %1579 = vst [vmem:[#allocation3 + $0x130] sm:$0xff] %v1532
        %1580 = vst [vmem:[#allocation3 + $0x138] sm:$0xff] %v1436
        %1581 = vst [vmem:[#allocation3 + $0x140] sm:$0xff] %v1485
        %1582 = vst [vmem:[#allocation3 + $0x148] sm:$0xff] %v1534
        %1583 = vst [vmem:[#allocation3 + $0x150] sm:$0xff] %v1439
        %1584 = vst [vmem:[#allocation3 + $0x158] sm:$0xff] %v1488
        %1585 = vst [vmem:[#allocation3 + $0x160] sm:$0xff] %v1537
        %1586 = vst [vmem:[#allocation3 + $0x168] sm:$0xff] %v1441
        %1587 = vst [vmem:[#allocation3 + $0x170] sm:$0xff] %v1490
        %1588 = vst [vmem:[#allocation3 + $0x178] sm:$0xff] %v1539
        %v1589 = vld [vmem:[%s767] sm:$0x1]
        %v1590 = vld [vmem:[#allocation3] sm:$0xff]
        %v1591 = vld [vmem:[#allocation3 + $0x18] sm:$0xff]
        %v1592 = vld [vmem:[#allocation3 + $0x30] sm:$0xff]
        %v1593 = vld [vmem:[#allocation3 + $0x48] sm:$0xff]
        %v1594 = vld [vmem:[#allocation3 + $0x60] sm:$0xff]
        %v1595 = vld [vmem:[#allocation3 + $0x78] sm:$0xff]
        %v1596 = vld [vmem:[#allocation3 + $0x90] sm:$0xff]
        %v1597 = vld [vmem:[#allocation3 + $0xa8] sm:$0xff]
        %v1598 = vld [vmem:[#allocation3 + $0xc0] sm:$0xff]
        %v1599 = vld [vmem:[#allocation3 + $0xd8] sm:$0xff]
        %v1600 = vld [vmem:[#allocation3 + $0xf0] sm:$0xff]
        %v1601 = vld [vmem:[#allocation3 + $0x108] sm:$0xff]
        %v1602 = vld [vmem:[#allocation3 + $0x120] sm:$0xff]
        %v1603 = vld [vmem:[#allocation3 + $0x138] sm:$0xff]
        %v1604 = vld [vmem:[#allocation3 + $0x150] sm:$0xff]
        %v1605 = vld [vmem:[#allocation3 + $0x168] sm:$0xff]
        %v1606 = vpack.c.bf16 %v1591, %v1590
        %v1607 = vpack.c.bf16 %v1593, %v1592
        %v1608 = vpack.c.bf16 %v1595, %v1594
        %v1609 = vpack.c.bf16 %v1597, %v1596
        %v1610 = vpack.c.bf16 %v1599, %v1598
        %v1611 = vpack.c.bf16 %v1601, %v1600
        %v1612 = vpack.c.bf16 %v1603, %v1602
        %v1613 = vpack.c.bf16 %v1605, %v1604
        %v1614 = vld [vmem:[#allocation3 + $0x8] sm:$0xff]
        %v1615 = vld [vmem:[#allocation3 + $0x20] sm:$0xff]
        %v1616 = vld [vmem:[#allocation3 + $0x38] sm:$0xff]
        %v1617 = vld [vmem:[#allocation3 + $0x50] sm:$0xff]
        %v1618 = vld [vmem:[#allocation3 + $0x68] sm:$0xff]
        %v1619 = vld [vmem:[#allocation3 + $0x80] sm:$0xff]
        %v1620 = vld [vmem:[#allocation3 + $0x98] sm:$0xff]
        %v1621 = vld [vmem:[#allocation3 + $0xb0] sm:$0xff]
        %v1622 = vld [vmem:[#allocation3 + $0xc8] sm:$0xff]
        %v1623 = vld [vmem:[#allocation3 + $0xe0] sm:$0xff]
        %v1624 = vld [vmem:[#allocation3 + $0xf8] sm:$0xff]
        %v1625 = vld [vmem:[#allocation3 + $0x110] sm:$0xff]
        %v1626 = vld [vmem:[#allocation3 + $0x128] sm:$0xff]
        %v1627 = vld [vmem:[#allocation3 + $0x140] sm:$0xff]
        %v1628 = vld [vmem:[#allocation3 + $0x158] sm:$0xff]
        %v1629 = vld [vmem:[#allocation3 + $0x170] sm:$0xff]
        %v1630 = vpack.c.bf16 %v1615, %v1614
        %v1631 = vpack.c.bf16 %v1617, %v1616
        %v1632 = vpack.c.bf16 %v1619, %v1618
        %v1633 = vpack.c.bf16 %v1621, %v1620
        %v1634 = vpack.c.bf16 %v1623, %v1622
        %v1635 = vpack.c.bf16 %v1625, %v1624
        %v1636 = vpack.c.bf16 %v1627, %v1626
        %v1637 = vpack.c.bf16 %v1629, %v1628
        %v1638 = vld [vmem:[#allocation3 + $0x10] sm:$0xff]
        %v1639 = vld [vmem:[#allocation3 + $0x28] sm:$0xff]
        %v1640 = vld [vmem:[#allocation3 + $0x40] sm:$0xff]
        %v1641 = vld [vmem:[#allocation3 + $0x58] sm:$0xff]
        %v1642 = vld [vmem:[#allocation3 + $0x70] sm:$0xff]
        %v1643 = vld [vmem:[#allocation3 + $0x88] sm:$0xff]
        %v1644 = vld [vmem:[#allocation3 + $0xa0] sm:$0xff]
        %v1645 = vld [vmem:[#allocation3 + $0xb8] sm:$0xff]
        %v1646 = vld [vmem:[#allocation3 + $0xd0] sm:$0xff]
        %v1647 = vld [vmem:[#allocation3 + $0xe8] sm:$0xff]
        %v1648 = vld [vmem:[#allocation3 + $0x100] sm:$0xff]
        %v1649 = vld [vmem:[#allocation3 + $0x118] sm:$0xff]
        %v1650 = vld [vmem:[#allocation3 + $0x130] sm:$0xff]
        %v1651 = vld [vmem:[#allocation3 + $0x148] sm:$0xff]
        %v1652 = vld [vmem:[#allocation3 + $0x160] sm:$0xff]
        %v1653 = vld [vmem:[#allocation3 + $0x178] sm:$0xff]
        %v1654 = vpack.c.bf16 %v1639, %v1638
        %v1655 = vpack.c.bf16 %v1641, %v1640
        %v1656 = vpack.c.bf16 %v1643, %v1642
        %v1657 = vpack.c.bf16 %v1645, %v1644
        %v1658 = vpack.c.bf16 %v1647, %v1646
        %v1659 = vpack.c.bf16 %v1649, %v1648
        %v1660 = vpack.c.bf16 %v1651, %v1650
        %v1661 = vpack.c.bf16 %v1653, %v1652
        %v1663 = vperm.slane %v1217, 0
        %vm1665 = vcmask 523264
        %v1667 = vsel %vm1665, %v1606, 0
        %v1670 = vsel %vm1665, %v1607, 0
        %v1673 = vsel %vm1665, %v1608, 0
        %v1676 = vsel %vm1665, %v1609, 0
        %v1679 = vsel %vm1665, %v1610, 0
        %v1682 = vsel %vm1665, %v1611, 0
        %v1685 = vsel %vm1665, %v1612, 0
        %v1688 = vsel %vm1665, %v1613, 0
        %v1691 = vsel %vm1665, %v1630, 0
        %v1694 = vsel %vm1665, %v1631, 0
        %v1697 = vsel %vm1665, %v1632, 0
        %v1700 = vsel %vm1665, %v1633, 0
        %v1703 = vsel %vm1665, %v1634, 0
        %v1706 = vsel %vm1665, %v1635, 0
        %v1709 = vsel %vm1665, %v1636, 0
        %v1712 = vsel %vm1665, %v1637, 0
        %1714 = vmatpush.bf16.xpose.msra.mxu0 %v1712
        %1715 = vmatpush.bf16.xpose.msra.mxu0 %v1709
        %1716 = vmatpush.bf16.xpose.msra.mxu0 %v1706
        %1717 = vmatpush.bf16.xpose.msra.mxu0 %v1703
        %1718 = vmatpush.bf16.xpose.msra.mxu0 %v1700
        %1719 = vmatpush.bf16.xpose.msra.mxu0 %v1697
        %1720 = vmatpush.bf16.xpose.msra.mxu0 %v1694
        %1721 = vmatpush.bf16.xpose.msra.mxu0 %v1691
        %1722 = vmatmul.bf16.gmra.mxu0 %v1667
        %v1723 = vpop.f32.mrf.mxu0
        %v1724 = vadd.f32 %v1663, %v1723
        %v1725 = vpop.f32.mrf.mxu0
        %v1726 = vadd.f32 %v1663, %v1725
        %1727 = vmatmul.bf16.gmra.mxu0 %v1670
        %v1728 = vpop.f32.mrf.mxu0
        %v1729 = vadd.f32 %v1663, %v1728
        %v1730 = vpop.f32.mrf.mxu0
        %v1731 = vadd.f32 %v1663, %v1730
        %1732 = vmatmul.bf16.gmra.mxu0 %v1673
        %v1733 = vpop.f32.mrf.mxu0
        %v1734 = vadd.f32 %v1663, %v1733
        %v1735 = vpop.f32.mrf.mxu0
        %v1736 = vadd.f32 %v1663, %v1735
        %1737 = vmatmul.bf16.gmra.mxu0 %v1676
        %v1738 = vpop.f32.mrf.mxu0
        %v1739 = vadd.f32 %v1663, %v1738
        %v1740 = vpop.f32.mrf.mxu0
        %v1741 = vadd.f32 %v1663, %v1740
        %1742 = vmatmul.bf16.gmra.mxu0 %v1679
        %v1743 = vpop.f32.mrf.mxu0
        %v1744 = vadd.f32 %v1663, %v1743
        %v1745 = vpop.f32.mrf.mxu0
        %v1746 = vadd.f32 %v1663, %v1745
        %1747 = vmatmul.bf16.gmra.mxu0 %v1682
        %v1748 = vpop.f32.mrf.mxu0
        %v1749 = vadd.f32 %v1663, %v1748
        %v1750 = vpop.f32.mrf.mxu0
        %v1751 = vadd.f32 %v1663, %v1750
        %1752 = vmatmul.bf16.gmra.mxu0 %v1685
        %v1753 = vpop.f32.mrf.mxu0
        %v1754 = vadd.f32 %v1663, %v1753
        %v1755 = vpop.f32.mrf.mxu0
        %v1756 = vadd.f32 %v1663, %v1755
        %1757 = vmatmul.bf16.gmra.mxu0 %v1688
        %v1758 = vpop.f32.mrf.mxu0
        %v1759 = vadd.f32 %v1663, %v1758
        %v1760 = vpop.f32.mrf.mxu0
        %v1761 = vadd.f32 %v1663, %v1760
        %1762 = vdwg.mxu0
        %1763 = vmax.xlane.f32.xlu0 %v1724
        %v1764 = vpop.xlane.xlu0 %1763
        %1765 = vmax.xlane.f32.xlu0 %v1726
        %v1766 = vpop.xlane.xlu0 %1765
        %1767 = vmax.xlane.f32.xlu0 %v1729
        %v1768 = vpop.xlane.xlu0 %1767
        %1769 = vmax.xlane.f32.xlu0 %v1731
        %v1770 = vpop.xlane.xlu0 %1769
        %1771 = vmax.xlane.f32.xlu0 %v1734
        %v1772 = vpop.xlane.xlu0 %1771
        %1773 = vmax.xlane.f32.xlu0 %v1736
        %v1774 = vpop.xlane.xlu0 %1773
        %1775 = vmax.xlane.f32.xlu0 %v1739
        %v1776 = vpop.xlane.xlu0 %1775
        %1777 = vmax.xlane.f32.xlu0 %v1741
        %v1778 = vpop.xlane.xlu0 %1777
        %1779 = vmax.xlane.f32.xlu0 %v1744
        %v1780 = vpop.xlane.xlu0 %1779
        %1781 = vmax.xlane.f32.xlu0 %v1746
        %v1782 = vpop.xlane.xlu0 %1781
        %1783 = vmax.xlane.f32.xlu0 %v1749
        %v1784 = vpop.xlane.xlu0 %1783
        %1785 = vmax.xlane.f32.xlu0 %v1751
        %v1786 = vpop.xlane.xlu0 %1785
        %1787 = vmax.xlane.f32.xlu0 %v1754
        %v1788 = vpop.xlane.xlu0 %1787
        %1789 = vmax.xlane.f32.xlu0 %v1756
        %v1790 = vpop.xlane.xlu0 %1789
        %1791 = vmax.xlane.f32.xlu0 %v1759
        %v1792 = vpop.xlane.xlu0 %1791
        %1793 = vmax.xlane.f32.xlu0 %v1761
        %v1794 = vpop.xlane.xlu0 %1793
        %v1795 = vsub.f32 %v1724, %v1764
        %v1796 = vsub.f32 %v1726, %v1766
        %v1797 = vsub.f32 %v1729, %v1768
        %v1798 = vsub.f32 %v1731, %v1770
        %v1799 = vsub.f32 %v1734, %v1772
        %v1800 = vsub.f32 %v1736, %v1774
        %v1801 = vsub.f32 %v1739, %v1776
        %v1802 = vsub.f32 %v1741, %v1778
        %v1803 = vsub.f32 %v1744, %v1780
        %v1804 = vsub.f32 %v1746, %v1782
        %v1805 = vsub.f32 %v1749, %v1784
        %v1806 = vsub.f32 %v1751, %v1786
        %v1807 = vsub.f32 %v1754, %v1788
        %v1808 = vsub.f32 %v1756, %v1790
        %v1809 = vsub.f32 %v1759, %v1792
        %v1810 = vsub.f32 %v1761, %v1794
        %v1811 = vmul.f32 %v1795, 1.442695
        %v1812 = vpow.pop %v1811
        %v1813 = vmul.f32 %v1796, 1.442695
        %v1814 = vpow.pop %v1813
        %v1815 = vmul.f32 %v1797, 1.442695
        %v1816 = vpow.pop %v1815
        %v1817 = vmul.f32 %v1798, 1.442695
        %v1818 = vpow.pop %v1817
        %v1819 = vmul.f32 %v1799, 1.442695
        %v1820 = vpow.pop %v1819
        %v1821 = vmul.f32 %v1800, 1.442695
        %v1822 = vpow.pop %v1821
        %v1823 = vmul.f32 %v1801, 1.442695
        %v1824 = vpow.pop %v1823
        %v1825 = vmul.f32 %v1802, 1.442695
        %v1826 = vpow.pop %v1825
        %v1827 = vmul.f32 %v1803, 1.442695
        %v1828 = vpow.pop %v1827
        %v1829 = vmul.f32 %v1804, 1.442695
        %v1830 = vpow.pop %v1829
        %v1831 = vmul.f32 %v1805, 1.442695
        %v1832 = vpow.pop %v1831
        %v1833 = vmul.f32 %v1806, 1.442695
        %v1834 = vpow.pop %v1833
        %v1835 = vmul.f32 %v1807, 1.442695
        %v1836 = vpow.pop %v1835
        %v1837 = vmul.f32 %v1808, 1.442695
        %v1838 = vpow.pop %v1837
        %v1839 = vmul.f32 %v1809, 1.442695
        %v1840 = vpow.pop %v1839
        %v1841 = vmul.f32 %v1810, 1.442695
        %v1842 = vpow.pop %v1841
        %1843 = vadd.xlane.f32.xlu0 %v1812
        %v1844 = vpop.xlane.xlu0 %1843
        %1845 = vadd.xlane.f32.xlu0 %v1814
        %v1846 = vpop.xlane.xlu0 %1845
        %1847 = vadd.xlane.f32.xlu0 %v1816
        %v1848 = vpop.xlane.xlu0 %1847
        %1849 = vadd.xlane.f32.xlu0 %v1818
        %v1850 = vpop.xlane.xlu0 %1849
        %1851 = vadd.xlane.f32.xlu0 %v1820
        %v1852 = vpop.xlane.xlu0 %1851
        %1853 = vadd.xlane.f32.xlu0 %v1822
        %v1854 = vpop.xlane.xlu0 %1853
        %1855 = vadd.xlane.f32.xlu0 %v1824
        %v1856 = vpop.xlane.xlu0 %1855
        %1857 = vadd.xlane.f32.xlu0 %v1826
        %v1858 = vpop.xlane.xlu0 %1857
        %1859 = vadd.xlane.f32.xlu0 %v1828
        %v1860 = vpop.xlane.xlu0 %1859
        %1861 = vadd.xlane.f32.xlu0 %v1830
        %v1862 = vpop.xlane.xlu0 %1861
        %1863 = vadd.xlane.f32.xlu0 %v1832
        %v1864 = vpop.xlane.xlu0 %1863
        %1865 = vadd.xlane.f32.xlu0 %v1834
        %v1866 = vpop.xlane.xlu0 %1865
        %1867 = vadd.xlane.f32.xlu0 %v1836
        %v1868 = vpop.xlane.xlu0 %1867
        %1869 = vadd.xlane.f32.xlu0 %v1838
        %v1870 = vpop.xlane.xlu0 %1869
        %1871 = vadd.xlane.f32.xlu0 %v1840
        %v1872 = vpop.xlane.xlu0 %1871
        %1873 = vadd.xlane.f32.xlu0 %v1842
        %v1874 = vpop.xlane.xlu0 %1873
        %v1875 = vrcp.pop %v1844
        %v1876 = vrcp.pop %v1846
        %v1877 = vrcp.pop %v1848
        %v1878 = vrcp.pop %v1850
        %v1879 = vrcp.pop %v1852
        %v1880 = vrcp.pop %v1854
        %v1881 = vrcp.pop %v1856
        %v1882 = vrcp.pop %v1858
        %v1883 = vrcp.pop %v1860
        %v1884 = vrcp.pop %v1862
        %v1885 = vrcp.pop %v1864
        %v1886 = vrcp.pop %v1866
        %v1887 = vrcp.pop %v1868
        %v1888 = vrcp.pop %v1870
        %v1889 = vrcp.pop %v1872
        %v1890 = vrcp.pop %v1874
        %v1891 = vmul.f32 %v1812, %v1875
        %v1892 = vmul.f32 %v1814, %v1876
        %v1893 = vmul.f32 %v1816, %v1877
        %v1894 = vmul.f32 %v1818, %v1878
        %v1895 = vmul.f32 %v1820, %v1879
        %v1896 = vmul.f32 %v1822, %v1880
        %v1897 = vmul.f32 %v1824, %v1881
        %v1898 = vmul.f32 %v1826, %v1882
        %v1899 = vmul.f32 %v1828, %v1883
        %v1900 = vmul.f32 %v1830, %v1884
        %v1901 = vmul.f32 %v1832, %v1885
        %v1902 = vmul.f32 %v1834, %v1886
        %v1903 = vmul.f32 %v1836, %v1887
        %v1904 = vmul.f32 %v1838, %v1888
        %v1905 = vmul.f32 %v1840, %v1889
        %v1906 = vmul.f32 %v1842, %v1890
        %v1907 = vpack.c.bf16 %v1892, %v1891
        %v1908 = vpack.c.bf16 %v1894, %v1893
        %v1909 = vpack.c.bf16 %v1896, %v1895
        %v1910 = vpack.c.bf16 %v1898, %v1897
        %v1911 = vpack.c.bf16 %v1900, %v1899
        %v1912 = vpack.c.bf16 %v1902, %v1901
        %v1913 = vpack.c.bf16 %v1904, %v1903
        %v1914 = vpack.c.bf16 %v1906, %v1905
        %1915 = vmatpush.bf16.msra.mxu0 %v1661
        %1916 = vmatpush.bf16.msra.mxu0 %v1660
        %1917 = vmatpush.bf16.msra.mxu0 %v1659
        %1918 = vmatpush.bf16.msra.mxu0 %v1658
        %1919 = vmatpush.bf16.msra.mxu0 %v1657
        %1920 = vmatpush.bf16.msra.mxu0 %v1656
        %1921 = vmatpush.bf16.msra.mxu0 %v1655
        %1922 = vmatpush.bf16.msra.mxu0 %v1654
        %1923 = vmatmul.bf16.gmra.mxu0 %v1907
        %v1924 = vpop.f32.mrf.mxu0
        %v1925 = vadd.f32 0.0, %v1924
        %v1926 = vpop.f32.mrf.mxu0
        %v1927 = vadd.f32 0.0, %v1926
        %1928 = vmatmul.bf16.gmra.mxu0 %v1908
        %v1929 = vpop.f32.mrf.mxu0
        %v1930 = vadd.f32 0.0, %v1929
        %v1931 = vpop.f32.mrf.mxu0
        %v1932 = vadd.f32 0.0, %v1931
        %1933 = vmatmul.bf16.gmra.mxu0 %v1909
        %v1934 = vpop.f32.mrf.mxu0
        %v1935 = vadd.f32 0.0, %v1934
        %v1936 = vpop.f32.mrf.mxu0
        %v1937 = vadd.f32 0.0, %v1936
        %1938 = vmatmul.bf16.gmra.mxu0 %v1910
        %v1939 = vpop.f32.mrf.mxu0
        %v1940 = vadd.f32 0.0, %v1939
        %v1941 = vpop.f32.mrf.mxu0
        %v1942 = vadd.f32 0.0, %v1941
        %1943 = vmatmul.bf16.gmra.mxu0 %v1911
        %v1944 = vpop.f32.mrf.mxu0
        %v1945 = vadd.f32 0.0, %v1944
        %v1946 = vpop.f32.mrf.mxu0
        %v1947 = vadd.f32 0.0, %v1946
        %1948 = vmatmul.bf16.gmra.mxu0 %v1912
        %v1949 = vpop.f32.mrf.mxu0
        %v1950 = vadd.f32 0.0, %v1949
        %v1951 = vpop.f32.mrf.mxu0
        %v1952 = vadd.f32 0.0, %v1951
        %1953 = vmatmul.bf16.gmra.mxu0 %v1913
        %v1954 = vpop.f32.mrf.mxu0
        %v1955 = vadd.f32 0.0, %v1954
        %v1956 = vpop.f32.mrf.mxu0
        %v1957 = vadd.f32 0.0, %v1956
        %1958 = vmatmul.bf16.gmra.mxu0 %v1914
        %v1959 = vpop.f32.mrf.mxu0
        %v1960 = vadd.f32 0.0, %v1959
        %v1961 = vpop.f32.mrf.mxu0
        %v1962 = vadd.f32 0.0, %v1961
        %1963 = vdwg.mxu0
        %v1964 = vpack.c.bf16 %v1927, %v1925
        %v1965 = vpack.c.bf16 %v1932, %v1930
        %v1966 = vpack.c.bf16 %v1937, %v1935
        %v1967 = vpack.c.bf16 %v1942, %v1940
        %v1968 = vpack.c.bf16 %v1947, %v1945
        %v1969 = vpack.c.bf16 %v1952, %v1950
        %v1970 = vpack.c.bf16 %v1957, %v1955
        %v1971 = vpack.c.bf16 %v1962, %v1960
        %v1972 = vld [vmem:[%s764] sm:$0xf]
        %v1973 = vld [vmem:[%s764 + $0x4] sm:$0xf]
        %v1974 = vld [vmem:[%s764 + $0x8] sm:$0xf]
        %v1975 = vld [vmem:[%s764 + $0xc] sm:$0xf]
        %v1976 = vld [vmem:[%s764 + $0x10] sm:$0xf]
        %v1977 = vld [vmem:[%s764 + $0x14] sm:$0xf]
        %v1978 = vld [vmem:[%s764 + $0x18] sm:$0xf]
        %v1979 = vld [vmem:[%s764 + $0x1c] sm:$0xf]
        %v1988 = vunpack.c.l.b16 %v1972
        %v1989 = vunpack.c.l.b16 %v1973
        %v1990 = vunpack.c.l.b16 %v1974
        %v1991 = vunpack.c.l.b16 %v1975
        %v1992 = vunpack.c.l.b16 %v1976
        %v1993 = vunpack.c.l.b16 %v1977
        %v1994 = vunpack.c.l.b16 %v1978
        %v1995 = vunpack.c.l.b16 %v1979
        %v1996 = vpack.c.b16 %v1989, %v1988
        %v1997 = vpack.c.b16 %v1991, %v1990
        %v1998 = vpack.c.b16 %v1993, %v1992
        %v1999 = vpack.c.b16 %v1995, %v1994
        %v2005 = vsel %vm1665, %v1964, 0
        %v2008 = vsel %vm1665, %v1965, 0
        %v2011 = vsel %vm1665, %v1966, 0
        %v2014 = vsel %vm1665, %v1967, 0
        %v2017 = vsel %vm1665, %v1968, 0
        %v2020 = vsel %vm1665, %v1969, 0
        %v2023 = vsel %vm1665, %v1970, 0
        %v2026 = vsel %vm1665, %v1971, 0
        %2028 = vmatpush.bf16.msra.mxu0 0
        %2029 = vmatpush.bf16.msra.mxu0 0
        %2030 = vmatpush.bf16.msra.mxu0 0
        %2031 = vmatpush.bf16.msra.mxu0 0
        %2032 = vmatpush.bf16.msra.mxu0 %v1999
        %2033 = vmatpush.bf16.msra.mxu0 %v1998
        %2034 = vmatpush.bf16.msra.mxu0 %v1997
        %2035 = vmatpush.bf16.msra.mxu0 %v1996
        %2036 = vmatmul.bf16.gmra.mxu0 %v2005
        %v2037 = vpop.f32.mrf.mxu0
        %v2038 = vadd.f32 0.0, %v2037
        %v2039 = vpop.f32.mrf.mxu0
        %v2040 = vadd.f32 0.0, %v2039
        %2041 = vmatmul.bf16.gmra.mxu0 %v2008
        %v2042 = vpop.f32.mrf.mxu0
        %v2043 = vadd.f32 0.0, %v2042
        %v2044 = vpop.f32.mrf.mxu0
        %v2045 = vadd.f32 0.0, %v2044
        %2046 = vmatmul.bf16.gmra.mxu0 %v2011
        %v2047 = vpop.f32.mrf.mxu0
        %v2048 = vadd.f32 0.0, %v2047
        %v2049 = vpop.f32.mrf.mxu0
        %v2050 = vadd.f32 0.0, %v2049
        %2051 = vmatmul.bf16.gmra.mxu0 %v2014
        %v2052 = vpop.f32.mrf.mxu0
        %v2053 = vadd.f32 0.0, %v2052
        %v2054 = vpop.f32.mrf.mxu0
        %v2055 = vadd.f32 0.0, %v2054
        %2056 = vmatmul.bf16.gmra.mxu0 %v2017
        %v2057 = vpop.f32.mrf.mxu0
        %v2058 = vadd.f32 0.0, %v2057
        %v2059 = vpop.f32.mrf.mxu0
        %v2060 = vadd.f32 0.0, %v2059
        %2061 = vmatmul.bf16.gmra.mxu0 %v2020
        %v2062 = vpop.f32.mrf.mxu0
        %v2063 = vadd.f32 0.0, %v2062
        %v2064 = vpop.f32.mrf.mxu0
        %v2065 = vadd.f32 0.0, %v2064
        %2066 = vmatmul.bf16.gmra.mxu0 %v2023
        %v2067 = vpop.f32.mrf.mxu0
        %v2068 = vadd.f32 0.0, %v2067
        %v2069 = vpop.f32.mrf.mxu0
        %v2070 = vadd.f32 0.0, %v2069
        %2071 = vmatmul.bf16.gmra.mxu0 %v2026
        %v2072 = vpop.f32.mrf.mxu0
        %v2073 = vadd.f32 0.0, %v2072
        %v2074 = vpop.f32.mrf.mxu0
        %v2075 = vadd.f32 0.0, %v2074
        %2076 = vdwg.mxu0
        %v2078 = vperm.slane %v1589, 0
        %v2080 = vadd.f32 %v2078, %v2038
        %v2081 = vadd.f32 %v2078, %v2040
        %v2082 = vadd.f32 %v2078, %v2043
        %v2083 = vadd.f32 %v2078, %v2045
        %v2084 = vadd.f32 %v2078, %v2048
        %v2085 = vadd.f32 %v2078, %v2050
        %v2086 = vadd.f32 %v2078, %v2053
        %v2087 = vadd.f32 %v2078, %v2055
        %v2088 = vadd.f32 %v2078, %v2058
        %v2089 = vadd.f32 %v2078, %v2060
        %v2090 = vadd.f32 %v2078, %v2063
        %v2091 = vadd.f32 %v2078, %v2065
        %v2092 = vadd.f32 %v2078, %v2068
        %v2093 = vadd.f32 %v2078, %v2070
        %v2094 = vadd.f32 %v2078, %v2073
        %v2095 = vadd.f32 %v2078, %v2075
        %2104 = vrot.lane.b32.xlu0 %v1606, 64
        %v2105 = vpop.permute.xlu0 %2104
        %2106 = vrot.lane.b32.xlu0 %v1607, 64
        %v2107 = vpop.permute.xlu0 %2106
        %2108 = vrot.lane.b32.xlu0 %v1608, 64
        %v2109 = vpop.permute.xlu0 %2108
        %2110 = vrot.lane.b32.xlu0 %v1609, 64
        %v2111 = vpop.permute.xlu0 %2110
        %2112 = vrot.lane.b32.xlu0 %v1610, 64
        %v2113 = vpop.permute.xlu0 %2112
        %2114 = vrot.lane.b32.xlu0 %v1611, 64
        %v2115 = vpop.permute.xlu0 %2114
        %2116 = vrot.lane.b32.xlu0 %v1612, 64
        %v2117 = vpop.permute.xlu0 %2116
        %2118 = vrot.lane.b32.xlu0 %v1613, 64
        %v2119 = vpop.permute.xlu0 %2118
        %2128 = vrot.lane.b32.xlu0 %v1630, 64
        %v2129 = vpop.permute.xlu0 %2128
        %2130 = vrot.lane.b32.xlu0 %v1631, 64
        %v2131 = vpop.permute.xlu0 %2130
        %2132 = vrot.lane.b32.xlu0 %v1632, 64
        %v2133 = vpop.permute.xlu0 %2132
        %2134 = vrot.lane.b32.xlu0 %v1633, 64
        %v2135 = vpop.permute.xlu0 %2134
        %2136 = vrot.lane.b32.xlu0 %v1634, 64
        %v2137 = vpop.permute.xlu0 %2136
        %2138 = vrot.lane.b32.xlu0 %v1635, 64
        %v2139 = vpop.permute.xlu0 %2138
        %2140 = vrot.lane.b32.xlu0 %v1636, 64
        %v2141 = vpop.permute.xlu0 %2140
        %2142 = vrot.lane.b32.xlu0 %v1637, 64
        %v2143 = vpop.permute.xlu0 %2142
        %v2145 = vsel %vm1665, %v2105, 0
        %v2148 = vsel %vm1665, %v2107, 0
        %v2151 = vsel %vm1665, %v2109, 0
        %v2154 = vsel %vm1665, %v2111, 0
        %v2157 = vsel %vm1665, %v2113, 0
        %v2160 = vsel %vm1665, %v2115, 0
        %v2163 = vsel %vm1665, %v2117, 0
        %v2166 = vsel %vm1665, %v2119, 0
        %v2169 = vsel %vm1665, %v2129, 0
        %v2172 = vsel %vm1665, %v2131, 0
        %v2175 = vsel %vm1665, %v2133, 0
        %v2178 = vsel %vm1665, %v2135, 0
        %v2181 = vsel %vm1665, %v2137, 0
        %v2184 = vsel %vm1665, %v2139, 0
        %v2187 = vsel %vm1665, %v2141, 0
        %v2190 = vsel %vm1665, %v2143, 0
        %2192 = vmatpush.bf16.xpose.msra.mxu0 %v2190
        %2193 = vmatpush.bf16.xpose.msra.mxu0 %v2187
        %2194 = vmatpush.bf16.xpose.msra.mxu0 %v2184
        %2195 = vmatpush.bf16.xpose.msra.mxu0 %v2181
        %2196 = vmatpush.bf16.xpose.msra.mxu0 %v2178
        %2197 = vmatpush.bf16.xpose.msra.mxu0 %v2175
        %2198 = vmatpush.bf16.xpose.msra.mxu0 %v2172
        %2199 = vmatpush.bf16.xpose.msra.mxu0 %v2169
        %2200 = vmatmul.bf16.gmra.mxu0 %v2145
        %v2201 = vpop.f32.mrf.mxu0
        %v2202 = vadd.f32 %v1663, %v2201
        %v2203 = vpop.f32.mrf.mxu0
        %v2204 = vadd.f32 %v1663, %v2203
        %2205 = vmatmul.bf16.gmra.mxu0 %v2148
        %v2206 = vpop.f32.mrf.mxu0
        %v2207 = vadd.f32 %v1663, %v2206
        %v2208 = vpop.f32.mrf.mxu0
        %v2209 = vadd.f32 %v1663, %v2208
        %2210 = vmatmul.bf16.gmra.mxu0 %v2151
        %v2211 = vpop.f32.mrf.mxu0
        %v2212 = vadd.f32 %v1663, %v2211
        %v2213 = vpop.f32.mrf.mxu0
        %v2214 = vadd.f32 %v1663, %v2213
        %2215 = vmatmul.bf16.gmra.mxu0 %v2154
        %v2216 = vpop.f32.mrf.mxu0
        %v2217 = vadd.f32 %v1663, %v2216
        %v2218 = vpop.f32.mrf.mxu0
        %v2219 = vadd.f32 %v1663, %v2218
        %2220 = vmatmul.bf16.gmra.mxu0 %v2157
        %v2221 = vpop.f32.mrf.mxu0
        %v2222 = vadd.f32 %v1663, %v2221
        %v2223 = vpop.f32.mrf.mxu0
        %v2224 = vadd.f32 %v1663, %v2223
        %2225 = vmatmul.bf16.gmra.mxu0 %v2160
        %v2226 = vpop.f32.mrf.mxu0
        %v2227 = vadd.f32 %v1663, %v2226
        %v2228 = vpop.f32.mrf.mxu0
        %v2229 = vadd.f32 %v1663, %v2228
        %2230 = vmatmul.bf16.gmra.mxu0 %v2163
        %v2231 = vpop.f32.mrf.mxu0
        %v2232 = vadd.f32 %v1663, %v2231
        %v2233 = vpop.f32.mrf.mxu0
        %v2234 = vadd.f32 %v1663, %v2233
        %2235 = vmatmul.bf16.gmra.mxu0 %v2166
        %v2236 = vpop.f32.mrf.mxu0
        %v2237 = vadd.f32 %v1663, %v2236
        %v2238 = vpop.f32.mrf.mxu0
        %v2239 = vadd.f32 %v1663, %v2238
        %2240 = vdwg.mxu0
        %2241 = vmax.xlane.f32.xlu0 %v2202
        %v2242 = vpop.xlane.xlu0 %2241
        %2243 = vmax.xlane.f32.xlu0 %v2204
        %v2244 = vpop.xlane.xlu0 %2243
        %2245 = vmax.xlane.f32.xlu0 %v2207
        %v2246 = vpop.xlane.xlu0 %2245
        %2247 = vmax.xlane.f32.xlu0 %v2209
        %v2248 = vpop.xlane.xlu0 %2247
        %2249 = vmax.xlane.f32.xlu0 %v2212
        %v2250 = vpop.xlane.xlu0 %2249
        %2251 = vmax.xlane.f32.xlu0 %v2214
        %v2252 = vpop.xlane.xlu0 %2251
        %2253 = vmax.xlane.f32.xlu0 %v2217
        %v2254 = vpop.xlane.xlu0 %2253
        %2255 = vmax.xlane.f32.xlu0 %v2219
        %v2256 = vpop.xlane.xlu0 %2255
        %2257 = vmax.xlane.f32.xlu0 %v2222
        %v2258 = vpop.xlane.xlu0 %2257
        %2259 = vmax.xlane.f32.xlu0 %v2224
        %v2260 = vpop.xlane.xlu0 %2259
        %2261 = vmax.xlane.f32.xlu0 %v2227
        %v2262 = vpop.xlane.xlu0 %2261
        %2263 = vmax.xlane.f32.xlu0 %v2229
        %v2264 = vpop.xlane.xlu0 %2263
        %2265 = vmax.xlane.f32.xlu0 %v2232
        %v2266 = vpop.xlane.xlu0 %2265
        %2267 = vmax.xlane.f32.xlu0 %v2234
        %v2268 = vpop.xlane.xlu0 %2267
        %2269 = vmax.xlane.f32.xlu0 %v2237
        %v2270 = vpop.xlane.xlu0 %2269
        %2271 = vmax.xlane.f32.xlu0 %v2239
        %v2272 = vpop.xlane.xlu0 %2271
        %v2273 = vsub.f32 %v2202, %v2242
        %v2274 = vsub.f32 %v2204, %v2244
        %v2275 = vsub.f32 %v2207, %v2246
        %v2276 = vsub.f32 %v2209, %v2248
        %v2277 = vsub.f32 %v2212, %v2250
        %v2278 = vsub.f32 %v2214, %v2252
        %v2279 = vsub.f32 %v2217, %v2254
        %v2280 = vsub.f32 %v2219, %v2256
        %v2281 = vsub.f32 %v2222, %v2258
        %v2282 = vsub.f32 %v2224, %v2260
        %v2283 = vsub.f32 %v2227, %v2262
        %v2284 = vsub.f32 %v2229, %v2264
        %v2285 = vsub.f32 %v2232, %v2266
        %v2286 = vsub.f32 %v2234, %v2268
        %v2287 = vsub.f32 %v2237, %v2270
        %v2288 = vsub.f32 %v2239, %v2272
        %v2289 = vmul.f32 %v2273, 1.442695
        %v2290 = vpow.pop %v2289
        %v2291 = vmul.f32 %v2274, 1.442695
        %v2292 = vpow.pop %v2291
        %v2293 = vmul.f32 %v2275, 1.442695
        %v2294 = vpow.pop %v2293
        %v2295 = vmul.f32 %v2276, 1.442695
        %v2296 = vpow.pop %v2295
        %v2297 = vmul.f32 %v2277, 1.442695
        %v2298 = vpow.pop %v2297
        %v2299 = vmul.f32 %v2278, 1.442695
        %v2300 = vpow.pop %v2299
        %v2301 = vmul.f32 %v2279, 1.442695
        %v2302 = vpow.pop %v2301
        %v2303 = vmul.f32 %v2280, 1.442695
        %v2304 = vpow.pop %v2303
        %v2305 = vmul.f32 %v2281, 1.442695
        %v2306 = vpow.pop %v2305
        %v2307 = vmul.f32 %v2282, 1.442695
        %v2308 = vpow.pop %v2307
        %v2309 = vmul.f32 %v2283, 1.442695
        %v2310 = vpow.pop %v2309
        %v2311 = vmul.f32 %v2284, 1.442695
        %v2312 = vpow.pop %v2311
        %v2313 = vmul.f32 %v2285, 1.442695
        %v2314 = vpow.pop %v2313
        %v2315 = vmul.f32 %v2286, 1.442695
        %v2316 = vpow.pop %v2315
        %v2317 = vmul.f32 %v2287, 1.442695
        %v2318 = vpow.pop %v2317
        %v2319 = vmul.f32 %v2288, 1.442695
        %v2320 = vpow.pop %v2319
        %2321 = vadd.xlane.f32.xlu0 %v2290
        %v2322 = vpop.xlane.xlu0 %2321
        %2323 = vadd.xlane.f32.xlu0 %v2292
        %v2324 = vpop.xlane.xlu0 %2323
        %2325 = vadd.xlane.f32.xlu0 %v2294
        %v2326 = vpop.xlane.xlu0 %2325
        %2327 = vadd.xlane.f32.xlu0 %v2296
        %v2328 = vpop.xlane.xlu0 %2327
        %2329 = vadd.xlane.f32.xlu0 %v2298
        %v2330 = vpop.xlane.xlu0 %2329
        %2331 = vadd.xlane.f32.xlu0 %v2300
        %v2332 = vpop.xlane.xlu0 %2331
        %2333 = vadd.xlane.f32.xlu0 %v2302
        %v2334 = vpop.xlane.xlu0 %2333
        %2335 = vadd.xlane.f32.xlu0 %v2304
        %v2336 = vpop.xlane.xlu0 %2335
        %2337 = vadd.xlane.f32.xlu0 %v2306
        %v2338 = vpop.xlane.xlu0 %2337
        %2339 = vadd.xlane.f32.xlu0 %v2308
        %v2340 = vpop.xlane.xlu0 %2339
        %2341 = vadd.xlane.f32.xlu0 %v2310
        %v2342 = vpop.xlane.xlu0 %2341
        %2343 = vadd.xlane.f32.xlu0 %v2312
        %v2344 = vpop.xlane.xlu0 %2343
        %2345 = vadd.xlane.f32.xlu0 %v2314
        %v2346 = vpop.xlane.xlu0 %2345
        %2347 = vadd.xlane.f32.xlu0 %v2316
        %v2348 = vpop.xlane.xlu0 %2347
        %2349 = vadd.xlane.f32.xlu0 %v2318
        %v2350 = vpop.xlane.xlu0 %2349
        %2351 = vadd.xlane.f32.xlu0 %v2320
        %v2352 = vpop.xlane.xlu0 %2351
        %v2353 = vrcp.pop %v2322
        %v2354 = vrcp.pop %v2324
        %v2355 = vrcp.pop %v2326
        %v2356 = vrcp.pop %v2328
        %v2357 = vrcp.pop %v2330
        %v2358 = vrcp.pop %v2332
        %v2359 = vrcp.pop %v2334
        %v2360 = vrcp.pop %v2336
        %v2361 = vrcp.pop %v2338
        %v2362 = vrcp.pop %v2340
        %v2363 = vrcp.pop %v2342
        %v2364 = vrcp.pop %v2344
        %v2365 = vrcp.pop %v2346
        %v2366 = vrcp.pop %v2348
        %v2367 = vrcp.pop %v2350
        %v2368 = vrcp.pop %v2352
        %v2369 = vmul.f32 %v2290, %v2353
        %v2370 = vmul.f32 %v2292, %v2354
        %v2371 = vmul.f32 %v2294, %v2355
        %v2372 = vmul.f32 %v2296, %v2356
        %v2373 = vmul.f32 %v2298, %v2357
        %v2374 = vmul.f32 %v2300, %v2358
        %v2375 = vmul.f32 %v2302, %v2359
        %v2376 = vmul.f32 %v2304, %v2360
        %v2377 = vmul.f32 %v2306, %v2361
        %v2378 = vmul.f32 %v2308, %v2362
        %v2379 = vmul.f32 %v2310, %v2363
        %v2380 = vmul.f32 %v2312, %v2364
        %v2381 = vmul.f32 %v2314, %v2365
        %v2382 = vmul.f32 %v2316, %v2366
        %v2383 = vmul.f32 %v2318, %v2367
        %v2384 = vmul.f32 %v2320, %v2368
        %v2385 = vpack.c.bf16 %v2370, %v2369
        %v2386 = vpack.c.bf16 %v2372, %v2371
        %v2387 = vpack.c.bf16 %v2374, %v2373
        %v2388 = vpack.c.bf16 %v2376, %v2375
        %v2389 = vpack.c.bf16 %v2378, %v2377
        %v2390 = vpack.c.bf16 %v2380, %v2379
        %v2391 = vpack.c.bf16 %v2382, %v2381
        %v2392 = vpack.c.bf16 %v2384, %v2383
        %2401 = vrot.lane.b32.xlu0 %v1654, 64
        %v2402 = vpop.permute.xlu0 %2401
        %2403 = vrot.lane.b32.xlu0 %v1655, 64
        %v2404 = vpop.permute.xlu0 %2403
        %2405 = vrot.lane.b32.xlu0 %v1656, 64
        %v2406 = vpop.permute.xlu0 %2405
        %2407 = vrot.lane.b32.xlu0 %v1657, 64
        %v2408 = vpop.permute.xlu0 %2407
        %2409 = vrot.lane.b32.xlu0 %v1658, 64
        %v2410 = vpop.permute.xlu0 %2409
        %2411 = vrot.lane.b32.xlu0 %v1659, 64
        %v2412 = vpop.permute.xlu0 %2411
        %2413 = vrot.lane.b32.xlu0 %v1660, 64
        %v2414 = vpop.permute.xlu0 %2413
        %2415 = vrot.lane.b32.xlu0 %v1661, 64
        %v2416 = vpop.permute.xlu0 %2415
        %2425 = vmatpush.bf16.msra.mxu0 %v2416
        %2426 = vmatpush.bf16.msra.mxu0 %v2414
        %2427 = vmatpush.bf16.msra.mxu0 %v2412
        %2428 = vmatpush.bf16.msra.mxu0 %v2410
        %2429 = vmatpush.bf16.msra.mxu0 %v2408
        %2430 = vmatpush.bf16.msra.mxu0 %v2406
        %2431 = vmatpush.bf16.msra.mxu0 %v2404
        %2432 = vmatpush.bf16.msra.mxu0 %v2402
        %2433 = vmatmul.bf16.gmra.mxu0 %v2385
        %v2434 = vpop.f32.mrf.mxu0
        %v2435 = vadd.f32 0.0, %v2434
        %v2436 = vpop.f32.mrf.mxu0
        %v2437 = vadd.f32 0.0, %v2436
        %2438 = vmatmul.bf16.gmra.mxu0 %v2386
        %v2439 = vpop.f32.mrf.mxu0
        %v2440 = vadd.f32 0.0, %v2439
        %v2441 = vpop.f32.mrf.mxu0
        %v2442 = vadd.f32 0.0, %v2441
        %2443 = vmatmul.bf16.gmra.mxu0 %v2387
        %v2444 = vpop.f32.mrf.mxu0
        %v2445 = vadd.f32 0.0, %v2444
        %v2446 = vpop.f32.mrf.mxu0
        %v2447 = vadd.f32 0.0, %v2446
        %2448 = vmatmul.bf16.gmra.mxu0 %v2388
        %v2449 = vpop.f32.mrf.mxu0
        %v2450 = vadd.f32 0.0, %v2449
        %v2451 = vpop.f32.mrf.mxu0
        %v2452 = vadd.f32 0.0, %v2451
        %2453 = vmatmul.bf16.gmra.mxu0 %v2389
        %v2454 = vpop.f32.mrf.mxu0
        %v2455 = vadd.f32 0.0, %v2454
        %v2456 = vpop.f32.mrf.mxu0
        %v2457 = vadd.f32 0.0, %v2456
        %2458 = vmatmul.bf16.gmra.mxu0 %v2390
        %v2459 = vpop.f32.mrf.mxu0
        %v2460 = vadd.f32 0.0, %v2459
        %v2461 = vpop.f32.mrf.mxu0
        %v2462 = vadd.f32 0.0, %v2461
        %2463 = vmatmul.bf16.gmra.mxu0 %v2391
        %v2464 = vpop.f32.mrf.mxu0
        %v2465 = vadd.f32 0.0, %v2464
        %v2466 = vpop.f32.mrf.mxu0
        %v2467 = vadd.f32 0.0, %v2466
        %2468 = vmatmul.bf16.gmra.mxu0 %v2392
        %v2469 = vpop.f32.mrf.mxu0
        %v2470 = vadd.f32 0.0, %v2469
        %v2471 = vpop.f32.mrf.mxu0
        %v2472 = vadd.f32 0.0, %v2471
        %2473 = vdwg.mxu0
        %v2474 = vpack.c.bf16 %v2437, %v2435
        %v2475 = vpack.c.bf16 %v2442, %v2440
        %v2476 = vpack.c.bf16 %v2447, %v2445
        %v2477 = vpack.c.bf16 %v2452, %v2450
        %v2478 = vpack.c.bf16 %v2457, %v2455
        %v2479 = vpack.c.bf16 %v2462, %v2460
        %v2480 = vpack.c.bf16 %v2467, %v2465
        %v2481 = vpack.c.bf16 %v2472, %v2470
        %v2482 = vld [vmem:[%s764 + $0x20] sm:$0xf]
        %v2483 = vld [vmem:[%s764 + $0x24] sm:$0xf]
        %v2484 = vld [vmem:[%s764 + $0x28] sm:$0xf]
        %v2485 = vld [vmem:[%s764 + $0x2c] sm:$0xf]
        %v2486 = vld [vmem:[%s764 + $0x30] sm:$0xf]
        %v2487 = vld [vmem:[%s764 + $0x34] sm:$0xf]
        %v2488 = vld [vmem:[%s764 + $0x38] sm:$0xf]
        %v2489 = vld [vmem:[%s764 + $0x3c] sm:$0xf]
        %v2498 = vunpack.c.l.b16 %v2482
        %v2499 = vunpack.c.l.b16 %v2483
        %v2500 = vunpack.c.l.b16 %v2484
        %v2501 = vunpack.c.l.b16 %v2485
        %v2502 = vunpack.c.l.b16 %v2486
        %v2503 = vunpack.c.l.b16 %v2487
        %v2504 = vunpack.c.l.b16 %v2488
        %v2505 = vunpack.c.l.b16 %v2489
        %v2506 = vpack.c.b16 %v2499, %v2498
        %v2507 = vpack.c.b16 %v2501, %v2500
        %v2508 = vpack.c.b16 %v2503, %v2502
        %v2509 = vpack.c.b16 %v2505, %v2504
        %v2515 = vsel %vm1665, %v2474, 0
        %v2518 = vsel %vm1665, %v2475, 0
        %v2521 = vsel %vm1665, %v2476, 0
        %v2524 = vsel %vm1665, %v2477, 0
        %v2527 = vsel %vm1665, %v2478, 0
        %v2530 = vsel %vm1665, %v2479, 0
        %v2533 = vsel %vm1665, %v2480, 0
        %v2536 = vsel %vm1665, %v2481, 0
        %2538 = vmatpush.bf16.msra.mxu0 0
        %2539 = vmatpush.bf16.msra.mxu0 0
        %2540 = vmatpush.bf16.msra.mxu0 0
        %2541 = vmatpush.bf16.msra.mxu0 0
        %2542 = vmatpush.bf16.msra.mxu0 %v2509
        %2543 = vmatpush.bf16.msra.mxu0 %v2508
        %2544 = vmatpush.bf16.msra.mxu0 %v2507
        %2545 = vmatpush.bf16.msra.mxu0 %v2506
        %2546 = vmatmul.bf16.gmra.mxu0 %v2515
        %v2547 = vpop.f32.mrf.mxu0
        %v2548 = vadd.f32 0.0, %v2547
        %v2549 = vpop.f32.mrf.mxu0
        %v2550 = vadd.f32 0.0, %v2549
        %2551 = vmatmul.bf16.gmra.mxu0 %v2518
        %v2552 = vpop.f32.mrf.mxu0
        %v2553 = vadd.f32 0.0, %v2552
        %v2554 = vpop.f32.mrf.mxu0
        %v2555 = vadd.f32 0.0, %v2554
        %2556 = vmatmul.bf16.gmra.mxu0 %v2521
        %v2557 = vpop.f32.mrf.mxu0
        %v2558 = vadd.f32 0.0, %v2557
        %v2559 = vpop.f32.mrf.mxu0
        %v2560 = vadd.f32 0.0, %v2559
        %2561 = vmatmul.bf16.gmra.mxu0 %v2524
        %v2562 = vpop.f32.mrf.mxu0
        %v2563 = vadd.f32 0.0, %v2562
        %v2564 = vpop.f32.mrf.mxu0
        %v2565 = vadd.f32 0.0, %v2564
        %2566 = vmatmul.bf16.gmra.mxu0 %v2527
        %v2567 = vpop.f32.mrf.mxu0
        %v2568 = vadd.f32 0.0, %v2567
        %v2569 = vpop.f32.mrf.mxu0
        %v2570 = vadd.f32 0.0, %v2569
        %2571 = vmatmul.bf16.gmra.mxu0 %v2530
        %v2572 = vpop.f32.mrf.mxu0
        %v2573 = vadd.f32 0.0, %v2572
        %v2574 = vpop.f32.mrf.mxu0
        %v2575 = vadd.f32 0.0, %v2574
        %2576 = vmatmul.bf16.gmra.mxu0 %v2533
        %v2577 = vpop.f32.mrf.mxu0
        %v2578 = vadd.f32 0.0, %v2577
        %v2579 = vpop.f32.mrf.mxu0
        %v2580 = vadd.f32 0.0, %v2579
        %2581 = vmatmul.bf16.gmra.mxu0 %v2536
        %v2582 = vpop.f32.mrf.mxu0
        %v2583 = vadd.f32 0.0, %v2582
        %v2584 = vpop.f32.mrf.mxu0
        %v2585 = vadd.f32 0.0, %v2584
        %2586 = vdwg.mxu0
        %v2587 = vadd.f32 %v2080, %v2548
        %v2588 = vadd.f32 %v2081, %v2550
        %v2589 = vadd.f32 %v2082, %v2553
        %v2590 = vadd.f32 %v2083, %v2555
        %v2591 = vadd.f32 %v2084, %v2558
        %v2592 = vadd.f32 %v2085, %v2560
        %v2593 = vadd.f32 %v2086, %v2563
        %v2594 = vadd.f32 %v2087, %v2565
        %v2595 = vadd.f32 %v2088, %v2568
        %v2596 = vadd.f32 %v2089, %v2570
        %v2597 = vadd.f32 %v2090, %v2573
        %v2598 = vadd.f32 %v2091, %v2575
        %v2599 = vadd.f32 %v2092, %v2578
        %v2600 = vadd.f32 %v2093, %v2580
        %v2601 = vadd.f32 %v2094, %v2583
        %v2602 = vadd.f32 %v2095, %v2585
        %v2603 = vadd.f32 %v2587, %v1201
        %v2604 = vadd.f32 %v2588, %v1202
        %v2605 = vadd.f32 %v2589, %v1203
        %v2606 = vadd.f32 %v2590, %v1204
        %v2607 = vadd.f32 %v2591, %v1205
        %v2608 = vadd.f32 %v2592, %v1206
        %v2609 = vadd.f32 %v2593, %v1207
        %v2610 = vadd.f32 %v2594, %v1208
        %v2611 = vadd.f32 %v2595, %v1209
        %v2612 = vadd.f32 %v2596, %v1210
        %v2613 = vadd.f32 %v2597, %v1211
        %v2614 = vadd.f32 %v2598, %v1212
        %v2615 = vadd.f32 %v2599, %v1213
        %v2616 = vadd.f32 %v2600, %v1214
        %v2617 = vadd.f32 %v2601, %v1215
        %v2618 = vadd.f32 %v2602, %v1216
        %v2619 = vld [vmem:[%s770] sm:$0x1]
        %v2620 = vld [vmem:[%s773] sm:$0x1]
        %2621 = vadd.xlane.f32.xlu0 %v2603
        %v2622 = vpop.xlane.xlu0 %2621
        %2623 = vadd.xlane.f32.xlu0 %v2604
        %v2624 = vpop.xlane.xlu0 %2623
        %2625 = vadd.xlane.f32.xlu0 %v2605
        %v2626 = vpop.xlane.xlu0 %2625
        %2627 = vadd.xlane.f32.xlu0 %v2606
        %v2628 = vpop.xlane.xlu0 %2627
        %2629 = vadd.xlane.f32.xlu0 %v2607
        %v2630 = vpop.xlane.xlu0 %2629
        %2631 = vadd.xlane.f32.xlu0 %v2608
        %v2632 = vpop.xlane.xlu0 %2631
        %2633 = vadd.xlane.f32.xlu0 %v2609
        %v2634 = vpop.xlane.xlu0 %2633
        %2635 = vadd.xlane.f32.xlu0 %v2610
        %v2636 = vpop.xlane.xlu0 %2635
        %2637 = vadd.xlane.f32.xlu0 %v2611
        %v2638 = vpop.xlane.xlu0 %2637
        %2639 = vadd.xlane.f32.xlu0 %v2612
        %v2640 = vpop.xlane.xlu0 %2639
        %2641 = vadd.xlane.f32.xlu0 %v2613
        %v2642 = vpop.xlane.xlu0 %2641
        %2643 = vadd.xlane.f32.xlu0 %v2614
        %v2644 = vpop.xlane.xlu0 %2643
        %2645 = vadd.xlane.f32.xlu0 %v2615
        %v2646 = vpop.xlane.xlu0 %2645
        %2647 = vadd.xlane.f32.xlu0 %v2616
        %v2648 = vpop.xlane.xlu0 %2647
        %2649 = vadd.xlane.f32.xlu0 %v2617
        %v2650 = vpop.xlane.xlu0 %2649
        %2651 = vadd.xlane.f32.xlu0 %v2618
        %v2652 = vpop.xlane.xlu0 %2651
        %v2653 = vrcp.pop 128.0
        %v2654 = vmul.f32 128.0, %v2653
        %v2655 = vsub.f32 1.0, %v2654
        %v2656 = vmul.f32 %v2653, %v2655
        %v2657 = vadd.f32 %v2653, %v2656
        %vm2658 = vweird.f32 %v2653
        %v2659 = vsel %vm2658, %v2653, %v2657
        %v2660 = vmul.f32 %v2622, %v2659
        %v2661 = vmul.f32 %v2624, %v2659
        %v2662 = vmul.f32 %v2626, %v2659
        %v2663 = vmul.f32 %v2628, %v2659
        %v2664 = vmul.f32 %v2630, %v2659
        %v2665 = vmul.f32 %v2632, %v2659
        %v2666 = vmul.f32 %v2634, %v2659
        %v2667 = vmul.f32 %v2636, %v2659
        %v2668 = vmul.f32 %v2638, %v2659
        %v2669 = vmul.f32 %v2640, %v2659
        %v2670 = vmul.f32 %v2642, %v2659
        %v2671 = vmul.f32 %v2644, %v2659
        %v2672 = vmul.f32 %v2646, %v2659
        %v2673 = vmul.f32 %v2648, %v2659
        %v2674 = vmul.f32 %v2650, %v2659
        %v2675 = vmul.f32 %v2652, %v2659
        %v2676 = vsub.f32 %v2603, %v2660
        %v2677 = vsub.f32 %v2604, %v2661
        %v2678 = vsub.f32 %v2605, %v2662
        %v2679 = vsub.f32 %v2606, %v2663
        %v2680 = vsub.f32 %v2607, %v2664
        %v2681 = vsub.f32 %v2608, %v2665
        %v2682 = vsub.f32 %v2609, %v2666
        %v2683 = vsub.f32 %v2610, %v2667
        %v2684 = vsub.f32 %v2611, %v2668
        %v2685 = vsub.f32 %v2612, %v2669
        %v2686 = vsub.f32 %v2613, %v2670
        %v2687 = vsub.f32 %v2614, %v2671
        %v2688 = vsub.f32 %v2615, %v2672
        %v2689 = vsub.f32 %v2616, %v2673
        %v2690 = vsub.f32 %v2617, %v2674
        %v2691 = vsub.f32 %v2618, %v2675
        %v2692 = vmul.f32 %v2676, %v2676
        %v2693 = vmul.f32 %v2677, %v2677
        %v2694 = vmul.f32 %v2678, %v2678
        %v2695 = vmul.f32 %v2679, %v2679
        %v2696 = vmul.f32 %v2680, %v2680
        %v2697 = vmul.f32 %v2681, %v2681
        %v2698 = vmul.f32 %v2682, %v2682
        %v2699 = vmul.f32 %v2683, %v2683
        %v2700 = vmul.f32 %v2684, %v2684
        %v2701 = vmul.f32 %v2685, %v2685
        %v2702 = vmul.f32 %v2686, %v2686
        %v2703 = vmul.f32 %v2687, %v2687
        %v2704 = vmul.f32 %v2688, %v2688
        %v2705 = vmul.f32 %v2689, %v2689
        %v2706 = vmul.f32 %v2690, %v2690
        %v2707 = vmul.f32 %v2691, %v2691
        %2708 = vadd.xlane.f32.xlu0 %v2692
        %v2709 = vpop.xlane.xlu0 %2708
        %2710 = vadd.xlane.f32.xlu0 %v2693
        %v2711 = vpop.xlane.xlu0 %2710
        %2712 = vadd.xlane.f32.xlu0 %v2694
        %v2713 = vpop.xlane.xlu0 %2712
        %2714 = vadd.xlane.f32.xlu0 %v2695
        %v2715 = vpop.xlane.xlu0 %2714
        %2716 = vadd.xlane.f32.xlu0 %v2696
        %v2717 = vpop.xlane.xlu0 %2716
        %2718 = vadd.xlane.f32.xlu0 %v2697
        %v2719 = vpop.xlane.xlu0 %2718
        %2720 = vadd.xlane.f32.xlu0 %v2698
        %v2721 = vpop.xlane.xlu0 %2720
        %2722 = vadd.xlane.f32.xlu0 %v2699
        %v2723 = vpop.xlane.xlu0 %2722
        %2724 = vadd.xlane.f32.xlu0 %v2700
        %v2725 = vpop.xlane.xlu0 %2724
        %2726 = vadd.xlane.f32.xlu0 %v2701
        %v2727 = vpop.xlane.xlu0 %2726
        %2728 = vadd.xlane.f32.xlu0 %v2702
        %v2729 = vpop.xlane.xlu0 %2728
        %2730 = vadd.xlane.f32.xlu0 %v2703
        %v2731 = vpop.xlane.xlu0 %2730
        %2732 = vadd.xlane.f32.xlu0 %v2704
        %v2733 = vpop.xlane.xlu0 %2732
        %2734 = vadd.xlane.f32.xlu0 %v2705
        %v2735 = vpop.xlane.xlu0 %2734
        %2736 = vadd.xlane.f32.xlu0 %v2706
        %v2737 = vpop.xlane.xlu0 %2736
        %2738 = vadd.xlane.f32.xlu0 %v2707
        %v2739 = vpop.xlane.xlu0 %2738
        %v2740 = vmul.f32 %v2709, %v2659
        %v2741 = vmul.f32 %v2711, %v2659
        %v2742 = vmul.f32 %v2713, %v2659
        %v2743 = vmul.f32 %v2715, %v2659
        %v2744 = vmul.f32 %v2717, %v2659
        %v2745 = vmul.f32 %v2719, %v2659
        %v2746 = vmul.f32 %v2721, %v2659
        %v2747 = vmul.f32 %v2723, %v2659
        %v2748 = vmul.f32 %v2725, %v2659
        %v2749 = vmul.f32 %v2727, %v2659
        %v2750 = vmul.f32 %v2729, %v2659
        %v2751 = vmul.f32 %v2731, %v2659
        %v2752 = vmul.f32 %v2733, %v2659
        %v2753 = vmul.f32 %v2735, %v2659
        %v2754 = vmul.f32 %v2737, %v2659
        %v2755 = vmul.f32 %v2739, %v2659
        %v2756 = vadd.f32 %v2740, 1e-12
        %v2757 = vadd.f32 %v2741, 1e-12
        %v2758 = vadd.f32 %v2742, 1e-12
        %v2759 = vadd.f32 %v2743, 1e-12
        %v2760 = vadd.f32 %v2744, 1e-12
        %v2761 = vadd.f32 %v2745, 1e-12
        %v2762 = vadd.f32 %v2746, 1e-12
        %v2763 = vadd.f32 %v2747, 1e-12
        %v2764 = vadd.f32 %v2748, 1e-12
        %v2765 = vadd.f32 %v2749, 1e-12
        %v2766 = vadd.f32 %v2750, 1e-12
        %v2767 = vadd.f32 %v2751, 1e-12
        %v2768 = vadd.f32 %v2752, 1e-12
        %v2769 = vadd.f32 %v2753, 1e-12
        %v2770 = vadd.f32 %v2754, 1e-12
        %v2771 = vadd.f32 %v2755, 1e-12
        %v2772 = vrsqrt.pop %v2756
        %v2773 = vmul.f32 %v2772, %v2756
        %v2774 = vmul.f32 %v2773, %v2772
        %v2775 = vmul.f32 0.5, %v2774
        %v2776 = vsub.f32 1.5, %v2775
        %v2777 = vmul.f32 %v2772, %v2776
        %vm2778 = vweird.f32 %v2756
        %vm2779 = vweird.f32 %v2772
        %vm2780 = vmor %vm2778, %vm2779
        %v2781 = vsel %vm2780, %v2772, %v2777
        %v2782 = vrsqrt.pop %v2757
        %v2783 = vmul.f32 %v2782, %v2757
        %v2784 = vmul.f32 %v2783, %v2782
        %v2785 = vmul.f32 0.5, %v2784
        %v2786 = vsub.f32 1.5, %v2785
        %v2787 = vmul.f32 %v2782, %v2786
        %vm2788 = vweird.f32 %v2757
        %vm2789 = vweird.f32 %v2782
        %vm2790 = vmor %vm2788, %vm2789
        %v2791 = vsel %vm2790, %v2782, %v2787
        %v2792 = vrsqrt.pop %v2758
        %v2793 = vmul.f32 %v2792, %v2758
        %v2794 = vmul.f32 %v2793, %v2792
        %v2795 = vmul.f32 0.5, %v2794
        %v2796 = vsub.f32 1.5, %v2795
        %v2797 = vmul.f32 %v2792, %v2796
        %vm2798 = vweird.f32 %v2758
        %vm2799 = vweird.f32 %v2792
        %vm2800 = vmor %vm2798, %vm2799
        %v2801 = vsel %vm2800, %v2792, %v2797
        %v2802 = vrsqrt.pop %v2759
        %v2803 = vmul.f32 %v2802, %v2759
        %v2804 = vmul.f32 %v2803, %v2802
        %v2805 = vmul.f32 0.5, %v2804
        %v2806 = vsub.f32 1.5, %v2805
        %v2807 = vmul.f32 %v2802, %v2806
        %vm2808 = vweird.f32 %v2759
        %vm2809 = vweird.f32 %v2802
        %vm2810 = vmor %vm2808, %vm2809
        %v2811 = vsel %vm2810, %v2802, %v2807
        %v2812 = vrsqrt.pop %v2760
        %v2813 = vmul.f32 %v2812, %v2760
        %v2814 = vmul.f32 %v2813, %v2812
        %v2815 = vmul.f32 0.5, %v2814
        %v2816 = vsub.f32 1.5, %v2815
        %v2817 = vmul.f32 %v2812, %v2816
        %vm2818 = vweird.f32 %v2760
        %vm2819 = vweird.f32 %v2812
        %vm2820 = vmor %vm2818, %vm2819
        %v2821 = vsel %vm2820, %v2812, %v2817
        %v2822 = vrsqrt.pop %v2761
        %v2823 = vmul.f32 %v2822, %v2761
        %v2824 = vmul.f32 %v2823, %v2822
        %v2825 = vmul.f32 0.5, %v2824
        %v2826 = vsub.f32 1.5, %v2825
        %v2827 = vmul.f32 %v2822, %v2826
        %vm2828 = vweird.f32 %v2761
        %vm2829 = vweird.f32 %v2822
        %vm2830 = vmor %vm2828, %vm2829
        %v2831 = vsel %vm2830, %v2822, %v2827
        %v2832 = vrsqrt.pop %v2762
        %v2833 = vmul.f32 %v2832, %v2762
        %v2834 = vmul.f32 %v2833, %v2832
        %v2835 = vmul.f32 0.5, %v2834
        %v2836 = vsub.f32 1.5, %v2835
        %v2837 = vmul.f32 %v2832, %v2836
        %vm2838 = vweird.f32 %v2762
        %vm2839 = vweird.f32 %v2832
        %vm2840 = vmor %vm2838, %vm2839
        %v2841 = vsel %vm2840, %v2832, %v2837
        %v2842 = vrsqrt.pop %v2763
        %v2843 = vmul.f32 %v2842, %v2763
        %v2844 = vmul.f32 %v2843, %v2842
        %v2845 = vmul.f32 0.5, %v2844
        %v2846 = vsub.f32 1.5, %v2845
        %v2847 = vmul.f32 %v2842, %v2846
        %vm2848 = vweird.f32 %v2763
        %vm2849 = vweird.f32 %v2842
        %vm2850 = vmor %vm2848, %vm2849
        %v2851 = vsel %vm2850, %v2842, %v2847
        %v2852 = vrsqrt.pop %v2764
        %v2853 = vmul.f32 %v2852, %v2764
        %v2854 = vmul.f32 %v2853, %v2852
        %v2855 = vmul.f32 0.5, %v2854
        %v2856 = vsub.f32 1.5, %v2855
        %v2857 = vmul.f32 %v2852, %v2856
        %vm2858 = vweird.f32 %v2764
        %vm2859 = vweird.f32 %v2852
        %vm2860 = vmor %vm2858, %vm2859
        %v2861 = vsel %vm2860, %v2852, %v2857
        %v2862 = vrsqrt.pop %v2765
        %v2863 = vmul.f32 %v2862, %v2765
        %v2864 = vmul.f32 %v2863, %v2862
        %v2865 = vmul.f32 0.5, %v2864
        %v2866 = vsub.f32 1.5, %v2865
        %v2867 = vmul.f32 %v2862, %v2866
        %vm2868 = vweird.f32 %v2765
        %vm2869 = vweird.f32 %v2862
        %vm2870 = vmor %vm2868, %vm2869
        %v2871 = vsel %vm2870, %v2862, %v2867
        %v2872 = vrsqrt.pop %v2766
        %v2873 = vmul.f32 %v2872, %v2766
        %v2874 = vmul.f32 %v2873, %v2872
        %v2875 = vmul.f32 0.5, %v2874
        %v2876 = vsub.f32 1.5, %v2875
        %v2877 = vmul.f32 %v2872, %v2876
        %vm2878 = vweird.f32 %v2766
        %vm2879 = vweird.f32 %v2872
        %vm2880 = vmor %vm2878, %vm2879
        %v2881 = vsel %vm2880, %v2872, %v2877
        %v2882 = vrsqrt.pop %v2767
        %v2883 = vmul.f32 %v2882, %v2767
        %v2884 = vmul.f32 %v2883, %v2882
        %v2885 = vmul.f32 0.5, %v2884
        %v2886 = vsub.f32 1.5, %v2885
        %v2887 = vmul.f32 %v2882, %v2886
        %vm2888 = vweird.f32 %v2767
        %vm2889 = vweird.f32 %v2882
        %vm2890 = vmor %vm2888, %vm2889
        %v2891 = vsel %vm2890, %v2882, %v2887
        %v2892 = vrsqrt.pop %v2768
        %v2893 = vmul.f32 %v2892, %v2768
        %v2894 = vmul.f32 %v2893, %v2892
        %v2895 = vmul.f32 0.5, %v2894
        %v2896 = vsub.f32 1.5, %v2895
        %v2897 = vmul.f32 %v2892, %v2896
        %vm2898 = vweird.f32 %v2768
        %vm2899 = vweird.f32 %v2892
        %vm2900 = vmor %vm2898, %vm2899
        %v2901 = vsel %vm2900, %v2892, %v2897
        %v2902 = vrsqrt.pop %v2769
        %v2903 = vmul.f32 %v2902, %v2769
        %v2904 = vmul.f32 %v2903, %v2902
        %v2905 = vmul.f32 0.5, %v2904
        %v2906 = vsub.f32 1.5, %v2905
        %v2907 = vmul.f32 %v2902, %v2906
        %vm2908 = vweird.f32 %v2769
        %vm2909 = vweird.f32 %v2902
        %vm2910 = vmor %vm2908, %vm2909
        %v2911 = vsel %vm2910, %v2902, %v2907
        %v2912 = vrsqrt.pop %v2770
        %v2913 = vmul.f32 %v2912, %v2770
        %v2914 = vmul.f32 %v2913, %v2912
        %v2915 = vmul.f32 0.5, %v2914
        %v2916 = vsub.f32 1.5, %v2915
        %v2917 = vmul.f32 %v2912, %v2916
        %vm2918 = vweird.f32 %v2770
        %vm2919 = vweird.f32 %v2912
        %vm2920 = vmor %vm2918, %vm2919
        %v2921 = vsel %vm2920, %v2912, %v2917
        %v2922 = vrsqrt.pop %v2771
        %v2923 = vmul.f32 %v2922, %v2771
        %v2924 = vmul.f32 %v2923, %v2922
        %v2925 = vmul.f32 0.5, %v2924
        %v2926 = vsub.f32 1.5, %v2925
        %v2927 = vmul.f32 %v2922, %v2926
        %vm2928 = vweird.f32 %v2771
        %vm2929 = vweird.f32 %v2922
        %vm2930 = vmor %vm2928, %vm2929
        %v2931 = vsel %vm2930, %v2922, %v2927
        %v2932 = vmul.f32 %v2676, %v2781
        %v2933 = vmul.f32 %v2677, %v2791
        %v2934 = vmul.f32 %v2678, %v2801
        %v2935 = vmul.f32 %v2679, %v2811
        %v2936 = vmul.f32 %v2680, %v2821
        %v2937 = vmul.f32 %v2681, %v2831
        %v2938 = vmul.f32 %v2682, %v2841
        %v2939 = vmul.f32 %v2683, %v2851
        %v2940 = vmul.f32 %v2684, %v2861
        %v2941 = vmul.f32 %v2685, %v2871
        %v2942 = vmul.f32 %v2686, %v2881
        %v2943 = vmul.f32 %v2687, %v2891
        %v2944 = vmul.f32 %v2688, %v2901
        %v2945 = vmul.f32 %v2689, %v2911
        %v2946 = vmul.f32 %v2690, %v2921
        %v2947 = vmul.f32 %v2691, %v2931
        %v2949 = vperm.slane %v2619, 0
        %v2951 = vmul.f32 %v2932, %v2949
        %v2952 = vmul.f32 %v2933, %v2949
        %v2953 = vmul.f32 %v2934, %v2949
        %v2954 = vmul.f32 %v2935, %v2949
        %v2955 = vmul.f32 %v2936, %v2949
        %v2956 = vmul.f32 %v2937, %v2949
        %v2957 = vmul.f32 %v2938, %v2949
        %v2958 = vmul.f32 %v2939, %v2949
        %v2959 = vmul.f32 %v2940, %v2949
        %v2960 = vmul.f32 %v2941, %v2949
        %v2961 = vmul.f32 %v2942, %v2949
        %v2962 = vmul.f32 %v2943, %v2949
        %v2963 = vmul.f32 %v2944, %v2949
        %v2964 = vmul.f32 %v2945, %v2949
        %v2965 = vmul.f32 %v2946, %v2949
        %v2966 = vmul.f32 %v2947, %v2949
        %v2968 = vperm.slane %v2620, 0
        %v2970 = vadd.f32 %v2951, %v2968
        %v2971 = vadd.f32 %v2952, %v2968
        %v2972 = vadd.f32 %v2953, %v2968
        %v2973 = vadd.f32 %v2954, %v2968
        %v2974 = vadd.f32 %v2955, %v2968
        %v2975 = vadd.f32 %v2956, %v2968
        %v2976 = vadd.f32 %v2957, %v2968
        %v2977 = vadd.f32 %v2958, %v2968
        %v2978 = vadd.f32 %v2959, %v2968
        %v2979 = vadd.f32 %v2960, %v2968
        %v2980 = vadd.f32 %v2961, %v2968
        %v2981 = vadd.f32 %v2962, %v2968
        %v2982 = vadd.f32 %v2963, %v2968
        %v2983 = vadd.f32 %v2964, %v2968
        %v2984 = vadd.f32 %v2965, %v2968
        %v2985 = vadd.f32 %v2966, %v2968
        %v2986 = vpack.c.bf16 %v2971, %v2970
        %v2987 = vpack.c.bf16 %v2973, %v2972
        %v2988 = vpack.c.bf16 %v2975, %v2974
        %v2989 = vpack.c.bf16 %v2977, %v2976
        %v2990 = vpack.c.bf16 %v2979, %v2978
        %v2991 = vpack.c.bf16 %v2981, %v2980
        %v2992 = vpack.c.bf16 %v2983, %v2982
        %v2993 = vpack.c.bf16 %v2985, %v2984
        %v2994 = vld [vmem:[%s778] sm:$0xff]
        %v2995 = vld [vmem:[%s778 + $0x8] sm:$0xff]
        %v2996 = vld [vmem:[%s778 + $0x10] sm:$0xff]
        %v2997 = vld [vmem:[%s778 + $0x18] sm:$0xff]
        %v2998 = vld [vmem:[%s778 + $0x20] sm:$0xff]
        %v2999 = vld [vmem:[%s778 + $0x28] sm:$0xff]
        %v3000 = vld [vmem:[%s778 + $0x30] sm:$0xff]
        %v3001 = vld [vmem:[%s778 + $0x38] sm:$0xff]
        %v3002 = vld [vmem:[%s778 + $0x40] sm:$0xff]
        %v3003 = vld [vmem:[%s778 + $0x48] sm:$0xff]
        %v3004 = vld [vmem:[%s778 + $0x50] sm:$0xff]
        %v3005 = vld [vmem:[%s778 + $0x58] sm:$0xff]
        %v3006 = vld [vmem:[%s778 + $0x60] sm:$0xff]
        %v3007 = vld [vmem:[%s778 + $0x68] sm:$0xff]
        %v3008 = vld [vmem:[%s778 + $0x70] sm:$0xff]
        %v3009 = vld [vmem:[%s778 + $0x78] sm:$0xff]
        %v3010 = vld [vmem:[%s782] sm:$0x3]
        %v3012 = vperm.slane %v3010, 0
        %v3013 = vperm.slane %v3010, 1
        %v3032 = vunpack.c.l.b16 %v2994
        %v3033 = vunpack.c.h.b16 %v2994
        %v3034 = vunpack.c.l.b16 %v2995
        %v3035 = vunpack.c.h.b16 %v2995
        %v3036 = vunpack.c.l.b16 %v2996
        %v3037 = vunpack.c.h.b16 %v2996
        %v3038 = vunpack.c.l.b16 %v2997
        %v3039 = vunpack.c.h.b16 %v2997
        %v3040 = vunpack.c.l.b16 %v2998
        %v3041 = vunpack.c.h.b16 %v2998
        %v3042 = vunpack.c.l.b16 %v2999
        %v3043 = vunpack.c.h.b16 %v2999
        %v3044 = vunpack.c.l.b16 %v3000
        %v3045 = vunpack.c.h.b16 %v3000
        %v3046 = vunpack.c.l.b16 %v3001
        %v3047 = vunpack.c.h.b16 %v3001
        %v3048 = vunpack.c.l.b16 %v3002
        %v3049 = vunpack.c.h.b16 %v3002
        %v3050 = vunpack.c.l.b16 %v3003
        %v3051 = vunpack.c.h.b16 %v3003
        %v3052 = vunpack.c.l.b16 %v3004
        %v3053 = vunpack.c.h.b16 %v3004
        %v3054 = vunpack.c.l.b16 %v3005
        %v3055 = vunpack.c.h.b16 %v3005
        %v3056 = vunpack.c.l.b16 %v3006
        %v3057 = vunpack.c.h.b16 %v3006
        %v3058 = vunpack.c.l.b16 %v3007
        %v3059 = vunpack.c.h.b16 %v3007
        %v3060 = vunpack.c.l.b16 %v3008
        %v3061 = vunpack.c.h.b16 %v3008
        %v3062 = vunpack.c.l.b16 %v3009
        %v3063 = vunpack.c.h.b16 %v3009
        %v3064 = vpack.c.b16 %v3034, %v3032
        %v3065 = vpack.c.b16 %v3035, %v3033
        %v3066 = vpack.c.b16 %v3038, %v3036
        %v3067 = vpack.c.b16 %v3039, %v3037
        %v3068 = vpack.c.b16 %v3042, %v3040
        %v3069 = vpack.c.b16 %v3043, %v3041
        %v3070 = vpack.c.b16 %v3046, %v3044
        %v3071 = vpack.c.b16 %v3047, %v3045
        %v3072 = vpack.c.b16 %v3050, %v3048
        %v3073 = vpack.c.b16 %v3051, %v3049
        %v3074 = vpack.c.b16 %v3054, %v3052
        %v3075 = vpack.c.b16 %v3055, %v3053
        %v3076 = vpack.c.b16 %v3058, %v3056
        %v3077 = vpack.c.b16 %v3059, %v3057
        %v3078 = vpack.c.b16 %v3062, %v3060
        %v3079 = vpack.c.b16 %v3063, %v3061
        %3096 = vmatpush.bf16.msra.mxu0 %v3078
        %3097 = vmatpush.bf16.msra.mxu0 %v3076
        %3098 = vmatpush.bf16.msra.mxu0 %v3074
        %3099 = vmatpush.bf16.msra.mxu0 %v3072
        %3100 = vmatpush.bf16.msra.mxu0 %v3070
        %3101 = vmatpush.bf16.msra.mxu0 %v3068
        %3102 = vmatpush.bf16.msra.mxu0 %v3066
        %3103 = vmatpush.bf16.msra.mxu0 %v3064
        %3104 = vmatmul.bf16.gmra.mxu0 %v2986
        %v3105 = vpop.f32.mrf.mxu0
        %v3106 = vadd.f32 %v3012, %v3105
        %v3107 = vpop.f32.mrf.mxu0
        %v3108 = vadd.f32 %v3012, %v3107
        %3109 = vmatmul.bf16.gmra.mxu0 %v2987
        %v3110 = vpop.f32.mrf.mxu0
        %v3111 = vadd.f32 %v3012, %v3110
        %v3112 = vpop.f32.mrf.mxu0
        %v3113 = vadd.f32 %v3012, %v3112
        %3114 = vmatmul.bf16.gmra.mxu0 %v2988
        %v3115 = vpop.f32.mrf.mxu0
        %v3116 = vadd.f32 %v3012, %v3115
        %v3117 = vpop.f32.mrf.mxu0
        %v3118 = vadd.f32 %v3012, %v3117
        %3119 = vmatmul.bf16.gmra.mxu0 %v2989
        %v3120 = vpop.f32.mrf.mxu0
        %v3121 = vadd.f32 %v3012, %v3120
        %v3122 = vpop.f32.mrf.mxu0
        %v3123 = vadd.f32 %v3012, %v3122
        %3124 = vmatmul.bf16.gmra.mxu0 %v2990
        %v3125 = vpop.f32.mrf.mxu0
        %v3126 = vadd.f32 %v3012, %v3125
        %v3127 = vpop.f32.mrf.mxu0
        %v3128 = vadd.f32 %v3012, %v3127
        %3129 = vmatmul.bf16.gmra.mxu0 %v2991
        %v3130 = vpop.f32.mrf.mxu0
        %v3131 = vadd.f32 %v3012, %v3130
        %v3132 = vpop.f32.mrf.mxu0
        %v3133 = vadd.f32 %v3012, %v3132
        %3134 = vmatmul.bf16.gmra.mxu0 %v2992
        %v3135 = vpop.f32.mrf.mxu0
        %v3136 = vadd.f32 %v3012, %v3135
        %v3137 = vpop.f32.mrf.mxu0
        %v3138 = vadd.f32 %v3012, %v3137
        %3139 = vmatmul.bf16.gmra.mxu0 %v2993
        %v3140 = vpop.f32.mrf.mxu0
        %v3141 = vadd.f32 %v3012, %v3140
        %v3142 = vpop.f32.mrf.mxu0
        %v3143 = vadd.f32 %v3012, %v3142
        %3144 = vdwg.mxu0
        %3145 = vmatpush.bf16.msra.mxu0 %v3079
        %3146 = vmatpush.bf16.msra.mxu0 %v3077
        %3147 = vmatpush.bf16.msra.mxu0 %v3075
        %3148 = vmatpush.bf16.msra.mxu0 %v3073
        %3149 = vmatpush.bf16.msra.mxu0 %v3071
        %3150 = vmatpush.bf16.msra.mxu0 %v3069
        %3151 = vmatpush.bf16.msra.mxu0 %v3067
        %3152 = vmatpush.bf16.msra.mxu0 %v3065
        %3153 = vmatmul.bf16.gmra.mxu0 %v2986
        %v3154 = vpop.f32.mrf.mxu0
        %v3155 = vadd.f32 %v3013, %v3154
        %v3156 = vpop.f32.mrf.mxu0
        %v3157 = vadd.f32 %v3013, %v3156
        %3158 = vmatmul.bf16.gmra.mxu0 %v2987
        %v3159 = vpop.f32.mrf.mxu0
        %v3160 = vadd.f32 %v3013, %v3159
        %v3161 = vpop.f32.mrf.mxu0
        %v3162 = vadd.f32 %v3013, %v3161
        %3163 = vmatmul.bf16.gmra.mxu0 %v2988
        %v3164 = vpop.f32.mrf.mxu0
        %v3165 = vadd.f32 %v3013, %v3164
        %v3166 = vpop.f32.mrf.mxu0
        %v3167 = vadd.f32 %v3013, %v3166
        %3168 = vmatmul.bf16.gmra.mxu0 %v2989
        %v3169 = vpop.f32.mrf.mxu0
        %v3170 = vadd.f32 %v3013, %v3169
        %v3171 = vpop.f32.mrf.mxu0
        %v3172 = vadd.f32 %v3013, %v3171
        %3173 = vmatmul.bf16.gmra.mxu0 %v2990
        %v3174 = vpop.f32.mrf.mxu0
        %v3175 = vadd.f32 %v3013, %v3174
        %v3176 = vpop.f32.mrf.mxu0
        %v3177 = vadd.f32 %v3013, %v3176
        %3178 = vmatmul.bf16.gmra.mxu0 %v2991
        %v3179 = vpop.f32.mrf.mxu0
        %v3180 = vadd.f32 %v3013, %v3179
        %v3181 = vpop.f32.mrf.mxu0
        %v3182 = vadd.f32 %v3013, %v3181
        %3183 = vmatmul.bf16.gmra.mxu0 %v2992
        %v3184 = vpop.f32.mrf.mxu0
        %v3185 = vadd.f32 %v3013, %v3184
        %v3186 = vpop.f32.mrf.mxu0
        %v3187 = vadd.f32 %v3013, %v3186
        %3188 = vmatmul.bf16.gmra.mxu0 %v2993
        %v3189 = vpop.f32.mrf.mxu0
        %v3190 = vadd.f32 %v3013, %v3189
        %v3191 = vpop.f32.mrf.mxu0
        %v3192 = vadd.f32 %v3013, %v3191
        %3193 = vdwg.mxu0
        %v3194 = vmul.f32 %v3106, %v3106
        %v3195 = vmul.f32 %v3155, %v3155
        %v3196 = vmul.f32 %v3108, %v3108
        %v3197 = vmul.f32 %v3157, %v3157
        %v3198 = vmul.f32 %v3111, %v3111
        %v3199 = vmul.f32 %v3160, %v3160
        %v3200 = vmul.f32 %v3113, %v3113
        %v3201 = vmul.f32 %v3162, %v3162
        %v3202 = vmul.f32 %v3116, %v3116
        %v3203 = vmul.f32 %v3165, %v3165
        %v3204 = vmul.f32 %v3118, %v3118
        %v3205 = vmul.f32 %v3167, %v3167
        %v3206 = vmul.f32 %v3121, %v3121
        %v3207 = vmul.f32 %v3170, %v3170
        %v3208 = vmul.f32 %v3123, %v3123
        %v3209 = vmul.f32 %v3172, %v3172
        %v3210 = vmul.f32 %v3126, %v3126
        %v3211 = vmul.f32 %v3175, %v3175
        %v3212 = vmul.f32 %v3128, %v3128
        %v3213 = vmul.f32 %v3177, %v3177
        %v3214 = vmul.f32 %v3131, %v3131
        %v3215 = vmul.f32 %v3180, %v3180
        %v3216 = vmul.f32 %v3133, %v3133
        %v3217 = vmul.f32 %v3182, %v3182
        %v3218 = vmul.f32 %v3136, %v3136
        %v3219 = vmul.f32 %v3185, %v3185
        %v3220 = vmul.f32 %v3138, %v3138
        %v3221 = vmul.f32 %v3187, %v3187
        %v3222 = vmul.f32 %v3141, %v3141
        %v3223 = vmul.f32 %v3190, %v3190
        %v3224 = vmul.f32 %v3143, %v3143
        %v3225 = vmul.f32 %v3192, %v3192
        %v3226 = vmul.f32 %v3106, %v3194
        %v3227 = vmul.f32 %v3155, %v3195
        %v3228 = vmul.f32 %v3108, %v3196
        %v3229 = vmul.f32 %v3157, %v3197
        %v3230 = vmul.f32 %v3111, %v3198
        %v3231 = vmul.f32 %v3160, %v3199
        %v3232 = vmul.f32 %v3113, %v3200
        %v3233 = vmul.f32 %v3162, %v3201
        %v3234 = vmul.f32 %v3116, %v3202
        %v3235 = vmul.f32 %v3165, %v3203
        %v3236 = vmul.f32 %v3118, %v3204
        %v3237 = vmul.f32 %v3167, %v3205
        %v3238 = vmul.f32 %v3121, %v3206
        %v3239 = vmul.f32 %v3170, %v3207
        %v3240 = vmul.f32 %v3123, %v3208
        %v3241 = vmul.f32 %v3172, %v3209
        %v3242 = vmul.f32 %v3126, %v3210
        %v3243 = vmul.f32 %v3175, %v3211
        %v3244 = vmul.f32 %v3128, %v3212
        %v3245 = vmul.f32 %v3177, %v3213
        %v3246 = vmul.f32 %v3131, %v3214
        %v3247 = vmul.f32 %v3180, %v3215
        %v3248 = vmul.f32 %v3133, %v3216
        %v3249 = vmul.f32 %v3182, %v3217
        %v3250 = vmul.f32 %v3136, %v3218
        %v3251 = vmul.f32 %v3185, %v3219
        %v3252 = vmul.f32 %v3138, %v3220
        %v3253 = vmul.f32 %v3187, %v3221
        %v3254 = vmul.f32 %v3141, %v3222
        %v3255 = vmul.f32 %v3190, %v3223
        %v3256 = vmul.f32 %v3143, %v3224
        %v3257 = vmul.f32 %v3192, %v3225
        %v3258 = vmul.f32 %v3226, 0.044715
        %v3259 = vmul.f32 %v3227, 0.044715
        %v3260 = vmul.f32 %v3228, 0.044715
        %v3261 = vmul.f32 %v3229, 0.044715
        %v3262 = vmul.f32 %v3230, 0.044715
        %v3263 = vmul.f32 %v3231, 0.044715
        %v3264 = vmul.f32 %v3232, 0.044715
        %v3265 = vmul.f32 %v3233, 0.044715
        %v3266 = vmul.f32 %v3234, 0.044715
        %v3267 = vmul.f32 %v3235, 0.044715
        %v3268 = vmul.f32 %v3236, 0.044715
        %v3269 = vmul.f32 %v3237, 0.044715
        %v3270 = vmul.f32 %v3238, 0.044715
        %v3271 = vmul.f32 %v3239, 0.044715
        %v3272 = vmul.f32 %v3240, 0.044715
        %v3273 = vmul.f32 %v3241, 0.044715
        %v3274 = vmul.f32 %v3242, 0.044715
        %v3275 = vmul.f32 %v3243, 0.044715
        %v3276 = vmul.f32 %v3244, 0.044715
        %v3277 = vmul.f32 %v3245, 0.044715
        %v3278 = vmul.f32 %v3246, 0.044715
        %v3279 = vmul.f32 %v3247, 0.044715
        %v3280 = vmul.f32 %v3248, 0.044715
        %v3281 = vmul.f32 %v3249, 0.044715
        %v3282 = vmul.f32 %v3250, 0.044715
        %v3283 = vmul.f32 %v3251, 0.044715
        %v3284 = vmul.f32 %v3252, 0.044715
        %v3285 = vmul.f32 %v3253, 0.044715
        %v3286 = vmul.f32 %v3254, 0.044715
        %v3287 = vmul.f32 %v3255, 0.044715
        %v3288 = vmul.f32 %v3256, 0.044715
        %v3289 = vmul.f32 %v3257, 0.044715
        %v3290 = vadd.f32 %v3106, %v3258
        %v3291 = vadd.f32 %v3155, %v3259
        %v3292 = vadd.f32 %v3108, %v3260
        %v3293 = vadd.f32 %v3157, %v3261
        %v3294 = vadd.f32 %v3111, %v3262
        %v3295 = vadd.f32 %v3160, %v3263
        %v3296 = vadd.f32 %v3113, %v3264
        %v3297 = vadd.f32 %v3162, %v3265
        %v3298 = vadd.f32 %v3116, %v3266
        %v3299 = vadd.f32 %v3165, %v3267
        %v3300 = vadd.f32 %v3118, %v3268
        %v3301 = vadd.f32 %v3167, %v3269
        %v3302 = vadd.f32 %v3121, %v3270
        %v3303 = vadd.f32 %v3170, %v3271
        %v3304 = vadd.f32 %v3123, %v3272
        %v3305 = vadd.f32 %v3172, %v3273
        %v3306 = vadd.f32 %v3126, %v3274
        %v3307 = vadd.f32 %v3175, %v3275
        %v3308 = vadd.f32 %v3128, %v3276
        %v3309 = vadd.f32 %v3177, %v3277
        %v3310 = vadd.f32 %v3131, %v3278
        %v3311 = vadd.f32 %v3180, %v3279
        %v3312 = vadd.f32 %v3133, %v3280
        %v3313 = vadd.f32 %v3182, %v3281
        %v3314 = vadd.f32 %v3136, %v3282
        %v3315 = vadd.f32 %v3185, %v3283
        %v3316 = vadd.f32 %v3138, %v3284
        %v3317 = vadd.f32 %v3187, %v3285
        %v3318 = vadd.f32 %v3141, %v3286
        %v3319 = vadd.f32 %v3190, %v3287
        %v3320 = vadd.f32 %v3143, %v3288
        %v3321 = vadd.f32 %v3192, %v3289
        %v3322 = vmul.f32 %v3290, 0.7978846
        %v3323 = vmul.f32 %v3291, 0.7978846
        %v3324 = vmul.f32 %v3292, 0.7978846
        %v3325 = vmul.f32 %v3293, 0.7978846
        %v3326 = vmul.f32 %v3294, 0.7978846
        %v3327 = vmul.f32 %v3295, 0.7978846
        %v3328 = vmul.f32 %v3296, 0.7978846
        %v3329 = vmul.f32 %v3297, 0.7978846
        %v3330 = vmul.f32 %v3298, 0.7978846
        %v3331 = vmul.f32 %v3299, 0.7978846
        %v3332 = vmul.f32 %v3300, 0.7978846
        %v3333 = vmul.f32 %v3301, 0.7978846
        %v3334 = vmul.f32 %v3302, 0.7978846
        %v3335 = vmul.f32 %v3303, 0.7978846
        %v3336 = vmul.f32 %v3304, 0.7978846
        %v3337 = vmul.f32 %v3305, 0.7978846
        %v3338 = vmul.f32 %v3306, 0.7978846
        %v3339 = vmul.f32 %v3307, 0.7978846
        %v3340 = vmul.f32 %v3308, 0.7978846
        %v3341 = vmul.f32 %v3309, 0.7978846
        %v3342 = vmul.f32 %v3310, 0.7978846
        %v3343 = vmul.f32 %v3311, 0.7978846
        %v3344 = vmul.f32 %v3312, 0.7978846
        %v3345 = vmul.f32 %v3313, 0.7978846
        %v3346 = vmul.f32 %v3314, 0.7978846
        %v3347 = vmul.f32 %v3315, 0.7978846
        %v3348 = vmul.f32 %v3316, 0.7978846
        %v3349 = vmul.f32 %v3317, 0.7978846
        %v3350 = vmul.f32 %v3318, 0.7978846
        %v3351 = vmul.f32 %v3319, 0.7978846
        %v3352 = vmul.f32 %v3320, 0.7978846
        %v3353 = vmul.f32 %v3321, 0.7978846
        %v3354 = vtanh.pop %v3322
        %v3355 = vtanh.pop %v3323
        %v3356 = vtanh.pop %v3324
        %v3357 = vtanh.pop %v3325
        %v3358 = vtanh.pop %v3326
        %v3359 = vtanh.pop %v3327
        %v3360 = vtanh.pop %v3328
        %v3361 = vtanh.pop %v3329
        %v3362 = vtanh.pop %v3330
        %v3363 = vtanh.pop %v3331
        %v3364 = vtanh.pop %v3332
        %v3365 = vtanh.pop %v3333
        %v3366 = vtanh.pop %v3334
        %v3367 = vtanh.pop %v3335
        %v3368 = vtanh.pop %v3336
        %v3369 = vtanh.pop %v3337
        %v3370 = vtanh.pop %v3338
        %v3371 = vtanh.pop %v3339
        %v3372 = vtanh.pop %v3340
        %v3373 = vtanh.pop %v3341
        %v3374 = vtanh.pop %v3342
        %v3375 = vtanh.pop %v3343
        %v3376 = vtanh.pop %v3344
        %v3377 = vtanh.pop %v3345
        %v3378 = vtanh.pop %v3346
        %v3379 = vtanh.pop %v3347
        %v3380 = vtanh.pop %v3348
        %v3381 = vtanh.pop %v3349
        %v3382 = vtanh.pop %v3350
        %v3383 = vtanh.pop %v3351
        %v3384 = vtanh.pop %v3352
        %v3385 = vtanh.pop %v3353
        %v3386 = vadd.f32 %v3354, 1.0
        %v3387 = vadd.f32 %v3355, 1.0
        %v3388 = vadd.f32 %v3356, 1.0
        %v3389 = vadd.f32 %v3357, 1.0
        %v3390 = vadd.f32 %v3358, 1.0
        %v3391 = vadd.f32 %v3359, 1.0
        %v3392 = vadd.f32 %v3360, 1.0
        %v3393 = vadd.f32 %v3361, 1.0
        %v3394 = vadd.f32 %v3362, 1.0
        %v3395 = vadd.f32 %v3363, 1.0
        %v3396 = vadd.f32 %v3364, 1.0
        %v3397 = vadd.f32 %v3365, 1.0
        %v3398 = vadd.f32 %v3366, 1.0
        %v3399 = vadd.f32 %v3367, 1.0
        %v3400 = vadd.f32 %v3368, 1.0
        %v3401 = vadd.f32 %v3369, 1.0
        %v3402 = vadd.f32 %v3370, 1.0
        %v3403 = vadd.f32 %v3371, 1.0
        %v3404 = vadd.f32 %v3372, 1.0
        %v3405 = vadd.f32 %v3373, 1.0
        %v3406 = vadd.f32 %v3374, 1.0
        %v3407 = vadd.f32 %v3375, 1.0
        %v3408 = vadd.f32 %v3376, 1.0
        %v3409 = vadd.f32 %v3377, 1.0
        %v3410 = vadd.f32 %v3378, 1.0
        %v3411 = vadd.f32 %v3379, 1.0
        %v3412 = vadd.f32 %v3380, 1.0
        %v3413 = vadd.f32 %v3381, 1.0
        %v3414 = vadd.f32 %v3382, 1.0
        %v3415 = vadd.f32 %v3383, 1.0
        %v3416 = vadd.f32 %v3384, 1.0
        %v3417 = vadd.f32 %v3385, 1.0
        %v3418 = vmul.f32 %v3386, 0.5
        %v3419 = vmul.f32 %v3387, 0.5
        %v3420 = vmul.f32 %v3388, 0.5
        %v3421 = vmul.f32 %v3389, 0.5
        %v3422 = vmul.f32 %v3390, 0.5
        %v3423 = vmul.f32 %v3391, 0.5
        %v3424 = vmul.f32 %v3392, 0.5
        %v3425 = vmul.f32 %v3393, 0.5
        %v3426 = vmul.f32 %v3394, 0.5
        %v3427 = vmul.f32 %v3395, 0.5
        %v3428 = vmul.f32 %v3396, 0.5
        %v3429 = vmul.f32 %v3397, 0.5
        %v3430 = vmul.f32 %v3398, 0.5
        %v3431 = vmul.f32 %v3399, 0.5
        %v3432 = vmul.f32 %v3400, 0.5
        %v3433 = vmul.f32 %v3401, 0.5
        %v3434 = vmul.f32 %v3402, 0.5
        %v3435 = vmul.f32 %v3403, 0.5
        %v3436 = vmul.f32 %v3404, 0.5
        %v3437 = vmul.f32 %v3405, 0.5
        %v3438 = vmul.f32 %v3406, 0.5
        %v3439 = vmul.f32 %v3407, 0.5
        %v3440 = vmul.f32 %v3408, 0.5
        %v3441 = vmul.f32 %v3409, 0.5
        %v3442 = vmul.f32 %v3410, 0.5
        %v3443 = vmul.f32 %v3411, 0.5
        %v3444 = vmul.f32 %v3412, 0.5
        %v3445 = vmul.f32 %v3413, 0.5
        %v3446 = vmul.f32 %v3414, 0.5
        %v3447 = vmul.f32 %v3415, 0.5
        %v3448 = vmul.f32 %v3416, 0.5
        %v3449 = vmul.f32 %v3417, 0.5
        %v3450 = vmul.f32 %v3106, %v3418
        %v3451 = vmul.f32 %v3155, %v3419
        %v3452 = vmul.f32 %v3108, %v3420
        %v3453 = vmul.f32 %v3157, %v3421
        %v3454 = vmul.f32 %v3111, %v3422
        %v3455 = vmul.f32 %v3160, %v3423
        %v3456 = vmul.f32 %v3113, %v3424
        %v3457 = vmul.f32 %v3162, %v3425
        %v3458 = vmul.f32 %v3116, %v3426
        %v3459 = vmul.f32 %v3165, %v3427
        %v3460 = vmul.f32 %v3118, %v3428
        %v3461 = vmul.f32 %v3167, %v3429
        %v3462 = vmul.f32 %v3121, %v3430
        %v3463 = vmul.f32 %v3170, %v3431
        %v3464 = vmul.f32 %v3123, %v3432
        %v3465 = vmul.f32 %v3172, %v3433
        %v3466 = vmul.f32 %v3126, %v3434
        %v3467 = vmul.f32 %v3175, %v3435
        %v3468 = vmul.f32 %v3128, %v3436
        %v3469 = vmul.f32 %v3177, %v3437
        %v3470 = vmul.f32 %v3131, %v3438
        %v3471 = vmul.f32 %v3180, %v3439
        %v3472 = vmul.f32 %v3133, %v3440
        %v3473 = vmul.f32 %v3182, %v3441
        %v3474 = vmul.f32 %v3136, %v3442
        %v3475 = vmul.f32 %v3185, %v3443
        %v3476 = vmul.f32 %v3138, %v3444
        %v3477 = vmul.f32 %v3187, %v3445
        %v3478 = vmul.f32 %v3141, %v3446
        %v3479 = vmul.f32 %v3190, %v3447
        %v3480 = vmul.f32 %v3143, %v3448
        %v3481 = vmul.f32 %v3192, %v3449
        %v3482 = vpack.c.bf16 %v3452, %v3450
        %v3483 = vpack.c.bf16 %v3453, %v3451
        %v3484 = vpack.c.bf16 %v3456, %v3454
        %v3485 = vpack.c.bf16 %v3457, %v3455
        %v3486 = vpack.c.bf16 %v3460, %v3458
        %v3487 = vpack.c.bf16 %v3461, %v3459
        %v3488 = vpack.c.bf16 %v3464, %v3462
        %v3489 = vpack.c.bf16 %v3465, %v3463
        %v3490 = vpack.c.bf16 %v3468, %v3466
        %v3491 = vpack.c.bf16 %v3469, %v3467
        %v3492 = vpack.c.bf16 %v3472, %v3470
        %v3493 = vpack.c.bf16 %v3473, %v3471
        %v3494 = vpack.c.bf16 %v3476, %v3474
        %v3495 = vpack.c.bf16 %v3477, %v3475
        %v3496 = vpack.c.bf16 %v3480, %v3478
        %v3497 = vpack.c.bf16 %v3481, %v3479
        %v3498 = vld [vmem:[%s787] sm:$0xf]
        %v3499 = vld [vmem:[%s787 + $0x4] sm:$0xf]
        %v3500 = vld [vmem:[%s787 + $0x8] sm:$0xf]
        %v3501 = vld [vmem:[%s787 + $0xc] sm:$0xf]
        %v3502 = vld [vmem:[%s787 + $0x10] sm:$0xf]
        %v3503 = vld [vmem:[%s787 + $0x14] sm:$0xf]
        %v3504 = vld [vmem:[%s787 + $0x18] sm:$0xf]
        %v3505 = vld [vmem:[%s787 + $0x1c] sm:$0xf]
        %v3506 = vld [vmem:[%s787 + $0x20] sm:$0xf]
        %v3507 = vld [vmem:[%s787 + $0x24] sm:$0xf]
        %v3508 = vld [vmem:[%s787 + $0x28] sm:$0xf]
        %v3509 = vld [vmem:[%s787 + $0x2c] sm:$0xf]
        %v3510 = vld [vmem:[%s787 + $0x30] sm:$0xf]
        %v3511 = vld [vmem:[%s787 + $0x34] sm:$0xf]
        %v3512 = vld [vmem:[%s787 + $0x38] sm:$0xf]
        %v3513 = vld [vmem:[%s787 + $0x3c] sm:$0xf]
        %v3514 = vld [vmem:[%s787 + $0x40] sm:$0xf]
        %v3515 = vld [vmem:[%s787 + $0x44] sm:$0xf]
        %v3516 = vld [vmem:[%s787 + $0x48] sm:$0xf]
        %v3517 = vld [vmem:[%s787 + $0x4c] sm:$0xf]
        %v3518 = vld [vmem:[%s787 + $0x50] sm:$0xf]
        %v3519 = vld [vmem:[%s787 + $0x54] sm:$0xf]
        %v3520 = vld [vmem:[%s787 + $0x58] sm:$0xf]
        %v3521 = vld [vmem:[%s787 + $0x5c] sm:$0xf]
        %v3522 = vld [vmem:[%s787 + $0x60] sm:$0xf]
        %v3523 = vld [vmem:[%s787 + $0x64] sm:$0xf]
        %v3524 = vld [vmem:[%s787 + $0x68] sm:$0xf]
        %v3525 = vld [vmem:[%s787 + $0x6c] sm:$0xf]
        %v3526 = vld [vmem:[%s787 + $0x70] sm:$0xf]
        %v3527 = vld [vmem:[%s787 + $0x74] sm:$0xf]
        %v3528 = vld [vmem:[%s787 + $0x78] sm:$0xf]
        %v3529 = vld [vmem:[%s787 + $0x7c] sm:$0xf]
        %v3530 = vld [vmem:[%s790] sm:$0x1]
        %v3532 = vperm.slane %v3530, 0
        %v3566 = vunpack.c.l.b16 %v3498
        %v3567 = vunpack.c.l.b16 %v3499
        %v3568 = vunpack.c.l.b16 %v3500
        %v3569 = vunpack.c.l.b16 %v3501
        %v3570 = vunpack.c.l.b16 %v3502
        %v3571 = vunpack.c.l.b16 %v3503
        %v3572 = vunpack.c.l.b16 %v3504
        %v3573 = vunpack.c.l.b16 %v3505
        %v3574 = vunpack.c.l.b16 %v3506
        %v3575 = vunpack.c.l.b16 %v3507
        %v3576 = vunpack.c.l.b16 %v3508
        %v3577 = vunpack.c.l.b16 %v3509
        %v3578 = vunpack.c.l.b16 %v3510
        %v3579 = vunpack.c.l.b16 %v3511
        %v3580 = vunpack.c.l.b16 %v3512
        %v3581 = vunpack.c.l.b16 %v3513
        %v3582 = vunpack.c.l.b16 %v3514
        %v3583 = vunpack.c.l.b16 %v3515
        %v3584 = vunpack.c.l.b16 %v3516
        %v3585 = vunpack.c.l.b16 %v3517
        %v3586 = vunpack.c.l.b16 %v3518
        %v3587 = vunpack.c.l.b16 %v3519
        %v3588 = vunpack.c.l.b16 %v3520
        %v3589 = vunpack.c.l.b16 %v3521
        %v3590 = vunpack.c.l.b16 %v3522
        %v3591 = vunpack.c.l.b16 %v3523
        %v3592 = vunpack.c.l.b16 %v3524
        %v3593 = vunpack.c.l.b16 %v3525
        %v3594 = vunpack.c.l.b16 %v3526
        %v3595 = vunpack.c.l.b16 %v3527
        %v3596 = vunpack.c.l.b16 %v3528
        %v3597 = vunpack.c.l.b16 %v3529
        %v3598 = vpack.c.b16 %v3567, %v3566
        %v3599 = vpack.c.b16 %v3569, %v3568
        %v3600 = vpack.c.b16 %v3571, %v3570
        %v3601 = vpack.c.b16 %v3573, %v3572
        %v3602 = vpack.c.b16 %v3575, %v3574
        %v3603 = vpack.c.b16 %v3577, %v3576
        %v3604 = vpack.c.b16 %v3579, %v3578
        %v3605 = vpack.c.b16 %v3581, %v3580
        %v3606 = vpack.c.b16 %v3583, %v3582
        %v3607 = vpack.c.b16 %v3585, %v3584
        %v3608 = vpack.c.b16 %v3587, %v3586
        %v3609 = vpack.c.b16 %v3589, %v3588
        %v3610 = vpack.c.b16 %v3591, %v3590
        %v3611 = vpack.c.b16 %v3593, %v3592
        %v3612 = vpack.c.b16 %v3595, %v3594
        %v3613 = vpack.c.b16 %v3597, %v3596
        %3630 = vmatpush.bf16.msra.mxu0 %v3605
        %3631 = vmatpush.bf16.msra.mxu0 %v3604
        %3632 = vmatpush.bf16.msra.mxu0 %v3603
        %3633 = vmatpush.bf16.msra.mxu0 %v3602
        %3634 = vmatpush.bf16.msra.mxu0 %v3601
        %3635 = vmatpush.bf16.msra.mxu0 %v3600
        %3636 = vmatpush.bf16.msra.mxu0 %v3599
        %3637 = vmatpush.bf16.msra.mxu0 %v3598
        %3638 = vmatmul.bf16.gmra.mxu0 %v3482
        %v3639 = vpop.f32.mrf.mxu0
        %v3640 = vadd.f32 %v3532, %v3639
        %v3641 = vpop.f32.mrf.mxu0
        %v3642 = vadd.f32 %v3532, %v3641
        %3643 = vmatmul.bf16.gmra.mxu0 %v3484
        %v3644 = vpop.f32.mrf.mxu0
        %v3645 = vadd.f32 %v3532, %v3644
        %v3646 = vpop.f32.mrf.mxu0
        %v3647 = vadd.f32 %v3532, %v3646
        %3648 = vmatmul.bf16.gmra.mxu0 %v3486
        %v3649 = vpop.f32.mrf.mxu0
        %v3650 = vadd.f32 %v3532, %v3649
        %v3651 = vpop.f32.mrf.mxu0
        %v3652 = vadd.f32 %v3532, %v3651
        %3653 = vmatmul.bf16.gmra.mxu0 %v3488
        %v3654 = vpop.f32.mrf.mxu0
        %v3655 = vadd.f32 %v3532, %v3654
        %v3656 = vpop.f32.mrf.mxu0
        %v3657 = vadd.f32 %v3532, %v3656
        %3658 = vmatmul.bf16.gmra.mxu0 %v3490
        %v3659 = vpop.f32.mrf.mxu0
        %v3660 = vadd.f32 %v3532, %v3659
        %v3661 = vpop.f32.mrf.mxu0
        %v3662 = vadd.f32 %v3532, %v3661
        %3663 = vmatmul.bf16.gmra.mxu0 %v3492
        %v3664 = vpop.f32.mrf.mxu0
        %v3665 = vadd.f32 %v3532, %v3664
        %v3666 = vpop.f32.mrf.mxu0
        %v3667 = vadd.f32 %v3532, %v3666
        %3668 = vmatmul.bf16.gmra.mxu0 %v3494
        %v3669 = vpop.f32.mrf.mxu0
        %v3670 = vadd.f32 %v3532, %v3669
        %v3671 = vpop.f32.mrf.mxu0
        %v3672 = vadd.f32 %v3532, %v3671
        %3673 = vmatmul.bf16.gmra.mxu0 %v3496
        %v3674 = vpop.f32.mrf.mxu0
        %v3675 = vadd.f32 %v3532, %v3674
        %v3676 = vpop.f32.mrf.mxu0
        %v3677 = vadd.f32 %v3532, %v3676
        %3678 = vdwg.mxu0
        %3679 = vmatpush.bf16.msra.mxu0 %v3613
        %3680 = vmatpush.bf16.msra.mxu0 %v3612
        %3681 = vmatpush.bf16.msra.mxu0 %v3611
        %3682 = vmatpush.bf16.msra.mxu0 %v3610
        %3683 = vmatpush.bf16.msra.mxu0 %v3609
        %3684 = vmatpush.bf16.msra.mxu0 %v3608
        %3685 = vmatpush.bf16.msra.mxu0 %v3607
        %3686 = vmatpush.bf16.msra.mxu0 %v3606
        %3687 = vmatmul.bf16.gmra.mxu0 %v3483
        %v3688 = vpop.f32.mrf.mxu0
        %v3689 = vadd.f32 %v3640, %v3688
        %v3690 = vpop.f32.mrf.mxu0
        %v3691 = vadd.f32 %v3642, %v3690
        %3692 = vmatmul.bf16.gmra.mxu0 %v3485
        %v3693 = vpop.f32.mrf.mxu0
        %v3694 = vadd.f32 %v3645, %v3693
        %v3695 = vpop.f32.mrf.mxu0
        %v3696 = vadd.f32 %v3647, %v3695
        %3697 = vmatmul.bf16.gmra.mxu0 %v3487
        %v3698 = vpop.f32.mrf.mxu0
        %v3699 = vadd.f32 %v3650, %v3698
        %v3700 = vpop.f32.mrf.mxu0
        %v3701 = vadd.f32 %v3652, %v3700
        %3702 = vmatmul.bf16.gmra.mxu0 %v3489
        %v3703 = vpop.f32.mrf.mxu0
        %v3704 = vadd.f32 %v3655, %v3703
        %v3705 = vpop.f32.mrf.mxu0
        %v3706 = vadd.f32 %v3657, %v3705
        %3707 = vmatmul.bf16.gmra.mxu0 %v3491
        %v3708 = vpop.f32.mrf.mxu0
        %v3709 = vadd.f32 %v3660, %v3708
        %v3710 = vpop.f32.mrf.mxu0
        %v3711 = vadd.f32 %v3662, %v3710
        %3712 = vmatmul.bf16.gmra.mxu0 %v3493
        %v3713 = vpop.f32.mrf.mxu0
        %v3714 = vadd.f32 %v3665, %v3713
        %v3715 = vpop.f32.mrf.mxu0
        %v3716 = vadd.f32 %v3667, %v3715
        %3717 = vmatmul.bf16.gmra.mxu0 %v3495
        %v3718 = vpop.f32.mrf.mxu0
        %v3719 = vadd.f32 %v3670, %v3718
        %v3720 = vpop.f32.mrf.mxu0
        %v3721 = vadd.f32 %v3672, %v3720
        %3722 = vmatmul.bf16.gmra.mxu0 %v3497
        %v3723 = vpop.f32.mrf.mxu0
        %v3724 = vadd.f32 %v3675, %v3723
        %v3725 = vpop.f32.mrf.mxu0
        %v3726 = vadd.f32 %v3677, %v3725
        %3727 = vdwg.mxu0
        %v3728 = vadd.f32 %v3689, %v2970
        %v3729 = vadd.f32 %v3691, %v2971
        %v3730 = vadd.f32 %v3694, %v2972
        %v3731 = vadd.f32 %v3696, %v2973
        %v3732 = vadd.f32 %v3699, %v2974
        %v3733 = vadd.f32 %v3701, %v2975
        %v3734 = vadd.f32 %v3704, %v2976
        %v3735 = vadd.f32 %v3706, %v2977
        %v3736 = vadd.f32 %v3709, %v2978
        %v3737 = vadd.f32 %v3711, %v2979
        %v3738 = vadd.f32 %v3714, %v2980
        %v3739 = vadd.f32 %v3716, %v2981
        %v3740 = vadd.f32 %v3719, %v2982
        %v3741 = vadd.f32 %v3721, %v2983
        %v3742 = vadd.f32 %v3724, %v2984
        %v3743 = vadd.f32 %v3726, %v2985
        %v3744 = vld [vmem:[%s793] sm:$0x1]
        %v3745 = vld [vmem:[%s796] sm:$0x1]
        %3746 = vadd.xlane.f32.xlu0 %v3728
        %v3747 = vpop.xlane.xlu0 %3746
        %3748 = vadd.xlane.f32.xlu0 %v3729
        %v3749 = vpop.xlane.xlu0 %3748
        %3750 = vadd.xlane.f32.xlu0 %v3730
        %v3751 = vpop.xlane.xlu0 %3750
        %3752 = vadd.xlane.f32.xlu0 %v3731
        %v3753 = vpop.xlane.xlu0 %3752
        %3754 = vadd.xlane.f32.xlu0 %v3732
        %v3755 = vpop.xlane.xlu0 %3754
        %3756 = vadd.xlane.f32.xlu0 %v3733
        %v3757 = vpop.xlane.xlu0 %3756
        %3758 = vadd.xlane.f32.xlu0 %v3734
        %v3759 = vpop.xlane.xlu0 %3758
        %3760 = vadd.xlane.f32.xlu0 %v3735
        %v3761 = vpop.xlane.xlu0 %3760
        %3762 = vadd.xlane.f32.xlu0 %v3736
        %v3763 = vpop.xlane.xlu0 %3762
        %3764 = vadd.xlane.f32.xlu0 %v3737
        %v3765 = vpop.xlane.xlu0 %3764
        %3766 = vadd.xlane.f32.xlu0 %v3738
        %v3767 = vpop.xlane.xlu0 %3766
        %3768 = vadd.xlane.f32.xlu0 %v3739
        %v3769 = vpop.xlane.xlu0 %3768
        %3770 = vadd.xlane.f32.xlu0 %v3740
        %v3771 = vpop.xlane.xlu0 %3770
        %3772 = vadd.xlane.f32.xlu0 %v3741
        %v3773 = vpop.xlane.xlu0 %3772
        %3774 = vadd.xlane.f32.xlu0 %v3742
        %v3775 = vpop.xlane.xlu0 %3774
        %3776 = vadd.xlane.f32.xlu0 %v3743
        %v3777 = vpop.xlane.xlu0 %3776
        %v3778 = vmul.f32 %v3747, %v2659
        %v3779 = vmul.f32 %v3749, %v2659
        %v3780 = vmul.f32 %v3751, %v2659
        %v3781 = vmul.f32 %v3753, %v2659
        %v3782 = vmul.f32 %v3755, %v2659
        %v3783 = vmul.f32 %v3757, %v2659
        %v3784 = vmul.f32 %v3759, %v2659
        %v3785 = vmul.f32 %v3761, %v2659
        %v3786 = vmul.f32 %v3763, %v2659
        %v3787 = vmul.f32 %v3765, %v2659
        %v3788 = vmul.f32 %v3767, %v2659
        %v3789 = vmul.f32 %v3769, %v2659
        %v3790 = vmul.f32 %v3771, %v2659
        %v3791 = vmul.f32 %v3773, %v2659
        %v3792 = vmul.f32 %v3775, %v2659
        %v3793 = vmul.f32 %v3777, %v2659
        %v3794 = vsub.f32 %v3728, %v3778
        %v3795 = vsub.f32 %v3729, %v3779
        %v3796 = vsub.f32 %v3730, %v3780
        %v3797 = vsub.f32 %v3731, %v3781
        %v3798 = vsub.f32 %v3732, %v3782
        %v3799 = vsub.f32 %v3733, %v3783
        %v3800 = vsub.f32 %v3734, %v3784
        %v3801 = vsub.f32 %v3735, %v3785
        %v3802 = vsub.f32 %v3736, %v3786
        %v3803 = vsub.f32 %v3737, %v3787
        %v3804 = vsub.f32 %v3738, %v3788
        %v3805 = vsub.f32 %v3739, %v3789
        %v3806 = vsub.f32 %v3740, %v3790
        %v3807 = vsub.f32 %v3741, %v3791
        %v3808 = vsub.f32 %v3742, %v3792
        %v3809 = vsub.f32 %v3743, %v3793
        %v3810 = vmul.f32 %v3794, %v3794
        %v3811 = vmul.f32 %v3795, %v3795
        %v3812 = vmul.f32 %v3796, %v3796
        %v3813 = vmul.f32 %v3797, %v3797
        %v3814 = vmul.f32 %v3798, %v3798
        %v3815 = vmul.f32 %v3799, %v3799
        %v3816 = vmul.f32 %v3800, %v3800
        %v3817 = vmul.f32 %v3801, %v3801
        %v3818 = vmul.f32 %v3802, %v3802
        %v3819 = vmul.f32 %v3803, %v3803
        %v3820 = vmul.f32 %v3804, %v3804
        %v3821 = vmul.f32 %v3805, %v3805
        %v3822 = vmul.f32 %v3806, %v3806
        %v3823 = vmul.f32 %v3807, %v3807
        %v3824 = vmul.f32 %v3808, %v3808
        %v3825 = vmul.f32 %v3809, %v3809
        %3826 = vadd.xlane.f32.xlu0 %v3810
        %v3827 = vpop.xlane.xlu0 %3826
        %3828 = vadd.xlane.f32.xlu0 %v3811
        %v3829 = vpop.xlane.xlu0 %3828
        %3830 = vadd.xlane.f32.xlu0 %v3812
        %v3831 = vpop.xlane.xlu0 %3830
        %3832 = vadd.xlane.f32.xlu0 %v3813
        %v3833 = vpop.xlane.xlu0 %3832
        %3834 = vadd.xlane.f32.xlu0 %v3814
        %v3835 = vpop.xlane.xlu0 %3834
        %3836 = vadd.xlane.f32.xlu0 %v3815
        %v3837 = vpop.xlane.xlu0 %3836
        %3838 = vadd.xlane.f32.xlu0 %v3816
        %v3839 = vpop.xlane.xlu0 %3838
        %3840 = vadd.xlane.f32.xlu0 %v3817
        %v3841 = vpop.xlane.xlu0 %3840
        %3842 = vadd.xlane.f32.xlu0 %v3818
        %v3843 = vpop.xlane.xlu0 %3842
        %3844 = vadd.xlane.f32.xlu0 %v3819
        %v3845 = vpop.xlane.xlu0 %3844
        %3846 = vadd.xlane.f32.xlu0 %v3820
        %v3847 = vpop.xlane.xlu0 %3846
        %3848 = vadd.xlane.f32.xlu0 %v3821
        %v3849 = vpop.xlane.xlu0 %3848
        %3850 = vadd.xlane.f32.xlu0 %v3822
        %v3851 = vpop.xlane.xlu0 %3850
        %3852 = vadd.xlane.f32.xlu0 %v3823
        %v3853 = vpop.xlane.xlu0 %3852
        %3854 = vadd.xlane.f32.xlu0 %v3824
        %v3855 = vpop.xlane.xlu0 %3854
        %3856 = vadd.xlane.f32.xlu0 %v3825
        %v3857 = vpop.xlane.xlu0 %3856
        %v3858 = vmul.f32 %v3827, %v2659
        %v3859 = vmul.f32 %v3829, %v2659
        %v3860 = vmul.f32 %v3831, %v2659
        %v3861 = vmul.f32 %v3833, %v2659
        %v3862 = vmul.f32 %v3835, %v2659
        %v3863 = vmul.f32 %v3837, %v2659
        %v3864 = vmul.f32 %v3839, %v2659
        %v3865 = vmul.f32 %v3841, %v2659
        %v3866 = vmul.f32 %v3843, %v2659
        %v3867 = vmul.f32 %v3845, %v2659
        %v3868 = vmul.f32 %v3847, %v2659
        %v3869 = vmul.f32 %v3849, %v2659
        %v3870 = vmul.f32 %v3851, %v2659
        %v3871 = vmul.f32 %v3853, %v2659
        %v3872 = vmul.f32 %v3855, %v2659
        %v3873 = vmul.f32 %v3857, %v2659
        %v3874 = vadd.f32 %v3858, 1e-12
        %v3875 = vadd.f32 %v3859, 1e-12
        %v3876 = vadd.f32 %v3860, 1e-12
        %v3877 = vadd.f32 %v3861, 1e-12
        %v3878 = vadd.f32 %v3862, 1e-12
        %v3879 = vadd.f32 %v3863, 1e-12
        %v3880 = vadd.f32 %v3864, 1e-12
        %v3881 = vadd.f32 %v3865, 1e-12
        %v3882 = vadd.f32 %v3866, 1e-12
        %v3883 = vadd.f32 %v3867, 1e-12
        %v3884 = vadd.f32 %v3868, 1e-12
        %v3885 = vadd.f32 %v3869, 1e-12
        %v3886 = vadd.f32 %v3870, 1e-12
        %v3887 = vadd.f32 %v3871, 1e-12
        %v3888 = vadd.f32 %v3872, 1e-12
        %v3889 = vadd.f32 %v3873, 1e-12
        %v3890 = vrsqrt.pop %v3874
        %v3891 = vmul.f32 %v3890, %v3874
        %v3892 = vmul.f32 %v3891, %v3890
        %v3893 = vmul.f32 0.5, %v3892
        %v3894 = vsub.f32 1.5, %v3893
        %v3895 = vmul.f32 %v3890, %v3894
        %vm3896 = vweird.f32 %v3874
        %vm3897 = vweird.f32 %v3890
        %vm3898 = vmor %vm3896, %vm3897
        %v3899 = vsel %vm3898, %v3890, %v3895
        %v3900 = vrsqrt.pop %v3875
        %v3901 = vmul.f32 %v3900, %v3875
        %v3902 = vmul.f32 %v3901, %v3900
        %v3903 = vmul.f32 0.5, %v3902
        %v3904 = vsub.f32 1.5, %v3903
        %v3905 = vmul.f32 %v3900, %v3904
        %vm3906 = vweird.f32 %v3875
        %vm3907 = vweird.f32 %v3900
        %vm3908 = vmor %vm3906, %vm3907
        %v3909 = vsel %vm3908, %v3900, %v3905
        %v3910 = vrsqrt.pop %v3876
        %v3911 = vmul.f32 %v3910, %v3876
        %v3912 = vmul.f32 %v3911, %v3910
        %v3913 = vmul.f32 0.5, %v3912
        %v3914 = vsub.f32 1.5, %v3913
        %v3915 = vmul.f32 %v3910, %v3914
        %vm3916 = vweird.f32 %v3876
        %vm3917 = vweird.f32 %v3910
        %vm3918 = vmor %vm3916, %vm3917
        %v3919 = vsel %vm3918, %v3910, %v3915
        %v3920 = vrsqrt.pop %v3877
        %v3921 = vmul.f32 %v3920, %v3877
        %v3922 = vmul.f32 %v3921, %v3920
        %v3923 = vmul.f32 0.5, %v3922
        %v3924 = vsub.f32 1.5, %v3923
        %v3925 = vmul.f32 %v3920, %v3924
        %vm3926 = vweird.f32 %v3877
        %vm3927 = vweird.f32 %v3920
        %vm3928 = vmor %vm3926, %vm3927
        %v3929 = vsel %vm3928, %v3920, %v3925
        %v3930 = vrsqrt.pop %v3878
        %v3931 = vmul.f32 %v3930, %v3878
        %v3932 = vmul.f32 %v3931, %v3930
        %v3933 = vmul.f32 0.5, %v3932
        %v3934 = vsub.f32 1.5, %v3933
        %v3935 = vmul.f32 %v3930, %v3934
        %vm3936 = vweird.f32 %v3878
        %vm3937 = vweird.f32 %v3930
        %vm3938 = vmor %vm3936, %vm3937
        %v3939 = vsel %vm3938, %v3930, %v3935
        %v3940 = vrsqrt.pop %v3879
        %v3941 = vmul.f32 %v3940, %v3879
        %v3942 = vmul.f32 %v3941, %v3940
        %v3943 = vmul.f32 0.5, %v3942
        %v3944 = vsub.f32 1.5, %v3943
        %v3945 = vmul.f32 %v3940, %v3944
        %vm3946 = vweird.f32 %v3879
        %vm3947 = vweird.f32 %v3940
        %vm3948 = vmor %vm3946, %vm3947
        %v3949 = vsel %vm3948, %v3940, %v3945
        %v3950 = vrsqrt.pop %v3880
        %v3951 = vmul.f32 %v3950, %v3880
        %v3952 = vmul.f32 %v3951, %v3950
        %v3953 = vmul.f32 0.5, %v3952
        %v3954 = vsub.f32 1.5, %v3953
        %v3955 = vmul.f32 %v3950, %v3954
        %vm3956 = vweird.f32 %v3880
        %vm3957 = vweird.f32 %v3950
        %vm3958 = vmor %vm3956, %vm3957
        %v3959 = vsel %vm3958, %v3950, %v3955
        %v3960 = vrsqrt.pop %v3881
        %v3961 = vmul.f32 %v3960, %v3881
        %v3962 = vmul.f32 %v3961, %v3960
        %v3963 = vmul.f32 0.5, %v3962
        %v3964 = vsub.f32 1.5, %v3963
        %v3965 = vmul.f32 %v3960, %v3964
        %vm3966 = vweird.f32 %v3881
        %vm3967 = vweird.f32 %v3960
        %vm3968 = vmor %vm3966, %vm3967
        %v3969 = vsel %vm3968, %v3960, %v3965
        %v3970 = vrsqrt.pop %v3882
        %v3971 = vmul.f32 %v3970, %v3882
        %v3972 = vmul.f32 %v3971, %v3970
        %v3973 = vmul.f32 0.5, %v3972
        %v3974 = vsub.f32 1.5, %v3973
        %v3975 = vmul.f32 %v3970, %v3974
        %vm3976 = vweird.f32 %v3882
        %vm3977 = vweird.f32 %v3970
        %vm3978 = vmor %vm3976, %vm3977
        %v3979 = vsel %vm3978, %v3970, %v3975
        %v3980 = vrsqrt.pop %v3883
        %v3981 = vmul.f32 %v3980, %v3883
        %v3982 = vmul.f32 %v3981, %v3980
        %v3983 = vmul.f32 0.5, %v3982
        %v3984 = vsub.f32 1.5, %v3983
        %v3985 = vmul.f32 %v3980, %v3984
        %vm3986 = vweird.f32 %v3883
        %vm3987 = vweird.f32 %v3980
        %vm3988 = vmor %vm3986, %vm3987
        %v3989 = vsel %vm3988, %v3980, %v3985
        %v3990 = vrsqrt.pop %v3884
        %v3991 = vmul.f32 %v3990, %v3884
        %v3992 = vmul.f32 %v3991, %v3990
        %v3993 = vmul.f32 0.5, %v3992
        %v3994 = vsub.f32 1.5, %v3993
        %v3995 = vmul.f32 %v3990, %v3994
        %vm3996 = vweird.f32 %v3884
        %vm3997 = vweird.f32 %v3990
        %vm3998 = vmor %vm3996, %vm3997
        %v3999 = vsel %vm3998, %v3990, %v3995
        %v4000 = vrsqrt.pop %v3885
        %v4001 = vmul.f32 %v4000, %v3885
        %v4002 = vmul.f32 %v4001, %v4000
        %v4003 = vmul.f32 0.5, %v4002
        %v4004 = vsub.f32 1.5, %v4003
        %v4005 = vmul.f32 %v4000, %v4004
        %vm4006 = vweird.f32 %v3885
        %vm4007 = vweird.f32 %v4000
        %vm4008 = vmor %vm4006, %vm4007
        %v4009 = vsel %vm4008, %v4000, %v4005
        %v4010 = vrsqrt.pop %v3886
        %v4011 = vmul.f32 %v4010, %v3886
        %v4012 = vmul.f32 %v4011, %v4010
        %v4013 = vmul.f32 0.5, %v4012
        %v4014 = vsub.f32 1.5, %v4013
        %v4015 = vmul.f32 %v4010, %v4014
        %vm4016 = vweird.f32 %v3886
        %vm4017 = vweird.f32 %v4010
        %vm4018 = vmor %vm4016, %vm4017
        %v4019 = vsel %vm4018, %v4010, %v4015
        %v4020 = vrsqrt.pop %v3887
        %v4021 = vmul.f32 %v4020, %v3887
        %v4022 = vmul.f32 %v4021, %v4020
        %v4023 = vmul.f32 0.5, %v4022
        %v4024 = vsub.f32 1.5, %v4023
        %v4025 = vmul.f32 %v4020, %v4024
        %vm4026 = vweird.f32 %v3887
        %vm4027 = vweird.f32 %v4020
        %vm4028 = vmor %vm4026, %vm4027
        %v4029 = vsel %vm4028, %v4020, %v4025
        %v4030 = vrsqrt.pop %v3888
        %v4031 = vmul.f32 %v4030, %v3888
        %v4032 = vmul.f32 %v4031, %v4030
        %v4033 = vmul.f32 0.5, %v4032
        %v4034 = vsub.f32 1.5, %v4033
        %v4035 = vmul.f32 %v4030, %v4034
        %vm4036 = vweird.f32 %v3888
        %vm4037 = vweird.f32 %v4030
        %vm4038 = vmor %vm4036, %vm4037
        %v4039 = vsel %vm4038, %v4030, %v4035
        %v4040 = vrsqrt.pop %v3889
        %v4041 = vmul.f32 %v4040, %v3889
        %v4042 = vmul.f32 %v4041, %v4040
        %v4043 = vmul.f32 0.5, %v4042
        %v4044 = vsub.f32 1.5, %v4043
        %v4045 = vmul.f32 %v4040, %v4044
        %vm4046 = vweird.f32 %v3889
        %vm4047 = vweird.f32 %v4040
        %vm4048 = vmor %vm4046, %vm4047
        %v4049 = vsel %vm4048, %v4040, %v4045
        %v4050 = vmul.f32 %v3794, %v3899
        %v4051 = vmul.f32 %v3795, %v3909
        %v4052 = vmul.f32 %v3796, %v3919
        %v4053 = vmul.f32 %v3797, %v3929
        %v4054 = vmul.f32 %v3798, %v3939
        %v4055 = vmul.f32 %v3799, %v3949
        %v4056 = vmul.f32 %v3800, %v3959
        %v4057 = vmul.f32 %v3801, %v3969
        %v4058 = vmul.f32 %v3802, %v3979
        %v4059 = vmul.f32 %v3803, %v3989
        %v4060 = vmul.f32 %v3804, %v3999
        %v4061 = vmul.f32 %v3805, %v4009
        %v4062 = vmul.f32 %v3806, %v4019
        %v4063 = vmul.f32 %v3807, %v4029
        %v4064 = vmul.f32 %v3808, %v4039
        %v4065 = vmul.f32 %v3809, %v4049
        %v4067 = vperm.slane %v3744, 0
        %v4069 = vmul.f32 %v4050, %v4067
        %v4070 = vmul.f32 %v4051, %v4067
        %v4071 = vmul.f32 %v4052, %v4067
        %v4072 = vmul.f32 %v4053, %v4067
        %v4073 = vmul.f32 %v4054, %v4067
        %v4074 = vmul.f32 %v4055, %v4067
        %v4075 = vmul.f32 %v4056, %v4067
        %v4076 = vmul.f32 %v4057, %v4067
        %v4077 = vmul.f32 %v4058, %v4067
        %v4078 = vmul.f32 %v4059, %v4067
        %v4079 = vmul.f32 %v4060, %v4067
        %v4080 = vmul.f32 %v4061, %v4067
        %v4081 = vmul.f32 %v4062, %v4067
        %v4082 = vmul.f32 %v4063, %v4067
        %v4083 = vmul.f32 %v4064, %v4067
        %v4084 = vmul.f32 %v4065, %v4067
        %v4086 = vperm.slane %v3745, 0
        %v4088 = vadd.f32 %v4069, %v4086
        %v4089 = vadd.f32 %v4070, %v4086
        %v4090 = vadd.f32 %v4071, %v4086
        %v4091 = vadd.f32 %v4072, %v4086
        %v4092 = vadd.f32 %v4073, %v4086
        %v4093 = vadd.f32 %v4074, %v4086
        %v4094 = vadd.f32 %v4075, %v4086
        %v4095 = vadd.f32 %v4076, %v4086
        %v4096 = vadd.f32 %v4077, %v4086
        %v4097 = vadd.f32 %v4078, %v4086
        %v4098 = vadd.f32 %v4079, %v4086
        %v4099 = vadd.f32 %v4080, %v4086
        %v4100 = vadd.f32 %v4081, %v4086
        %v4101 = vadd.f32 %v4082, %v4086
        %v4102 = vadd.f32 %v4083, %v4086
        %v4103 = vadd.f32 %v4084, %v4086
        %4104 = vst [vmem:[#allocation2] sm:$0xff] %v4088
        %4105 = vst [vmem:[#allocation2 + $0x8] sm:$0xff] %v4089
        %4106 = vst [vmem:[#allocation2 + $0x10] sm:$0xff] %v4090
        %4107 = vst [vmem:[#allocation2 + $0x18] sm:$0xff] %v4091
        %4108 = vst [vmem:[#allocation2 + $0x20] sm:$0xff] %v4092
        %4109 = vst [vmem:[#allocation2 + $0x28] sm:$0xff] %v4093
        %4110 = vst [vmem:[#allocation2 + $0x30] sm:$0xff] %v4094
        %4111 = vst [vmem:[#allocation2 + $0x38] sm:$0xff] %v4095
        %4112 = vst [vmem:[#allocation2 + $0x40] sm:$0xff] %v4096
        %4113 = vst [vmem:[#allocation2 + $0x48] sm:$0xff] %v4097
        %4114 = vst [vmem:[#allocation2 + $0x50] sm:$0xff] %v4098
        %4115 = vst [vmem:[#allocation2 + $0x58] sm:$0xff] %v4099
        %4116 = vst [vmem:[#allocation2 + $0x60] sm:$0xff] %v4100
        %4117 = vst [vmem:[#allocation2 + $0x68] sm:$0xff] %v4101
        %4118 = vst [vmem:[#allocation2 + $0x70] sm:$0xff] %v4102
        %4119 = vst [vmem:[#allocation2 + $0x78] sm:$0xff] %v4103
        %p4120 = scmp.eq.s32.totalorder %s37, 1
        // Predicated region
        $region97: #{bert_on_qa_forward.1} parent=91 // pred_check
          %p4121 = pneg %p4120
        $region98: #{bert_on_qa_forward.1} parent=91 // pred_check_branch
          %4123 = sbr.rel (%p4121) target = $region100
        $region99: #{bert_on_qa_forward.1} parent=91 // pred_region
          %v4124 = vadd.f32 %v4088, %v4089
          %v4125 = vadd.f32 %v4124, %v4090
          %v4126 = vadd.f32 %v4125, %v4091
          %v4127 = vadd.f32 %v4126, %v4092
          %v4128 = vadd.f32 %v4127, %v4093
          %v4129 = vadd.f32 %v4128, %v4094
          %v4130 = vadd.f32 %v4129, %v4095
          %v4131 = vadd.f32 %v4130, %v4096
          %v4132 = vadd.f32 %v4131, %v4097
          %v4133 = vadd.f32 %v4132, %v4098
          %v4134 = vadd.f32 %v4133, %v4099
          %v4135 = vadd.f32 %v4134, %v4100
          %v4136 = vadd.f32 %v4135, %v4101
          %v4137 = vadd.f32 %v4136, %v4102
          %v4138 = vadd.f32 %v4137, %v4103
          %v4139 = vrot.slane %v4138, 4
          %v4140 = vadd.f32 %v4138, %v4139
          %v4141 = vrot.slane %v4140, 2
          %v4142 = vadd.f32 %v4140, %v4141
          %v4143 = vrot.slane %v4142, 1
          %v4144 = vadd.f32 %v4142, %v4143
          %v4145 = vmul.f32 %v4144, %v2659
          %v4146 = vmax.f32 %v4088, %v4092
          %v4147 = vmax.f32 %v4089, %v4093
          %v4148 = vmax.f32 %v4090, %v4094
          %v4149 = vmax.f32 %v4091, %v4095
          %v4150 = vmax.f32 %v4146, %v4096
          %v4151 = vmax.f32 %v4147, %v4097
          %v4152 = vmax.f32 %v4148, %v4098
          %v4153 = vmax.f32 %v4149, %v4099
          %v4154 = vmax.f32 %v4150, %v4100
          %v4155 = vmax.f32 %v4151, %v4101
          %v4156 = vmax.f32 %v4152, %v4102
          %v4157 = vmax.f32 %v4153, %v4103
          %v4158 = vmax.f32 %v4154, %v4155
          %v4159 = vmax.f32 %v4156, %v4157
          %v4160 = vmax.f32 %v4158, %v4159
          %v4161 = vrot.slane %v4160, 4
          %v4162 = vmax.f32 %v4160, %v4161
          %v4163 = vrot.slane %v4162, 2
          %v4164 = vmax.f32 %v4162, %v4163
          %v4165 = vrot.slane %v4164, 1
          %v4166 = vmax.f32 %v4164, %v4165
          %v4167 = vld [vmem:[%s16] sm:$0xff]
          %v4168 = vld [vmem:[%s16 + $0x8] sm:$0xff]
          %v4169 = vld [vmem:[%s16 + $0x10] sm:$0xff]
          %v4170 = vld [vmem:[%s16 + $0x18] sm:$0xff]
          %v4171 = vld [vmem:[%s16 + $0x20] sm:$0xff]
          %v4172 = vld [vmem:[%s16 + $0x28] sm:$0xff]
          %v4173 = vld [vmem:[%s16 + $0x30] sm:$0xff]
          %v4174 = vld [vmem:[%s16 + $0x38] sm:$0xff]
          %v4175 = vld [vmem:[%s16 + $0x40] sm:$0xff]
          %v4176 = vld [vmem:[%s16 + $0x48] sm:$0xff]
          %v4177 = vld [vmem:[%s16 + $0x50] sm:$0xff]
          %v4178 = vld [vmem:[%s16 + $0x58] sm:$0xff]
          %v4179 = vld [vmem:[%s16 + $0x60] sm:$0xff]
          %v4180 = vld [vmem:[%s16 + $0x68] sm:$0xff]
          %v4181 = vld [vmem:[%s16 + $0x70] sm:$0xff]
          %v4182 = vld [vmem:[%s16 + $0x78] sm:$0xff]
          %v4183 = vld [vmem:[%s16 + $0x80] sm:$0xff]
          %v4184 = vld [vmem:[%s16 + $0x88] sm:$0xff]
          %v4185 = vld [vmem:[%s16 + $0x90] sm:$0xff]
          %v4186 = vld [vmem:[%s16 + $0x98] sm:$0xff]
          %v4187 = vld [vmem:[%s16 + $0xa0] sm:$0xff]
          %v4188 = vld [vmem:[%s16 + $0xa8] sm:$0xff]
          %v4189 = vld [vmem:[%s16 + $0xb0] sm:$0xff]
          %v4190 = vld [vmem:[%s16 + $0xb8] sm:$0xff]
          %v4191 = vld [vmem:[%s16 + $0xc0] sm:$0xff]
          %v4192 = vld [vmem:[%s16 + $0xc8] sm:$0xff]
          %v4193 = vld [vmem:[%s16 + $0xd0] sm:$0xff]
          %v4194 = vld [vmem:[%s16 + $0xd8] sm:$0xff]
          %v4195 = vld [vmem:[%s16 + $0xe0] sm:$0xff]
          %v4196 = vld [vmem:[%s16 + $0xe8] sm:$0xff]
          %v4197 = vld [vmem:[%s16 + $0xf0] sm:$0xff]
          %v4198 = vld [vmem:[%s16 + $0xf8] sm:$0xff]
          %4199 = vmatpush.msra.mxu0 %v4198
          %4200 = vmatpush.msra.mxu0 %v4197
          %4201 = vmatpush.msra.mxu0 %v4196
          %4202 = vmatpush.msra.mxu0 %v4195
          %4203 = vmatpush.msra.mxu0 %v4194
          %4204 = vmatpush.msra.mxu0 %v4193
          %4205 = vmatpush.msra.mxu0 %v4192
          %4206 = vmatpush.msra.mxu0 %v4191
          %4207 = vmatpush.msra.mxu0 %v4190
          %4208 = vmatpush.msra.mxu0 %v4189
          %4209 = vmatpush.msra.mxu0 %v4188
          %4210 = vmatpush.msra.mxu0 %v4187
          %4211 = vmatpush.msra.mxu0 %v4186
          %4212 = vmatpush.msra.mxu0 %v4185
          %4213 = vmatpush.msra.mxu0 %v4184
          %4214 = vmatpush.msra.mxu0 %v4183
          %4215 = vmatmul.f32.gmra.mxu0 %v4166
          %v4216 = vpop.f32.mrf.mxu0
          %v4217 = vadd.f32 0.0, %v4216
          %4218 = vdwg.mxu0
          %4219 = vmatpush.msra.mxu0 %v4182
          %4220 = vmatpush.msra.mxu0 %v4181
          %4221 = vmatpush.msra.mxu0 %v4180
          %4222 = vmatpush.msra.mxu0 %v4179
          %4223 = vmatpush.msra.mxu0 %v4178
          %4224 = vmatpush.msra.mxu0 %v4177
          %4225 = vmatpush.msra.mxu0 %v4176
          %4226 = vmatpush.msra.mxu0 %v4175
          %4227 = vmatpush.msra.mxu0 %v4174
          %4228 = vmatpush.msra.mxu0 %v4173
          %4229 = vmatpush.msra.mxu0 %v4172
          %4230 = vmatpush.msra.mxu0 %v4171
          %4231 = vmatpush.msra.mxu0 %v4170
          %4232 = vmatpush.msra.mxu0 %v4169
          %4233 = vmatpush.msra.mxu0 %v4168
          %4234 = vmatpush.msra.mxu0 %v4167
          %4235 = vmatmul.f32.gmra.mxu0 %v4145
          %v4236 = vpop.f32.mrf.mxu0
          %v4237 = vadd.f32 %v4217, %v4236
          %4238 = vdwg.mxu0
          %v4239 = vld [vmem:[%s17] sm:$0x1]
          %v4240 = vadd.f32 %v4237, %v4239
          %vm4241 = vcmask 8192
          %4242 = vst.msk [vmem:[%s742] sm:$0x1] %vm4241, %v4240
        $region100: #{bert_on_qa_forward.1} parent=91 // pred_fallthru
          _
        %s4243 = sand.u32 %s500, 1
        %s4244 = scalar_lea.sflag [#allocation5], %s4243
        %s4245 = sand.u32 %s500, 1
        %s4246 = scalar_lea.vmem [#allocation4], %s4245
        // Predicated region
        $region101: #{bert_on_qa_forward.1} parent=91 // pred_check
          %p4247 = pneg %p510
        $region102: #{bert_on_qa_forward.1} parent=91 // pred_check_branch
          %4249 = sbr.rel (%p4247) target = $region104
        $region103: #{bert_on_qa_forward.1} parent=91 // pred_region
          %4251 = vsyncadd %s4244, 0
          %s4252 = scalar_lea.hbm %s18, %s36
          %s4254 = sshll.u32 %s4246, 4
          %s4255 = int_to_ptr.vmem [resolvable:$true] %s4254
          %s4256 = sshll.u32 %s4252, 4
          %s4257 = int_to_ptr.hbm [resolvable:$true] %s4256
          %4259 = dma.vmem_to_hbm [thread:$0]  %s4255, 16, %s4257, %s4244
        $region104: #{bert_on_qa_forward.1} parent=91 // pred_fallthru
          _
      $region92: #{bert_on_qa_forward.1} parent=5 // pred_fallthru
        _
      %p4260 = scmp.le.s32.totalorder 2, %s27
      // Predicated region
      $region105: #{bert_on_qa_forward.1} parent=5 // pred_check
        %p4261 = pneg %p4260
      $region106: #{bert_on_qa_forward.1} parent=5 // pred_check_branch
        %4263 = sbr.rel (%p4261) target = $region108
      $region107: #{bert_on_qa_forward.1} parent=5 // pred_region
        %s4264 = ssub.s32 %s27, 2
        // Predicated region
        $region109: #{bert_on_qa_forward.1} parent=107 // pred_check
          %p4265 = pneg %p516
        $region110: #{bert_on_qa_forward.1} parent=107 // pred_check_branch
          %4267 = sbr.rel (%p4265) target = $region112
        $region111: #{bert_on_qa_forward.1} parent=107 // pred_region
          %s4268 = sand.u32 %s501, 1
          %s4269 = scalar_lea.sflag [#allocation5], %s4268
          %s4270 = sand.u32 %s501, 1
          %s4271 = scalar_lea.vmem [#allocation4], %s4270
          %4273 = dma.done %s4269, 16
        $region112: #{bert_on_qa_forward.1} parent=107 // pred_fallthru
          _
      $region108: #{bert_on_qa_forward.1} parent=5 // pred_fallthru
        _
    $region6: #{bert_on_qa_forward.1} parent=1 // loop_footer
      %s31 = sadd.s32 1, %s27
    $region7: #{bert_on_qa_forward.1} parent=1 // loop_footer_branch
      %26 = sbr.rel target = $region3
    $region8: #{bert_on_qa_forward.1} parent=1 // loop_exit
      _
    %4274 = vsyncpa [#allocation5], 1
    %s4275 = scalar_lea.sflag [#allocation5], 1
    %4276 = vsyncpa %s4275, 1

</llo_original>
